<compile_context>
chip_gen: v7x
topology: tpu7x:2x2x1
jax: 0.10.0
libtpu: 0.0.40
codegen_flags: <defaults>
</compile_context>

<pallas_src>
import functools
import math

import jax
import jax.numpy as jnp
from jax import lax
from jax.experimental import pallas as pl
from jax.experimental.pallas import tpu as pltpu


# ------------------------------- fused kernel ------------------------------- #

def _fused_kernel(z_ref, zp_ref, enc_ref, wq_ref, bq_ref, wkv_ref, bkv_ref,
                  wiz_ref, wia_ref, gbias_ref, ow_ref, ob_ref,
                  o_ref, q_s, a2c_s, acc_s, *, heads, sq, sk, bt):
    """One (batch-tile, layer) step: attention (all heads, all batches in the
    tile) + gate + accumulate; output Linear applied on the last layer step."""
    layer = pl.program_id(1)
    f32, bf16 = jnp.float32, jnp.bfloat16

    _, rows, dk = acc_s.shape            # rows = bt * sq
    d_model = heads * dk
    rph = sq // heads                    # viewed rows covered by one head

    # ---- once per batch tile (layer == 0): hoisted Q projection + acc init.
    #      zp holds Z with rows pre-permuted (perm[p] = (p % rph)*h + p//rph)
    #      so that each head's attention rows come out grouped by the viewed
    #      column block j.                                                 ----
    @pl.when(layer == 0)
    def _init():
        q = jnp.dot(zp_ref[...], wq_ref[...], preferred_element_type=f32)
        q_s[...] = (q + bq_ref[...]).astype(bf16)
        acc_s[...] = jnp.zeros(acc_s.shape, f32)

    # ---- per-layer K / V projections over the folded (bt*Sk, D) rows ----
    hi = enc_ref[0].astype(bf16)                                   # (bt*Sk, D)
    k = jnp.dot(hi, wkv_ref[0, 0], preferred_element_type=f32) + bkv_ref[0, 0]
    v = jnp.dot(hi, wkv_ref[0, 1], preferred_element_type=f32) + bkv_ref[0, 1]
    qb = q_s[...]                                                  # bf16
    kb = k.astype(bf16)
    vb = v.astype(bf16)

    # ---- per (batch-in-tile, head) attention.  att rows are in permuted
    #      (j-grouped) order, so the torch `.view` layout is written with
    #      `heads` contiguous slice stores per head: plane j of a2c_s holds
    #      viewed columns [j*dk, (j+1)*dk) for every viewed row.          ----
    for b in range(bt):
        rq = slice(b * sq, (b + 1) * sq)
        rk = slice(b * sk, (b + 1) * sk)
        for hh in range(heads):
            cs = slice(hh * dk, (hh + 1) * dk)
            qh, kh, vh = qb[rq, cs], kb[rk, cs], vb[rk, cs]
            s = lax.dot_general(qh, kh, (((1,), (1,)), ((), ())),
                                preferred_element_type=f32)        # (Sq, Sk)
            s = s - jnp.max(s, axis=-1, keepdims=True)
            ex = jnp.exp(s)
            p = ex / jnp.sum(ex, axis=-1, keepdims=True)           # exact div
            att = jnp.dot(p.astype(bf16), vh,
                          preferred_element_type=f32)              # (Sq, dk)
            r0 = b * sq + hh * rph
            for j in range(heads):
                a2c_s[j, r0:r0 + rph, :] = att[j * rph:(j + 1) * rph, :]
    # TODO(synk): optional `mask` (masked_fill after softmax) not implemented.

    # ---- gate sigmoid(Wi @ [Z; att_viewed] + b), all in f32 VPU math ----
    zf = z_ref[...]                                                # (bt*Sq, D)
    g = jnp.sum(zf * wiz_ref[0], axis=-1, keepdims=True) + gbias_ref[0]
    for j in range(heads):
        g = g + jnp.sum(a2c_s[j] * wia_ref[0, j], axis=-1, keepdims=True)
    alpha = 1.0 / (1.0 + jnp.exp(-g))                              # (bt*Sq, 1)
    for j in range(heads):
        acc_s[j] = acc_s[j] + alpha * a2c_s[j]

    # ---- last layer: output Linear as `heads` partial (rows, dk)x(dk, D)
    #      matmuls (same total FLOPs as one (rows, D)x(D, D) matmul), one
    #      lane-dense (bt*Sq, D) store.                                   ----
    @pl.when(layer == pl.num_programs(1) - 1)
    def _finish():
        out = ob_ref[...] + jnp.dot(acc_s[0].astype(bf16), ow_ref[0],
                                    preferred_element_type=f32)
        for j in range(1, heads):
            out = out + jnp.dot(acc_s[j].astype(bf16), ow_ref[j],
                                preferred_element_type=f32)
        o_ref[...] = out.astype(o_ref.dtype)


# ------------------------------ wrapper / glue ------------------------------ #

def _pick_batch_tile(bs, sq, sk, target_rows=256):
    """Largest divisor of bs keeping the folded row count modest."""
    bt = 1
    for cand in range(1, bs + 1):
        if bs % cand == 0 and cand * max(sq, sk) <= max(target_rows, max(sq, sk)):
            bt = cand
    return bt


def multi_layer_attention(Z, enc, params, heads):
    """Pallas implementation of MultiLayerAttention.forward (mask=None)."""
    bs, sq, d_model = Z.shape
    num_layers, _, sk, _ = enc.shape
    dk = d_model // heads
    f32, bf16 = jnp.float32, jnp.bfloat16

    assert d_model % heads == 0
    # TODO(synk): the direct viewed-layout store assumes sq % heads == 0; a
    #             general Sq would need the flat (heads*Sq, dk) accumulator.
    assert sq % heads == 0, "seq_q must be divisible by heads"

    bt = _pick_batch_tile(bs, sq, sk)
    rph = sq // heads
    scale = 1.0 / math.sqrt(dk)

    # ---- host-side parameter plumbing (tiny tensors, free XLA ops) ----
    wq_t = params['wq_w'].T.astype(bf16)                                # (D, D)
    bq = params['wq_b'].reshape(1, d_model).astype(f32)
    wkv = jnp.stack([(params['wk_w'] * scale).transpose(0, 2, 1),       # fold 1/sqrt(dk)
                     params['wv_w'].transpose(0, 2, 1)],
                    axis=1).astype(bf16)                                # (L, 2, D, D)
    bkv = jnp.stack([params['wk_b'] * scale, params['wv_b']],
                    axis=1).reshape(num_layers, 2, 1, d_model).astype(f32)
    wiz = params['wi_w'][:, :, :d_model].astype(f32)                    # (L, 1, D)
    wia = params['wi_w'][:, 0, d_model:].reshape(
        num_layers, heads, 1, dk).astype(f32)                           # (L, h, 1, dk)
    gbias = (params['wi_b'] + params['bi']).reshape(num_layers, 1, 1).astype(f32)
    ow_r = params['out_w'].T.reshape(heads, dk, d_model).astype(bf16)   # (h, dk, D)
    ob = params['out_b'].reshape(1, d_model).astype(f32)

    # Q-row permutation: perm[p] = (p % rph)*heads + p//rph, so head hh's
    # attention output rows come out grouped by viewed column block j.
    p_idx = jnp.arange(sq)
    perm = (p_idx % rph) * heads + (p_idx // rph)
    zp = Z[:, perm, :].reshape(bs * sq, d_model).astype(bf16)
    zf = Z.reshape(bs * sq, d_model).astype(f32)
    encf = enc.reshape(num_layers, bs * sk, d_model).astype(f32)

    kernel = functools.partial(_fused_kernel, heads=heads, sq=sq, sk=sk, bt=bt)

    out = pl.pallas_call(
        kernel,
        out_shape=jax.ShapeDtypeStruct((bs * sq, d_model), f32),
        grid_spec=pltpu.PrefetchScalarGridSpec(
            num_scalar_prefetch=0,
            grid=(bs // bt, num_layers),
            in_specs=[
                pl.BlockSpec((bt * sq, d_model), lambda b, l: (b, 0)),           # Z (gate)
                pl.BlockSpec((bt * sq, d_model), lambda b, l: (b, 0)),           # Z permuted (Q)
                pl.BlockSpec((1, bt * sk, d_model), lambda b, l: (l, b, 0)),     # enc
                pl.BlockSpec((d_model, d_model), lambda b, l: (0, 0)),           # Wq^T (bf16)
                pl.BlockSpec((1, d_model), lambda b, l: (0, 0)),                 # bq
                pl.BlockSpec((1, 2, d_model, d_model), lambda b, l: (l, 0, 0, 0)),  # Wk^T/Wv^T
                pl.BlockSpec((1, 2, 1, d_model), lambda b, l: (l, 0, 0, 0)),     # bk/bv
                pl.BlockSpec((1, 1, d_model), lambda b, l: (l, 0, 0)),           # Wi[:, :D]
                pl.BlockSpec((1, heads, 1, dk), lambda b, l: (l, 0, 0, 0)),      # Wi[:, D:]
                pl.BlockSpec((1, 1, 1), lambda b, l: (l, 0, 0)),                 # Wi bias + bi
                pl.BlockSpec((heads, dk, d_model), lambda b, l: (0, 0, 0)),      # out W^T
                pl.BlockSpec((1, d_model), lambda b, l: (0, 0)),                 # out b
            ],
            out_specs=pl.BlockSpec((bt * sq, d_model), lambda b, l: (b, 0)),
            scratch_shapes=[
                pltpu.VMEM((bt * sq, d_model), jnp.bfloat16),   # hoisted Q (permuted rows)
                pltpu.VMEM((heads, bt * sq, dk), jnp.float32),  # current-layer att (viewed cols)
                pltpu.VMEM((heads, bt * sq, dk), jnp.float32),  # gated accumulator
            ],
        ),
        compiler_params=pltpu.CompilerParams(
            dimension_semantics=("parallel", "arbitrary")),
    )(zf, zp, encf, wq_t, bq, wkv, bkv, wiz, wia, gbias, ow_r, ob)
    return out.reshape(bs, sq, d_model)


# -------------------------- deterministic parameters ------------------------ #

def init_params(key, num_layers, d_model):
    ks = jax.random.split(key, 10)
    s = 0.05
    return {
        # torch Linear stores weight as (out, in)
        'wq_w': jax.random.normal(ks[0], (d_model, d_model), jnp.float32) * s,
        'wq_b': jax.random.normal(ks[1], (d_model,), jnp.float32) * s,
        'wk_w': jax.random.normal(ks[2], (num_layers, d_model, d_model), jnp.float32) * s,
        'wk_b': jax.random.normal(ks[3], (num_layers, d_model), jnp.float32) * s,
        'wv_w': jax.random.normal(ks[4], (num_layers, d_model, d_model), jnp.float32) * s,
        'wv_b': jax.random.normal(ks[5], (num_layers, d_model), jnp.float32) * s,
        'wi_w': jax.random.normal(ks[6], (num_layers, 1, 2 * d_model), jnp.float32) * s,
        'wi_b': jax.random.normal(ks[7], (num_layers,), jnp.float32) * s,
        'bi':   jnp.zeros((num_layers,), jnp.float32),   # torch init: zeros
        'out_w': jax.random.normal(ks[8], (d_model, d_model), jnp.float32) * s,
        'out_b': jax.random.normal(ks[9], (d_model,), jnp.float32) * s,
    }


# ------------------------------ pure-JAX reference -------------------------- #

def reference(Z, enc, p, heads):
    bs, Sq, D = Z.shape
    L = enc.shape[0]
    dk = D // heads
    hp = jax.lax.Precision.HIGHEST
    atts = []
    for i in range(L):
        Hi = enc[i]
        Q = jnp.einsum('bsd,ed->bse', Z, p['wq_w'], precision=hp) + p['wq_b']
        K = jnp.einsum('bsd,ed->bse', Hi, p['wk_w'][i], precision=hp) + p['wk_b'][i]
        V = jnp.einsum('bsd,ed->bse', Hi, p['wv_w'][i], precision=hp) + p['wv_b'][i]
        Q = Q.reshape(bs, -1, heads, dk).transpose(0, 2, 1, 3)
        K = K.reshape(bs, -1, heads, dk).transpose(0, 2, 1, 3)
        V = V.reshape(bs, -1, heads, dk).transpose(0, 2, 1, 3)
        scores = jnp.einsum('bhqd,bhkd->bhqk', Q, K / math.sqrt(dk), precision=hp)
        alpha = jax.nn.softmax(scores, axis=-1)
        # row-major reshape == torch's .view on the contiguous (b,h,Sq,dk) result
        att = jnp.einsum('bhqk,bhkd->bhqd', alpha, V, precision=hp).reshape(bs, -1, D)
        atts.append(att)
    acc = jnp.zeros((bs, Sq, D), jnp.float32)
    for i in range(L):
        cat = jnp.concatenate([Z, atts[i]], axis=2)
        g = jnp.einsum('bsc,oc->bso', cat, p['wi_w'][i], precision=hp) + p['wi_b'][i] + p['bi'][i]
        acc = acc + jax.nn.sigmoid(g) * atts[i]
    return jnp.einsum('bsd,ed->bse', acc, p['out_w'], precision=hp) + p['out_b']


# ------------------------------------ main ---------------------------------- #

if __name__ == "__main__":
    NUM_LAYERS, D_MODEL, HEADS = 3, 32, 4
    BS, SQ, SK = 2, 8, 8

    key = jax.random.PRNGKey(0)
    kz, ke, kp = jax.random.split(key, 3)
    Z = jax.random.normal(kz, (BS, SQ, D_MODEL), jnp.float32)
    enc = jax.random.normal(ke, (NUM_LAYERS, BS, SK, D_MODEL), jnp.float32)
    params = init_params(kp, NUM_LAYERS, D_MODEL)

    out = multi_layer_attention(Z, enc, params, HEADS)
    out = jax.block_until_ready(out)

    ref = reference(Z, enc, params, HEADS)
    assert out.shape == (BS, SQ, D_MODEL), out.shape
    max_err = float(jnp.max(jnp.abs(out - ref)))
    # tolerance covers bf16 MXU operands (f32 accumulation, exact divides)
    assert max_err < 1e-2, f"max abs err {max_err}"

    print("KERNEL_OK")
</pallas_src>

<mosaic_0001>
module attributes {stable_mosaic.version = 11 : i64} {
  func.func @_fused_kernel(%arg0: i32, %arg1: i32, %arg2: memref<16x32xf32, #tpu.memory_space<vmem>>, %arg3: memref<16x32xbf16, #tpu.memory_space<vmem>>, %arg4: memref<1x16x32xf32, #tpu.memory_space<vmem>>, %arg5: memref<32x32xbf16, #tpu.memory_space<vmem>>, %arg6: memref<1x32xf32, #tpu.memory_space<vmem>>, %arg7: memref<1x2x32x32xbf16, #tpu.memory_space<vmem>>, %arg8: memref<1x2x1x32xf32, #tpu.memory_space<vmem>>, %arg9: memref<1x1x32xf32, #tpu.memory_space<vmem>>, %arg10: memref<1x4x1x8xf32, #tpu.memory_space<vmem>>, %arg11: memref<1x1x1xf32, #tpu.memory_space<vmem>>, %arg12: memref<4x8x32xbf16, #tpu.memory_space<vmem>>, %arg13: memref<1x32xf32, #tpu.memory_space<vmem>>, %arg14: memref<16x32xf32, #tpu.memory_space<vmem>>, %arg15: memref<16x32xbf16, #tpu.memory_space<vmem>>, %arg16: memref<4x16x8xf32, #tpu.memory_space<vmem>>, %arg17: memref<4x16x8xf32, #tpu.memory_space<vmem>>) attributes {dimension_semantics = [#tpu.dimension_semantics<parallel>, #tpu.dimension_semantics<arbitrary>], iteration_bounds = array<i64: 1, 3>, scalar_prefetch = 0 : i64, scratch_operands = 3 : i64, tpu.core_type = #tpu.core_type<tc>, window_params = [{transform_indices = @transform_0, window_bounds = array<i64: 16, 32>}, {transform_indices = @transform_1, window_bounds = array<i64: 16, 32>}, {transform_indices = @transform_2, window_bounds = array<i64: 1, 16, 32>}, {pipeline_mode = #tpu.pipeline_mode<synchronous>, transform_indices = @transform_3, window_bounds = array<i64: 32, 32>}, {pipeline_mode = #tpu.pipeline_mode<synchronous>, transform_indices = @transform_4, window_bounds = array<i64: 1, 32>}, {transform_indices = @transform_5, window_bounds = array<i64: 1, 2, 32, 32>}, {transform_indices = @transform_6, window_bounds = array<i64: 1, 2, 1, 32>}, {transform_indices = @transform_7, window_bounds = array<i64: 1, 1, 32>}, {transform_indices = @transform_8, window_bounds = array<i64: 1, 4, 1, 8>}, {transform_indices = @transform_9, window_bounds = array<i64: 1, 1, 1>}, {pipeline_mode = #tpu.pipeline_mode<synchronous>, transform_indices = @transform_10, window_bounds = array<i64: 4, 8, 32>}, {pipeline_mode = #tpu.pipeline_mode<synchronous>, transform_indices = @transform_11, window_bounds = array<i64: 1, 32>}, {transform_indices = @transform_12, window_bounds = array<i64: 16, 32>}]} {
    %c0_i32 = arith.constant 0 : i32
    %0 = arith.cmpi eq, %arg1, %c0_i32 : i32
    %1 = arith.extui %0 : i1 to i32
    %c0_i32_0 = arith.constant 0 : i32
    %2 = arith.cmpi ne, %1, %c0_i32_0 : i32
    scf.if %2 {
      %c0_222 = arith.constant 0 : index
      %c0_223 = arith.constant 0 : index
      %368 = vector.load %arg3[%c0_222, %c0_223] : memref<16x32xbf16, #tpu.memory_space<vmem>>, vector<16x32xbf16>
      %c0_224 = arith.constant 0 : index
      %c0_225 = arith.constant 0 : index
      %369 = vector.load %arg5[%c0_224, %c0_225] : memref<32x32xbf16, #tpu.memory_space<vmem>>, vector<32x32xbf16>
      %cst_226 = arith.constant dense<0.000000e+00> : vector<16x32xf32>
      %370 = tpu.matmul %368, %369, %cst_226 {dimension_numbers = #tpu.dot_dimension_numbers<[1], [0], [0], [1], [0, 0, 1, 1], [], []>} : vector<16x32xbf16>, vector<32x32xbf16>, vector<16x32xf32> -> vector<16x32xf32>
      %c0_227 = arith.constant 0 : index
      %c0_228 = arith.constant 0 : index
      %371 = vector.load %arg6[%c0_227, %c0_228] : memref<1x32xf32, #tpu.memory_space<vmem>>, vector<1x32xf32>
      %372 = vector.broadcast %371 : vector<1x32xf32> to vector<16x32xf32>
      %373 = arith.addf %370, %372 : vector<16x32xf32>
      %374 = arith.truncf %373 : vector<16x32xf32> to vector<16x32xbf16>
      %c0_229 = arith.constant 0 : index
      %c0_230 = arith.constant 0 : index
      %375 = vector.load %arg15[%c0_229, %c0_230] : memref<16x32xbf16, #tpu.memory_space<vmem>>, vector<16x32xbf16>
      tpu.vector_store %arg15[%c0_229, %c0_230], %374 {strides = array<i32>} : memref<16x32xbf16, #tpu.memory_space<vmem>>, vector<16x32xbf16>,
      %cst_231 = arith.constant 0.000000e+00 : f32
      %376 = vector.broadcast %cst_231 : f32 to vector<4x16x8xf32>
      %c0_232 = arith.constant 0 : index
      %c0_233 = arith.constant 0 : index
      %c0_234 = arith.constant 0 : index
      %377 = vector.load %arg17[%c0_232, %c0_233, %c0_234] : memref<4x16x8xf32, #tpu.memory_space<vmem>>, vector<4x16x8xf32>
      tpu.vector_store %arg17[%c0_232, %c0_233, %c0_234], %376 {strides = array<i32>} : memref<4x16x8xf32, #tpu.memory_space<vmem>>, vector<4x16x8xf32>,
    } else {
    }
    %c0 = arith.constant 0 : index
    %c0_1 = arith.constant 0 : index
    %c0_2 = arith.constant 0 : index
    %3 = vector.load %arg4[%c0, %c0_1, %c0_2] : memref<1x16x32xf32, #tpu.memory_space<vmem>>, vector<1x16x32xf32>
    %4 = vector.shape_cast %3 : vector<1x16x32xf32> to vector<16x32xf32>
    %5 = arith.truncf %4 : vector<16x32xf32> to vector<16x32xbf16>
    %c0_3 = arith.constant 0 : index
    %c0_4 = arith.constant 0 : index
    %c0_5 = arith.constant 0 : index
    %c0_6 = arith.constant 0 : index
    %6 = vector.load %arg7[%c0_3, %c0_4, %c0_5, %c0_6] : memref<1x2x32x32xbf16, #tpu.memory_space<vmem>>, vector<1x1x32x32xbf16>
    %7 = vector.shape_cast %6 : vector<1x1x32x32xbf16> to vector<32x32xbf16>
    %cst = arith.constant dense<0.000000e+00> : vector<16x32xf32>
    %8 = tpu.matmul %5, %7, %cst {dimension_numbers = #tpu.dot_dimension_numbers<[1], [0], [0], [1], [0, 0, 1, 1], [], []>} : vector<16x32xbf16>, vector<32x32xbf16>, vector<16x32xf32> -> vector<16x32xf32>
    %c0_7 = arith.constant 0 : index
    %c0_8 = arith.constant 0 : index
    %c0_9 = arith.constant 0 : index
    %c0_10 = arith.constant 0 : index
    %9 = vector.load %arg8[%c0_7, %c0_8, %c0_9, %c0_10] : memref<1x2x1x32xf32, #tpu.memory_space<vmem>>, vector<1x1x1x32xf32>
    %10 = vector.shape_cast %9 : vector<1x1x1x32xf32> to vector<1x32xf32>
    %11 = vector.broadcast %10 : vector<1x32xf32> to vector<16x32xf32>
    %12 = arith.addf %8, %11 : vector<16x32xf32>
    %c0_11 = arith.constant 0 : index
    %c1 = arith.constant 1 : index
    %c0_12 = arith.constant 0 : index
    %c0_13 = arith.constant 0 : index
    %13 = vector.load %arg7[%c0_11, %c1, %c0_12, %c0_13] : memref<1x2x32x32xbf16, #tpu.memory_space<vmem>>, vector<1x1x32x32xbf16>
    %14 = vector.shape_cast %13 : vector<1x1x32x32xbf16> to vector<32x32xbf16>
    %cst_14 = arith.constant dense<0.000000e+00> : vector<16x32xf32>
    %15 = tpu.matmul %5, %14, %cst_14 {dimension_numbers = #tpu.dot_dimension_numbers<[1], [0], [0], [1], [0, 0, 1, 1], [], []>} : vector<16x32xbf16>, vector<32x32xbf16>, vector<16x32xf32> -> vector<16x32xf32>
    %c0_15 = arith.constant 0 : index
    %c1_16 = arith.constant 1 : index
    %c0_17 = arith.constant 0 : index
    %c0_18 = arith.constant 0 : index
    %16 = vector.load %arg8[%c0_15, %c1_16, %c0_17, %c0_18] : memref<1x2x1x32xf32, #tpu.memory_space<vmem>>, vector<1x1x1x32xf32>
    %17 = vector.shape_cast %16 : vector<1x1x1x32xf32> to vector<1x32xf32>
    %18 = vector.broadcast %17 : vector<1x32xf32> to vector<16x32xf32>
    %19 = arith.addf %15, %18 : vector<16x32xf32>
    %c0_19 = arith.constant 0 : index
    %c0_20 = arith.constant 0 : index
    %20 = vector.load %arg15[%c0_19, %c0_20] : memref<16x32xbf16, #tpu.memory_space<vmem>>, vector<16x32xbf16>
    %21 = arith.truncf %12 : vector<16x32xf32> to vector<16x32xbf16>
    %22 = arith.truncf %19 : vector<16x32xf32> to vector<16x32xbf16>
    %23 = vector.extract_strided_slice %20 {offsets = [0, 0], sizes = [8, 8], strides = [1, 1]} : vector<16x32xbf16> to vector<8x8xbf16>
    %24 = vector.extract_strided_slice %21 {offsets = [0, 0], sizes = [8, 8], strides = [1, 1]} : vector<16x32xbf16> to vector<8x8xbf16>
    %25 = vector.extract_strided_slice %22 {offsets = [0, 0], sizes = [8, 8], strides = [1, 1]} : vector<16x32xbf16> to vector<8x8xbf16>
    %cst_21 = arith.constant dense<0.000000e+00> : vector<8x8xf32>
    %26 = tpu.matmul %23, %24, %cst_21 {dimension_numbers = #tpu.dot_dimension_numbers<[1], [1], [0], [0], [0, 0, 1, 0], [], []>} : vector<8x8xbf16>, vector<8x8xbf16>, vector<8x8xf32> -> vector<8x8xf32>
    %cst_22 = arith.constant dense<0xFF800000> : vector<8xf32>
    %27 = vector.multi_reduction <maximumf>, %26, %cst_22 [1] : vector<8x8xf32> to vector<8xf32>
    %28 = vector.shape_cast %27 : vector<8xf32> to vector<8x1xf32>
    %29 = vector.broadcast %28 : vector<8x1xf32> to vector<8x8xf32>
    %30 = arith.subf %26, %29 : vector<8x8xf32>
    %31 = math.exp %30 : vector<8x8xf32>
    %cst_23 = arith.constant dense<0.000000e+00> : vector<8xf32>
    %32 = vector.multi_reduction <add>, %31, %cst_23 [1] : vector<8x8xf32> to vector<8xf32>
    %33 = vector.shape_cast %32 : vector<8xf32> to vector<8x1xf32>
    %34 = vector.broadcast %33 : vector<8x1xf32> to vector<8x8xf32>
    %35 = arith.divf %31, %34 : vector<8x8xf32>
    %36 = arith.truncf %35 : vector<8x8xf32> to vector<8x8xbf16>
    %cst_24 = arith.constant dense<0.000000e+00> : vector<8x8xf32>
    %37 = tpu.matmul %36, %25, %cst_24 {dimension_numbers = #tpu.dot_dimension_numbers<[1], [0], [0], [1], [0, 0, 1, 1], [], []>} : vector<8x8xbf16>, vector<8x8xbf16>, vector<8x8xf32> -> vector<8x8xf32>
    %38 = vector.extract_strided_slice %37 {offsets = [0, 0], sizes = [2, 8], strides = [1, 1]} : vector<8x8xf32> to vector<2x8xf32>
    %c0_25 = arith.constant 0 : index
    %c0_26 = arith.constant 0 : index
    %c0_27 = arith.constant 0 : index
    %39 = vector.load %arg16[%c0_25, %c0_26, %c0_27] : memref<4x16x8xf32, #tpu.memory_space<vmem>>, vector<1x2x8xf32>
    %40 = vector.shape_cast %39 : vector<1x2x8xf32> to vector<2x8xf32>
    %41 = vector.shape_cast %38 : vector<2x8xf32> to vector<1x2x8xf32>
    tpu.vector_store %arg16[%c0_25, %c0_26, %c0_27], %41 {strides = array<i32>} : memref<4x16x8xf32, #tpu.memory_space<vmem>>, vector<1x2x8xf32>,
    %42 = vector.extract_strided_slice %37 {offsets = [2, 0], sizes = [2, 8], strides = [1, 1]} : vector<8x8xf32> to vector<2x8xf32>
    %c1_28 = arith.constant 1 : index
    %c0_29 = arith.constant 0 : index
    %c0_30 = arith.constant 0 : index
    %43 = vector.load %arg16[%c1_28, %c0_29, %c0_30] : memref<4x16x8xf32, #tpu.memory_space<vmem>>, vector<1x2x8xf32>
    %44 = vector.shape_cast %43 : vector<1x2x8xf32> to vector<2x8xf32>
    %45 = vector.shape_cast %42 : vector<2x8xf32> to vector<1x2x8xf32>
    tpu.vector_store %arg16[%c1_28, %c0_29, %c0_30], %45 {strides = array<i32>} : memref<4x16x8xf32, #tpu.memory_space<vmem>>, vector<1x2x8xf32>,
    %46 = vector.extract_strided_slice %37 {offsets = [4, 0], sizes = [2, 8], strides = [1, 1]} : vector<8x8xf32> to vector<2x8xf32>
    %c2 = arith.constant 2 : index
    %c0_31 = arith.constant 0 : index
    %c0_32 = arith.constant 0 : index
    %47 = vector.load %arg16[%c2, %c0_31, %c0_32] : memref<4x16x8xf32, #tpu.memory_space<vmem>>, vector<1x2x8xf32>
    %48 = vector.shape_cast %47 : vector<1x2x8xf32> to vector<2x8xf32>
    %49 = vector.shape_cast %46 : vector<2x8xf32> to vector<1x2x8xf32>
    tpu.vector_store %arg16[%c2, %c0_31, %c0_32], %49 {strides = array<i32>} : memref<4x16x8xf32, #tpu.memory_space<vmem>>, vector<1x2x8xf32>,
    %50 = vector.extract_strided_slice %37 {offsets = [6, 0], sizes = [2, 8], strides = [1, 1]} : vector<8x8xf32> to vector<2x8xf32>
    %c3 = arith.constant 3 : index
    %c0_33 = arith.constant 0 : index
    %c0_34 = arith.constant 0 : index
    %51 = vector.load %arg16[%c3, %c0_33, %c0_34] : memref<4x16x8xf32, #tpu.memory_space<vmem>>, vector<1x2x8xf32>
    %52 = vector.shape_cast %51 : vector<1x2x8xf32> to vector<2x8xf32>
    %53 = vector.shape_cast %50 : vector<2x8xf32> to vector<1x2x8xf32>
    tpu.vector_store %arg16[%c3, %c0_33, %c0_34], %53 {strides = array<i32>} : memref<4x16x8xf32, #tpu.memory_space<vmem>>, vector<1x2x8xf32>,
    %54 = vector.extract_strided_slice %20 {offsets = [0, 8], sizes = [8, 8], strides = [1, 1]} : vector<16x32xbf16> to vector<8x8xbf16>
    %55 = vector.extract_strided_slice %21 {offsets = [0, 8], sizes = [8, 8], strides = [1, 1]} : vector<16x32xbf16> to vector<8x8xbf16>
    %56 = vector.extract_strided_slice %22 {offsets = [0, 8], sizes = [8, 8], strides = [1, 1]} : vector<16x32xbf16> to vector<8x8xbf16>
    %cst_35 = arith.constant dense<0.000000e+00> : vector<8x8xf32>
    %57 = tpu.matmul %54, %55, %cst_35 {dimension_numbers = #tpu.dot_dimension_numbers<[1], [1], [0], [0], [0, 0, 1, 0], [], []>} : vector<8x8xbf16>, vector<8x8xbf16>, vector<8x8xf32> -> vector<8x8xf32>
    %cst_36 = arith.constant dense<0xFF800000> : vector<8xf32>
    %58 = vector.multi_reduction <maximumf>, %57, %cst_36 [1] : vector<8x8xf32> to vector<8xf32>
    %59 = vector.shape_cast %58 : vector<8xf32> to vector<8x1xf32>
    %60 = vector.broadcast %59 : vector<8x1xf32> to vector<8x8xf32>
    %61 = arith.subf %57, %60 : vector<8x8xf32>
    %62 = math.exp %61 : vector<8x8xf32>
    %cst_37 = arith.constant dense<0.000000e+00> : vector<8xf32>
    %63 = vector.multi_reduction <add>, %62, %cst_37 [1] : vector<8x8xf32> to vector<8xf32>
    %64 = vector.shape_cast %63 : vector<8xf32> to vector<8x1xf32>
    %65 = vector.broadcast %64 : vector<8x1xf32> to vector<8x8xf32>
    %66 = arith.divf %62, %65 : vector<8x8xf32>
    %67 = arith.truncf %66 : vector<8x8xf32> to vector<8x8xbf16>
    %cst_38 = arith.constant dense<0.000000e+00> : vector<8x8xf32>
    %68 = tpu.matmul %67, %56, %cst_38 {dimension_numbers = #tpu.dot_dimension_numbers<[1], [0], [0], [1], [0, 0, 1, 1], [], []>} : vector<8x8xbf16>, vector<8x8xbf16>, vector<8x8xf32> -> vector<8x8xf32>
    %69 = vector.extract_strided_slice %68 {offsets = [0, 0], sizes = [2, 8], strides = [1, 1]} : vector<8x8xf32> to vector<2x8xf32>
    %c0_39 = arith.constant 0 : index
    %c2_40 = arith.constant 2 : index
    %c0_41 = arith.constant 0 : index
    %70 = vector.load %arg16[%c0_39, %c2_40, %c0_41] : memref<4x16x8xf32, #tpu.memory_space<vmem>>, vector<1x2x8xf32>
    %71 = vector.shape_cast %70 : vector<1x2x8xf32> to vector<2x8xf32>
    %72 = vector.shape_cast %69 : vector<2x8xf32> to vector<1x2x8xf32>
    tpu.vector_store %arg16[%c0_39, %c2_40, %c0_41], %72 {strides = array<i32>} : memref<4x16x8xf32, #tpu.memory_space<vmem>>, vector<1x2x8xf32>,
    %73 = vector.extract_strided_slice %68 {offsets = [2, 0], sizes = [2, 8], strides = [1, 1]} : vector<8x8xf32> to vector<2x8xf32>
    %c1_42 = arith.constant 1 : index
    %c2_43 = arith.constant 2 : index
    %c0_44 = arith.constant 0 : index
    %74 = vector.load %arg16[%c1_42, %c2_43, %c0_44] : memref<4x16x8xf32, #tpu.memory_space<vmem>>, vector<1x2x8xf32>
    %75 = vector.shape_cast %74 : vector<1x2x8xf32> to vector<2x8xf32>
    %76 = vector.shape_cast %73 : vector<2x8xf32> to vector<1x2x8xf32>
    tpu.vector_store %arg16[%c1_42, %c2_43, %c0_44], %76 {strides = array<i32>} : memref<4x16x8xf32, #tpu.memory_space<vmem>>, vector<1x2x8xf32>,
    %77 = vector.extract_strided_slice %68 {offsets = [4, 0], sizes = [2, 8], strides = [1, 1]} : vector<8x8xf32> to vector<2x8xf32>
    %c2_45 = arith.constant 2 : index
    %c2_46 = arith.constant 2 : index
    %c0_47 = arith.constant 0 : index
    %78 = vector.load %arg16[%c2_45, %c2_46, %c0_47] : memref<4x16x8xf32, #tpu.memory_space<vmem>>, vector<1x2x8xf32>
    %79 = vector.shape_cast %78 : vector<1x2x8xf32> to vector<2x8xf32>
    %80 = vector.shape_cast %77 : vector<2x8xf32> to vector<1x2x8xf32>
    tpu.vector_store %arg16[%c2_45, %c2_46, %c0_47], %80 {strides = array<i32>} : memref<4x16x8xf32, #tpu.memory_space<vmem>>, vector<1x2x8xf32>,
    %81 = vector.extract_strided_slice %68 {offsets = [6, 0], sizes = [2, 8], strides = [1, 1]} : vector<8x8xf32> to vector<2x8xf32>
    %c3_48 = arith.constant 3 : index
    %c2_49 = arith.constant 2 : index
    %c0_50 = arith.constant 0 : index
    %82 = vector.load %arg16[%c3_48, %c2_49, %c0_50] : memref<4x16x8xf32, #tpu.memory_space<vmem>>, vector<1x2x8xf32>
    %83 = vector.shape_cast %82 : vector<1x2x8xf32> to vector<2x8xf32>
    %84 = vector.shape_cast %81 : vector<2x8xf32> to vector<1x2x8xf32>
    tpu.vector_store %arg16[%c3_48, %c2_49, %c0_50], %84 {strides = array<i32>} : memref<4x16x8xf32, #tpu.memory_space<vmem>>, vector<1x2x8xf32>,
    %85 = vector.extract_strided_slice %20 {offsets = [0, 16], sizes = [8, 8], strides = [1, 1]} : vector<16x32xbf16> to vector<8x8xbf16>
    %86 = vector.extract_strided_slice %21 {offsets = [0, 16], sizes = [8, 8], strides = [1, 1]} : vector<16x32xbf16> to vector<8x8xbf16>
    %87 = vector.extract_strided_slice %22 {offsets = [0, 16], sizes = [8, 8], strides = [1, 1]} : vector<16x32xbf16> to vector<8x8xbf16>
    %cst_51 = arith.constant dense<0.000000e+00> : vector<8x8xf32>
    %88 = tpu.matmul %85, %86, %cst_51 {dimension_numbers = #tpu.dot_dimension_numbers<[1], [1], [0], [0], [0, 0, 1, 0], [], []>} : vector<8x8xbf16>, vector<8x8xbf16>, vector<8x8xf32> -> vector<8x8xf32>
    %cst_52 = arith.constant dense<0xFF800000> : vector<8xf32>
    %89 = vector.multi_reduction <maximumf>, %88, %cst_52 [1] : vector<8x8xf32> to vector<8xf32>
    %90 = vector.shape_cast %89 : vector<8xf32> to vector<8x1xf32>
    %91 = vector.broadcast %90 : vector<8x1xf32> to vector<8x8xf32>
    %92 = arith.subf %88, %91 : vector<8x8xf32>
    %93 = math.exp %92 : vector<8x8xf32>
    %cst_53 = arith.constant dense<0.000000e+00> : vector<8xf32>
    %94 = vector.multi_reduction <add>, %93, %cst_53 [1] : vector<8x8xf32> to vector<8xf32>
    %95 = vector.shape_cast %94 : vector<8xf32> to vector<8x1xf32>
    %96 = vector.broadcast %95 : vector<8x1xf32> to vector<8x8xf32>
    %97 = arith.divf %93, %96 : vector<8x8xf32>
    %98 = arith.truncf %97 : vector<8x8xf32> to vector<8x8xbf16>
    %cst_54 = arith.constant dense<0.000000e+00> : vector<8x8xf32>
    %99 = tpu.matmul %98, %87, %cst_54 {dimension_numbers = #tpu.dot_dimension_numbers<[1], [0], [0], [1], [0, 0, 1, 1], [], []>} : vector<8x8xbf16>, vector<8x8xbf16>, vector<8x8xf32> -> vector<8x8xf32>
    %100 = vector.extract_strided_slice %99 {offsets = [0, 0], sizes = [2, 8], strides = [1, 1]} : vector<8x8xf32> to vector<2x8xf32>
    %c0_55 = arith.constant 0 : index
    %c4 = arith.constant 4 : index
    %c0_56 = arith.constant 0 : index
    %101 = vector.load %arg16[%c0_55, %c4, %c0_56] : memref<4x16x8xf32, #tpu.memory_space<vmem>>, vector<1x2x8xf32>
    %102 = vector.shape_cast %101 : vector<1x2x8xf32> to vector<2x8xf32>
    %103 = vector.shape_cast %100 : vector<2x8xf32> to vector<1x2x8xf32>
    tpu.vector_store %arg16[%c0_55, %c4, %c0_56], %103 {strides = array<i32>} : memref<4x16x8xf32, #tpu.memory_space<vmem>>, vector<1x2x8xf32>,
    %104 = vector.extract_strided_slice %99 {offsets = [2, 0], sizes = [2, 8], strides = [1, 1]} : vector<8x8xf32> to vector<2x8xf32>
    %c1_57 = arith.constant 1 : index
    %c4_58 = arith.constant 4 : index
    %c0_59 = arith.constant 0 : index
    %105 = vector.load %arg16[%c1_57, %c4_58, %c0_59] : memref<4x16x8xf32, #tpu.memory_space<vmem>>, vector<1x2x8xf32>
    %106 = vector.shape_cast %105 : vector<1x2x8xf32> to vector<2x8xf32>
    %107 = vector.shape_cast %104 : vector<2x8xf32> to vector<1x2x8xf32>
    tpu.vector_store %arg16[%c1_57, %c4_58, %c0_59], %107 {strides = array<i32>} : memref<4x16x8xf32, #tpu.memory_space<vmem>>, vector<1x2x8xf32>,
    %108 = vector.extract_strided_slice %99 {offsets = [4, 0], sizes = [2, 8], strides = [1, 1]} : vector<8x8xf32> to vector<2x8xf32>
    %c2_60 = arith.constant 2 : index
    %c4_61 = arith.constant 4 : index
    %c0_62 = arith.constant 0 : index
    %109 = vector.load %arg16[%c2_60, %c4_61, %c0_62] : memref<4x16x8xf32, #tpu.memory_space<vmem>>, vector<1x2x8xf32>
    %110 = vector.shape_cast %109 : vector<1x2x8xf32> to vector<2x8xf32>
    %111 = vector.shape_cast %108 : vector<2x8xf32> to vector<1x2x8xf32>
    tpu.vector_store %arg16[%c2_60, %c4_61, %c0_62], %111 {strides = array<i32>} : memref<4x16x8xf32, #tpu.memory_space<vmem>>, vector<1x2x8xf32>,
    %112 = vector.extract_strided_slice %99 {offsets = [6, 0], sizes = [2, 8], strides = [1, 1]} : vector<8x8xf32> to vector<2x8xf32>
    %c3_63 = arith.constant 3 : index
    %c4_64 = arith.constant 4 : index
    %c0_65 = arith.constant 0 : index
    %113 = vector.load %arg16[%c3_63, %c4_64, %c0_65] : memref<4x16x8xf32, #tpu.memory_space<vmem>>, vector<1x2x8xf32>
    %114 = vector.shape_cast %113 : vector<1x2x8xf32> to vector<2x8xf32>
    %115 = vector.shape_cast %112 : vector<2x8xf32> to vector<1x2x8xf32>
    tpu.vector_store %arg16[%c3_63, %c4_64, %c0_65], %115 {strides = array<i32>} : memref<4x16x8xf32, #tpu.memory_space<vmem>>, vector<1x2x8xf32>,
    %116 = vector.extract_strided_slice %20 {offsets = [0, 24], sizes = [8, 8], strides = [1, 1]} : vector<16x32xbf16> to vector<8x8xbf16>
    %117 = vector.extract_strided_slice %21 {offsets = [0, 24], sizes = [8, 8], strides = [1, 1]} : vector<16x32xbf16> to vector<8x8xbf16>
    %118 = vector.extract_strided_slice %22 {offsets = [0, 24], sizes = [8, 8], strides = [1, 1]} : vector<16x32xbf16> to vector<8x8xbf16>
    %cst_66 = arith.constant dense<0.000000e+00> : vector<8x8xf32>
    %119 = tpu.matmul %116, %117, %cst_66 {dimension_numbers = #tpu.dot_dimension_numbers<[1], [1], [0], [0], [0, 0, 1, 0], [], []>} : vector<8x8xbf16>, vector<8x8xbf16>, vector<8x8xf32> -> vector<8x8xf32>
    %cst_67 = arith.constant dense<0xFF800000> : vector<8xf32>
    %120 = vector.multi_reduction <maximumf>, %119, %cst_67 [1] : vector<8x8xf32> to vector<8xf32>
    %121 = vector.shape_cast %120 : vector<8xf32> to vector<8x1xf32>
    %122 = vector.broadcast %121 : vector<8x1xf32> to vector<8x8xf32>
    %123 = arith.subf %119, %122 : vector<8x8xf32>
    %124 = math.exp %123 : vector<8x8xf32>
    %cst_68 = arith.constant dense<0.000000e+00> : vector<8xf32>
    %125 = vector.multi_reduction <add>, %124, %cst_68 [1] : vector<8x8xf32> to vector<8xf32>
    %126 = vector.shape_cast %125 : vector<8xf32> to vector<8x1xf32>
    %127 = vector.broadcast %126 : vector<8x1xf32> to vector<8x8xf32>
    %128 = arith.divf %124, %127 : vector<8x8xf32>
    %129 = arith.truncf %128 : vector<8x8xf32> to vector<8x8xbf16>
    %cst_69 = arith.constant dense<0.000000e+00> : vector<8x8xf32>
    %130 = tpu.matmul %129, %118, %cst_69 {dimension_numbers = #tpu.dot_dimension_numbers<[1], [0], [0], [1], [0, 0, 1, 1], [], []>} : vector<8x8xbf16>, vector<8x8xbf16>, vector<8x8xf32> -> vector<8x8xf32>
    %131 = vector.extract_strided_slice %130 {offsets = [0, 0], sizes = [2, 8], strides = [1, 1]} : vector<8x8xf32> to vector<2x8xf32>
    %c0_70 = arith.constant 0 : index
    %c6 = arith.constant 6 : index
    %c0_71 = arith.constant 0 : index
    %132 = vector.load %arg16[%c0_70, %c6, %c0_71] : memref<4x16x8xf32, #tpu.memory_space<vmem>>, vector<1x2x8xf32>
    %133 = vector.shape_cast %132 : vector<1x2x8xf32> to vector<2x8xf32>
    %134 = vector.shape_cast %131 : vector<2x8xf32> to vector<1x2x8xf32>
    tpu.vector_store %arg16[%c0_70, %c6, %c0_71], %134 {strides = array<i32>} : memref<4x16x8xf32, #tpu.memory_space<vmem>>, vector<1x2x8xf32>,
    %135 = vector.extract_strided_slice %130 {offsets = [2, 0], sizes = [2, 8], strides = [1, 1]} : vector<8x8xf32> to vector<2x8xf32>
    %c1_72 = arith.constant 1 : index
    %c6_73 = arith.constant 6 : index
    %c0_74 = arith.constant 0 : index
    %136 = vector.load %arg16[%c1_72, %c6_73, %c0_74] : memref<4x16x8xf32, #tpu.memory_space<vmem>>, vector<1x2x8xf32>
    %137 = vector.shape_cast %136 : vector<1x2x8xf32> to vector<2x8xf32>
    %138 = vector.shape_cast %135 : vector<2x8xf32> to vector<1x2x8xf32>
    tpu.vector_store %arg16[%c1_72, %c6_73, %c0_74], %138 {strides = array<i32>} : memref<4x16x8xf32, #tpu.memory_space<vmem>>, vector<1x2x8xf32>,
    %139 = vector.extract_strided_slice %130 {offsets = [4, 0], sizes = [2, 8], strides = [1, 1]} : vector<8x8xf32> to vector<2x8xf32>
    %c2_75 = arith.constant 2 : index
    %c6_76 = arith.constant 6 : index
    %c0_77 = arith.constant 0 : index
    %140 = vector.load %arg16[%c2_75, %c6_76, %c0_77] : memref<4x16x8xf32, #tpu.memory_space<vmem>>, vector<1x2x8xf32>
    %141 = vector.shape_cast %140 : vector<1x2x8xf32> to vector<2x8xf32>
    %142 = vector.shape_cast %139 : vector<2x8xf32> to vector<1x2x8xf32>
    tpu.vector_store %arg16[%c2_75, %c6_76, %c0_77], %142 {strides = array<i32>} : memref<4x16x8xf32, #tpu.memory_space<vmem>>, vector<1x2x8xf32>,
    %143 = vector.extract_strided_slice %130 {offsets = [6, 0], sizes = [2, 8], strides = [1, 1]} : vector<8x8xf32> to vector<2x8xf32>
    %c3_78 = arith.constant 3 : index
    %c6_79 = arith.constant 6 : index
    %c0_80 = arith.constant 0 : index
    %144 = vector.load %arg16[%c3_78, %c6_79, %c0_80] : memref<4x16x8xf32, #tpu.memory_space<vmem>>, vector<1x2x8xf32>
    %145 = vector.shape_cast %144 : vector<1x2x8xf32> to vector<2x8xf32>
    %146 = vector.shape_cast %143 : vector<2x8xf32> to vector<1x2x8xf32>
    tpu.vector_store %arg16[%c3_78, %c6_79, %c0_80], %146 {strides = array<i32>} : memref<4x16x8xf32, #tpu.memory_space<vmem>>, vector<1x2x8xf32>,
    %147 = vector.extract_strided_slice %20 {offsets = [8, 0], sizes = [8, 8], strides = [1, 1]} : vector<16x32xbf16> to vector<8x8xbf16>
    %148 = vector.extract_strided_slice %21 {offsets = [8, 0], sizes = [8, 8], strides = [1, 1]} : vector<16x32xbf16> to vector<8x8xbf16>
    %149 = vector.extract_strided_slice %22 {offsets = [8, 0], sizes = [8, 8], strides = [1, 1]} : vector<16x32xbf16> to vector<8x8xbf16>
    %cst_81 = arith.constant dense<0.000000e+00> : vector<8x8xf32>
    %150 = tpu.matmul %147, %148, %cst_81 {dimension_numbers = #tpu.dot_dimension_numbers<[1], [1], [0], [0], [0, 0, 1, 0], [], []>} : vector<8x8xbf16>, vector<8x8xbf16>, vector<8x8xf32> -> vector<8x8xf32>
    %cst_82 = arith.constant dense<0xFF800000> : vector<8xf32>
    %151 = vector.multi_reduction <maximumf>, %150, %cst_82 [1] : vector<8x8xf32> to vector<8xf32>
    %152 = vector.shape_cast %151 : vector<8xf32> to vector<8x1xf32>
    %153 = vector.broadcast %152 : vector<8x1xf32> to vector<8x8xf32>
    %154 = arith.subf %150, %153 : vector<8x8xf32>
    %155 = math.exp %154 : vector<8x8xf32>
    %cst_83 = arith.constant dense<0.000000e+00> : vector<8xf32>
    %156 = vector.multi_reduction <add>, %155, %cst_83 [1] : vector<8x8xf32> to vector<8xf32>
    %157 = vector.shape_cast %156 : vector<8xf32> to vector<8x1xf32>
    %158 = vector.broadcast %157 : vector<8x1xf32> to vector<8x8xf32>
    %159 = arith.divf %155, %158 : vector<8x8xf32>
    %160 = arith.truncf %159 : vector<8x8xf32> to vector<8x8xbf16>
    %cst_84 = arith.constant dense<0.000000e+00> : vector<8x8xf32>
    %161 = tpu.matmul %160, %149, %cst_84 {dimension_numbers = #tpu.dot_dimension_numbers<[1], [0], [0], [1], [0, 0, 1, 1], [], []>} : vector<8x8xbf16>, vector<8x8xbf16>, vector<8x8xf32> -> vector<8x8xf32>
    %162 = vector.extract_strided_slice %161 {offsets = [0, 0], sizes = [2, 8], strides = [1, 1]} : vector<8x8xf32> to vector<2x8xf32>
    %c0_85 = arith.constant 0 : index
    %c8 = arith.constant 8 : index
    %c0_86 = arith.constant 0 : index
    %163 = vector.load %arg16[%c0_85, %c8, %c0_86] : memref<4x16x8xf32, #tpu.memory_space<vmem>>, vector<1x2x8xf32>
    %164 = vector.shape_cast %163 : vector<1x2x8xf32> to vector<2x8xf32>
    %165 = vector.shape_cast %162 : vector<2x8xf32> to vector<1x2x8xf32>
    tpu.vector_store %arg16[%c0_85, %c8, %c0_86], %165 {strides = array<i32>} : memref<4x16x8xf32, #tpu.memory_space<vmem>>, vector<1x2x8xf32>,
    %166 = vector.extract_strided_slice %161 {offsets = [2, 0], sizes = [2, 8], strides = [1, 1]} : vector<8x8xf32> to vector<2x8xf32>
    %c1_87 = arith.constant 1 : index
    %c8_88 = arith.constant 8 : index
    %c0_89 = arith.constant 0 : index
    %167 = vector.load %arg16[%c1_87, %c8_88, %c0_89] : memref<4x16x8xf32, #tpu.memory_space<vmem>>, vector<1x2x8xf32>
    %168 = vector.shape_cast %167 : vector<1x2x8xf32> to vector<2x8xf32>
    %169 = vector.shape_cast %166 : vector<2x8xf32> to vector<1x2x8xf32>
    tpu.vector_store %arg16[%c1_87, %c8_88, %c0_89], %169 {strides = array<i32>} : memref<4x16x8xf32, #tpu.memory_space<vmem>>, vector<1x2x8xf32>,
    %170 = vector.extract_strided_slice %161 {offsets = [4, 0], sizes = [2, 8], strides = [1, 1]} : vector<8x8xf32> to vector<2x8xf32>
    %c2_90 = arith.constant 2 : index
    %c8_91 = arith.constant 8 : index
    %c0_92 = arith.constant 0 : index
    %171 = vector.load %arg16[%c2_90, %c8_91, %c0_92] : memref<4x16x8xf32, #tpu.memory_space<vmem>>, vector<1x2x8xf32>
    %172 = vector.shape_cast %171 : vector<1x2x8xf32> to vector<2x8xf32>
    %173 = vector.shape_cast %170 : vector<2x8xf32> to vector<1x2x8xf32>
    tpu.vector_store %arg16[%c2_90, %c8_91, %c0_92], %173 {strides = array<i32>} : memref<4x16x8xf32, #tpu.memory_space<vmem>>, vector<1x2x8xf32>,
    %174 = vector.extract_strided_slice %161 {offsets = [6, 0], sizes = [2, 8], strides = [1, 1]} : vector<8x8xf32> to vector<2x8xf32>
    %c3_93 = arith.constant 3 : index
    %c8_94 = arith.constant 8 : index
    %c0_95 = arith.constant 0 : index
    %175 = vector.load %arg16[%c3_93, %c8_94, %c0_95] : memref<4x16x8xf32, #tpu.memory_space<vmem>>, vector<1x2x8xf32>
    %176 = vector.shape_cast %175 : vector<1x2x8xf32> to vector<2x8xf32>
    %177 = vector.shape_cast %174 : vector<2x8xf32> to vector<1x2x8xf32>
    tpu.vector_store %arg16[%c3_93, %c8_94, %c0_95], %177 {strides = array<i32>} : memref<4x16x8xf32, #tpu.memory_space<vmem>>, vector<1x2x8xf32>,
    %178 = vector.extract_strided_slice %20 {offsets = [8, 8], sizes = [8, 8], strides = [1, 1]} : vector<16x32xbf16> to vector<8x8xbf16>
    %179 = vector.extract_strided_slice %21 {offsets = [8, 8], sizes = [8, 8], strides = [1, 1]} : vector<16x32xbf16> to vector<8x8xbf16>
    %180 = vector.extract_strided_slice %22 {offsets = [8, 8], sizes = [8, 8], strides = [1, 1]} : vector<16x32xbf16> to vector<8x8xbf16>
    %cst_96 = arith.constant dense<0.000000e+00> : vector<8x8xf32>
    %181 = tpu.matmul %178, %179, %cst_96 {dimension_numbers = #tpu.dot_dimension_numbers<[1], [1], [0], [0], [0, 0, 1, 0], [], []>} : vector<8x8xbf16>, vector<8x8xbf16>, vector<8x8xf32> -> vector<8x8xf32>
    %cst_97 = arith.constant dense<0xFF800000> : vector<8xf32>
    %182 = vector.multi_reduction <maximumf>, %181, %cst_97 [1] : vector<8x8xf32> to vector<8xf32>
    %183 = vector.shape_cast %182 : vector<8xf32> to vector<8x1xf32>
    %184 = vector.broadcast %183 : vector<8x1xf32> to vector<8x8xf32>
    %185 = arith.subf %181, %184 : vector<8x8xf32>
    %186 = math.exp %185 : vector<8x8xf32>
    %cst_98 = arith.constant dense<0.000000e+00> : vector<8xf32>
    %187 = vector.multi_reduction <add>, %186, %cst_98 [1] : vector<8x8xf32> to vector<8xf32>
    %188 = vector.shape_cast %187 : vector<8xf32> to vector<8x1xf32>
    %189 = vector.broadcast %188 : vector<8x1xf32> to vector<8x8xf32>
    %190 = arith.divf %186, %189 : vector<8x8xf32>
    %191 = arith.truncf %190 : vector<8x8xf32> to vector<8x8xbf16>
    %cst_99 = arith.constant dense<0.000000e+00> : vector<8x8xf32>
    %192 = tpu.matmul %191, %180, %cst_99 {dimension_numbers = #tpu.dot_dimension_numbers<[1], [0], [0], [1], [0, 0, 1, 1], [], []>} : vector<8x8xbf16>, vector<8x8xbf16>, vector<8x8xf32> -> vector<8x8xf32>
    %193 = vector.extract_strided_slice %192 {offsets = [0, 0], sizes = [2, 8], strides = [1, 1]} : vector<8x8xf32> to vector<2x8xf32>
    %c0_100 = arith.constant 0 : index
    %c10 = arith.constant 10 : index
    %c0_101 = arith.constant 0 : index
    %194 = vector.load %arg16[%c0_100, %c10, %c0_101] : memref<4x16x8xf32, #tpu.memory_space<vmem>>, vector<1x2x8xf32>
    %195 = vector.shape_cast %194 : vector<1x2x8xf32> to vector<2x8xf32>
    %196 = vector.shape_cast %193 : vector<2x8xf32> to vector<1x2x8xf32>
    tpu.vector_store %arg16[%c0_100, %c10, %c0_101], %196 {strides = array<i32>} : memref<4x16x8xf32, #tpu.memory_space<vmem>>, vector<1x2x8xf32>,
    %197 = vector.extract_strided_slice %192 {offsets = [2, 0], sizes = [2, 8], strides = [1, 1]} : vector<8x8xf32> to vector<2x8xf32>
    %c1_102 = arith.constant 1 : index
    %c10_103 = arith.constant 10 : index
    %c0_104 = arith.constant 0 : index
    %198 = vector.load %arg16[%c1_102, %c10_103, %c0_104] : memref<4x16x8xf32, #tpu.memory_space<vmem>>, vector<1x2x8xf32>
    %199 = vector.shape_cast %198 : vector<1x2x8xf32> to vector<2x8xf32>
    %200 = vector.shape_cast %197 : vector<2x8xf32> to vector<1x2x8xf32>
    tpu.vector_store %arg16[%c1_102, %c10_103, %c0_104], %200 {strides = array<i32>} : memref<4x16x8xf32, #tpu.memory_space<vmem>>, vector<1x2x8xf32>,
    %201 = vector.extract_strided_slice %192 {offsets = [4, 0], sizes = [2, 8], strides = [1, 1]} : vector<8x8xf32> to vector<2x8xf32>
    %c2_105 = arith.constant 2 : index
    %c10_106 = arith.constant 10 : index
    %c0_107 = arith.constant 0 : index
    %202 = vector.load %arg16[%c2_105, %c10_106, %c0_107] : memref<4x16x8xf32, #tpu.memory_space<vmem>>, vector<1x2x8xf32>
    %203 = vector.shape_cast %202 : vector<1x2x8xf32> to vector<2x8xf32>
    %204 = vector.shape_cast %201 : vector<2x8xf32> to vector<1x2x8xf32>
    tpu.vector_store %arg16[%c2_105, %c10_106, %c0_107], %204 {strides = array<i32>} : memref<4x16x8xf32, #tpu.memory_space<vmem>>, vector<1x2x8xf32>,
    %205 = vector.extract_strided_slice %192 {offsets = [6, 0], sizes = [2, 8], strides = [1, 1]} : vector<8x8xf32> to vector<2x8xf32>
    %c3_108 = arith.constant 3 : index
    %c10_109 = arith.constant 10 : index
    %c0_110 = arith.constant 0 : index
    %206 = vector.load %arg16[%c3_108, %c10_109, %c0_110] : memref<4x16x8xf32, #tpu.memory_space<vmem>>, vector<1x2x8xf32>
    %207 = vector.shape_cast %206 : vector<1x2x8xf32> to vector<2x8xf32>
    %208 = vector.shape_cast %205 : vector<2x8xf32> to vector<1x2x8xf32>
    tpu.vector_store %arg16[%c3_108, %c10_109, %c0_110], %208 {strides = array<i32>} : memref<4x16x8xf32, #tpu.memory_space<vmem>>, vector<1x2x8xf32>,
    %209 = vector.extract_strided_slice %20 {offsets = [8, 16], sizes = [8, 8], strides = [1, 1]} : vector<16x32xbf16> to vector<8x8xbf16>
    %210 = vector.extract_strided_slice %21 {offsets = [8, 16], sizes = [8, 8], strides = [1, 1]} : vector<16x32xbf16> to vector<8x8xbf16>
    %211 = vector.extract_strided_slice %22 {offsets = [8, 16], sizes = [8, 8], strides = [1, 1]} : vector<16x32xbf16> to vector<8x8xbf16>
    %cst_111 = arith.constant dense<0.000000e+00> : vector<8x8xf32>
    %212 = tpu.matmul %209, %210, %cst_111 {dimension_numbers = #tpu.dot_dimension_numbers<[1], [1], [0], [0], [0, 0, 1, 0], [], []>} : vector<8x8xbf16>, vector<8x8xbf16>, vector<8x8xf32> -> vector<8x8xf32>
    %cst_112 = arith.constant dense<0xFF800000> : vector<8xf32>
    %213 = vector.multi_reduction <maximumf>, %212, %cst_112 [1] : vector<8x8xf32> to vector<8xf32>
    %214 = vector.shape_cast %213 : vector<8xf32> to vector<8x1xf32>
    %215 = vector.broadcast %214 : vector<8x1xf32> to vector<8x8xf32>
    %216 = arith.subf %212, %215 : vector<8x8xf32>
    %217 = math.exp %216 : vector<8x8xf32>
    %cst_113 = arith.constant dense<0.000000e+00> : vector<8xf32>
    %218 = vector.multi_reduction <add>, %217, %cst_113 [1] : vector<8x8xf32> to vector<8xf32>
    %219 = vector.shape_cast %218 : vector<8xf32> to vector<8x1xf32>
    %220 = vector.broadcast %219 : vector<8x1xf32> to vector<8x8xf32>
    %221 = arith.divf %217, %220 : vector<8x8xf32>
    %222 = arith.truncf %221 : vector<8x8xf32> to vector<8x8xbf16>
    %cst_114 = arith.constant dense<0.000000e+00> : vector<8x8xf32>
    %223 = tpu.matmul %222, %211, %cst_114 {dimension_numbers = #tpu.dot_dimension_numbers<[1], [0], [0], [1], [0, 0, 1, 1], [], []>} : vector<8x8xbf16>, vector<8x8xbf16>, vector<8x8xf32> -> vector<8x8xf32>
    %224 = vector.extract_strided_slice %223 {offsets = [0, 0], sizes = [2, 8], strides = [1, 1]} : vector<8x8xf32> to vector<2x8xf32>
    %c0_115 = arith.constant 0 : index
    %c12 = arith.constant 12 : index
    %c0_116 = arith.constant 0 : index
    %225 = vector.load %arg16[%c0_115, %c12, %c0_116] : memref<4x16x8xf32, #tpu.memory_space<vmem>>, vector<1x2x8xf32>
    %226 = vector.shape_cast %225 : vector<1x2x8xf32> to vector<2x8xf32>
    %227 = vector.shape_cast %224 : vector<2x8xf32> to vector<1x2x8xf32>
    tpu.vector_store %arg16[%c0_115, %c12, %c0_116], %227 {strides = array<i32>} : memref<4x16x8xf32, #tpu.memory_space<vmem>>, vector<1x2x8xf32>,
    %228 = vector.extract_strided_slice %223 {offsets = [2, 0], sizes = [2, 8], strides = [1, 1]} : vector<8x8xf32> to vector<2x8xf32>
    %c1_117 = arith.constant 1 : index
    %c12_118 = arith.constant 12 : index
    %c0_119 = arith.constant 0 : index
    %229 = vector.load %arg16[%c1_117, %c12_118, %c0_119] : memref<4x16x8xf32, #tpu.memory_space<vmem>>, vector<1x2x8xf32>
    %230 = vector.shape_cast %229 : vector<1x2x8xf32> to vector<2x8xf32>
    %231 = vector.shape_cast %228 : vector<2x8xf32> to vector<1x2x8xf32>
    tpu.vector_store %arg16[%c1_117, %c12_118, %c0_119], %231 {strides = array<i32>} : memref<4x16x8xf32, #tpu.memory_space<vmem>>, vector<1x2x8xf32>,
    %232 = vector.extract_strided_slice %223 {offsets = [4, 0], sizes = [2, 8], strides = [1, 1]} : vector<8x8xf32> to vector<2x8xf32>
    %c2_120 = arith.constant 2 : index
    %c12_121 = arith.constant 12 : index
    %c0_122 = arith.constant 0 : index
    %233 = vector.load %arg16[%c2_120, %c12_121, %c0_122] : memref<4x16x8xf32, #tpu.memory_space<vmem>>, vector<1x2x8xf32>
    %234 = vector.shape_cast %233 : vector<1x2x8xf32> to vector<2x8xf32>
    %235 = vector.shape_cast %232 : vector<2x8xf32> to vector<1x2x8xf32>
    tpu.vector_store %arg16[%c2_120, %c12_121, %c0_122], %235 {strides = array<i32>} : memref<4x16x8xf32, #tpu.memory_space<vmem>>, vector<1x2x8xf32>,
    %236 = vector.extract_strided_slice %223 {offsets = [6, 0], sizes = [2, 8], strides = [1, 1]} : vector<8x8xf32> to vector<2x8xf32>
    %c3_123 = arith.constant 3 : index
    %c12_124 = arith.constant 12 : index
    %c0_125 = arith.constant 0 : index
    %237 = vector.load %arg16[%c3_123, %c12_124, %c0_125] : memref<4x16x8xf32, #tpu.memory_space<vmem>>, vector<1x2x8xf32>
    %238 = vector.shape_cast %237 : vector<1x2x8xf32> to vector<2x8xf32>
    %239 = vector.shape_cast %236 : vector<2x8xf32> to vector<1x2x8xf32>
    tpu.vector_store %arg16[%c3_123, %c12_124, %c0_125], %239 {strides = array<i32>} : memref<4x16x8xf32, #tpu.memory_space<vmem>>, vector<1x2x8xf32>,
    %240 = vector.extract_strided_slice %20 {offsets = [8, 24], sizes = [8, 8], strides = [1, 1]} : vector<16x32xbf16> to vector<8x8xbf16>
    %241 = vector.extract_strided_slice %21 {offsets = [8, 24], sizes = [8, 8], strides = [1, 1]} : vector<16x32xbf16> to vector<8x8xbf16>
    %242 = vector.extract_strided_slice %22 {offsets = [8, 24], sizes = [8, 8], strides = [1, 1]} : vector<16x32xbf16> to vector<8x8xbf16>
    %cst_126 = arith.constant dense<0.000000e+00> : vector<8x8xf32>
    %243 = tpu.matmul %240, %241, %cst_126 {dimension_numbers = #tpu.dot_dimension_numbers<[1], [1], [0], [0], [0, 0, 1, 0], [], []>} : vector<8x8xbf16>, vector<8x8xbf16>, vector<8x8xf32> -> vector<8x8xf32>
    %cst_127 = arith.constant dense<0xFF800000> : vector<8xf32>
    %244 = vector.multi_reduction <maximumf>, %243, %cst_127 [1] : vector<8x8xf32> to vector<8xf32>
    %245 = vector.shape_cast %244 : vector<8xf32> to vector<8x1xf32>
    %246 = vector.broadcast %245 : vector<8x1xf32> to vector<8x8xf32>
    %247 = arith.subf %243, %246 : vector<8x8xf32>
    %248 = math.exp %247 : vector<8x8xf32>
    %cst_128 = arith.constant dense<0.000000e+00> : vector<8xf32>
    %249 = vector.multi_reduction <add>, %248, %cst_128 [1] : vector<8x8xf32> to vector<8xf32>
    %250 = vector.shape_cast %249 : vector<8xf32> to vector<8x1xf32>
    %251 = vector.broadcast %250 : vector<8x1xf32> to vector<8x8xf32>
    %252 = arith.divf %248, %251 : vector<8x8xf32>
    %253 = arith.truncf %252 : vector<8x8xf32> to vector<8x8xbf16>
    %cst_129 = arith.constant dense<0.000000e+00> : vector<8x8xf32>
    %254 = tpu.matmul %253, %242, %cst_129 {dimension_numbers = #tpu.dot_dimension_numbers<[1], [0], [0], [1], [0, 0, 1, 1], [], []>} : vector<8x8xbf16>, vector<8x8xbf16>, vector<8x8xf32> -> vector<8x8xf32>
    %255 = vector.extract_strided_slice %254 {offsets = [0, 0], sizes = [2, 8], strides = [1, 1]} : vector<8x8xf32> to vector<2x8xf32>
    %c0_130 = arith.constant 0 : index
    %c14 = arith.constant 14 : index
    %c0_131 = arith.constant 0 : index
    %256 = vector.load %arg16[%c0_130, %c14, %c0_131] : memref<4x16x8xf32, #tpu.memory_space<vmem>>, vector<1x2x8xf32>
    %257 = vector.shape_cast %256 : vector<1x2x8xf32> to vector<2x8xf32>
    %258 = vector.shape_cast %255 : vector<2x8xf32> to vector<1x2x8xf32>
    tpu.vector_store %arg16[%c0_130, %c14, %c0_131], %258 {strides = array<i32>} : memref<4x16x8xf32, #tpu.memory_space<vmem>>, vector<1x2x8xf32>,
    %259 = vector.extract_strided_slice %254 {offsets = [2, 0], sizes = [2, 8], strides = [1, 1]} : vector<8x8xf32> to vector<2x8xf32>
    %c1_132 = arith.constant 1 : index
    %c14_133 = arith.constant 14 : index
    %c0_134 = arith.constant 0 : index
    %260 = vector.load %arg16[%c1_132, %c14_133, %c0_134] : memref<4x16x8xf32, #tpu.memory_space<vmem>>, vector<1x2x8xf32>
    %261 = vector.shape_cast %260 : vector<1x2x8xf32> to vector<2x8xf32>
    %262 = vector.shape_cast %259 : vector<2x8xf32> to vector<1x2x8xf32>
    tpu.vector_store %arg16[%c1_132, %c14_133, %c0_134], %262 {strides = array<i32>} : memref<4x16x8xf32, #tpu.memory_space<vmem>>, vector<1x2x8xf32>,
    %263 = vector.extract_strided_slice %254 {offsets = [4, 0], sizes = [2, 8], strides = [1, 1]} : vector<8x8xf32> to vector<2x8xf32>
    %c2_135 = arith.constant 2 : index
    %c14_136 = arith.constant 14 : index
    %c0_137 = arith.constant 0 : index
    %264 = vector.load %arg16[%c2_135, %c14_136, %c0_137] : memref<4x16x8xf32, #tpu.memory_space<vmem>>, vector<1x2x8xf32>
    %265 = vector.shape_cast %264 : vector<1x2x8xf32> to vector<2x8xf32>
    %266 = vector.shape_cast %263 : vector<2x8xf32> to vector<1x2x8xf32>
    tpu.vector_store %arg16[%c2_135, %c14_136, %c0_137], %266 {strides = array<i32>} : memref<4x16x8xf32, #tpu.memory_space<vmem>>, vector<1x2x8xf32>,
    %267 = vector.extract_strided_slice %254 {offsets = [6, 0], sizes = [2, 8], strides = [1, 1]} : vector<8x8xf32> to vector<2x8xf32>
    %c3_138 = arith.constant 3 : index
    %c14_139 = arith.constant 14 : index
    %c0_140 = arith.constant 0 : index
    %268 = vector.load %arg16[%c3_138, %c14_139, %c0_140] : memref<4x16x8xf32, #tpu.memory_space<vmem>>, vector<1x2x8xf32>
    %269 = vector.shape_cast %268 : vector<1x2x8xf32> to vector<2x8xf32>
    %270 = vector.shape_cast %267 : vector<2x8xf32> to vector<1x2x8xf32>
    tpu.vector_store %arg16[%c3_138, %c14_139, %c0_140], %270 {strides = array<i32>} : memref<4x16x8xf32, #tpu.memory_space<vmem>>, vector<1x2x8xf32>,
    %c0_141 = arith.constant 0 : index
    %c0_142 = arith.constant 0 : index
    %271 = vector.load %arg2[%c0_141, %c0_142] : memref<16x32xf32, #tpu.memory_space<vmem>>, vector<16x32xf32>
    %c0_143 = arith.constant 0 : index
    %c0_144 = arith.constant 0 : index
    %c0_145 = arith.constant 0 : index
    %272 = vector.load %arg9[%c0_143, %c0_144, %c0_145] : memref<1x1x32xf32, #tpu.memory_space<vmem>>, vector<1x1x32xf32>
    %273 = vector.shape_cast %272 : vector<1x1x32xf32> to vector<1x32xf32>
    %274 = vector.broadcast %273 : vector<1x32xf32> to vector<16x32xf32>
    %275 = arith.mulf %271, %274 : vector<16x32xf32>
    %cst_146 = arith.constant dense<0.000000e+00> : vector<16xf32>
    %276 = vector.multi_reduction <add>, %275, %cst_146 [1] : vector<16x32xf32> to vector<16xf32>
    %277 = vector.shape_cast %276 : vector<16xf32> to vector<16x1xf32>
    %c0_147 = arith.constant 0 : index
    %c0_148 = arith.constant 0 : index
    %c0_149 = arith.constant 0 : index
    %278 = vector.load %arg11[%c0_147, %c0_148, %c0_149] : memref<1x1x1xf32, #tpu.memory_space<vmem>>, vector<1x1x1xf32>
    %279 = vector.shape_cast %278 : vector<1x1x1xf32> to vector<1x1xf32>
    %280 = vector.broadcast %279 : vector<1x1xf32> to vector<16x1xf32>
    %281 = arith.addf %277, %280 : vector<16x1xf32>
    %c0_150 = arith.constant 0 : index
    %c0_151 = arith.constant 0 : index
    %c0_152 = arith.constant 0 : index
    %282 = vector.load %arg16[%c0_150, %c0_151, %c0_152] : memref<4x16x8xf32, #tpu.memory_space<vmem>>, vector<1x16x8xf32>
    %283 = vector.shape_cast %282 : vector<1x16x8xf32> to vector<16x8xf32>
    %c0_153 = arith.constant 0 : index
    %c0_154 = arith.constant 0 : index
    %c0_155 = arith.constant 0 : index
    %c0_156 = arith.constant 0 : index
    %284 = vector.load %arg10[%c0_153, %c0_154, %c0_155, %c0_156] : memref<1x4x1x8xf32, #tpu.memory_space<vmem>>, vector<1x1x1x8xf32>
    %285 = vector.shape_cast %284 : vector<1x1x1x8xf32> to vector<1x8xf32>
    %286 = vector.broadcast %285 : vector<1x8xf32> to vector<16x8xf32>
    %287 = arith.mulf %283, %286 : vector<16x8xf32>
    %cst_157 = arith.constant dense<0.000000e+00> : vector<16xf32>
    %288 = vector.multi_reduction <add>, %287, %cst_157 [1] : vector<16x8xf32> to vector<16xf32>
    %289 = vector.shape_cast %288 : vector<16xf32> to vector<16x1xf32>
    %290 = arith.addf %281, %289 : vector<16x1xf32>
    %c1_158 = arith.constant 1 : index
    %c0_159 = arith.constant 0 : index
    %c0_160 = arith.constant 0 : index
    %291 = vector.load %arg16[%c1_158, %c0_159, %c0_160] : memref<4x16x8xf32, #tpu.memory_space<vmem>>, vector<1x16x8xf32>
    %292 = vector.shape_cast %291 : vector<1x16x8xf32> to vector<16x8xf32>
    %c0_161 = arith.constant 0 : index
    %c1_162 = arith.constant 1 : index
    %c0_163 = arith.constant 0 : index
    %c0_164 = arith.constant 0 : index
    %293 = vector.load %arg10[%c0_161, %c1_162, %c0_163, %c0_164] : memref<1x4x1x8xf32, #tpu.memory_space<vmem>>, vector<1x1x1x8xf32>
    %294 = vector.shape_cast %293 : vector<1x1x1x8xf32> to vector<1x8xf32>
    %295 = vector.broadcast %294 : vector<1x8xf32> to vector<16x8xf32>
    %296 = arith.mulf %292, %295 : vector<16x8xf32>
    %cst_165 = arith.constant dense<0.000000e+00> : vector<16xf32>
    %297 = vector.multi_reduction <add>, %296, %cst_165 [1] : vector<16x8xf32> to vector<16xf32>
    %298 = vector.shape_cast %297 : vector<16xf32> to vector<16x1xf32>
    %299 = arith.addf %290, %298 : vector<16x1xf32>
    %c2_166 = arith.constant 2 : index
    %c0_167 = arith.constant 0 : index
    %c0_168 = arith.constant 0 : index
    %300 = vector.load %arg16[%c2_166, %c0_167, %c0_168] : memref<4x16x8xf32, #tpu.memory_space<vmem>>, vector<1x16x8xf32>
    %301 = vector.shape_cast %300 : vector<1x16x8xf32> to vector<16x8xf32>
    %c0_169 = arith.constant 0 : index
    %c2_170 = arith.constant 2 : index
    %c0_171 = arith.constant 0 : index
    %c0_172 = arith.constant 0 : index
    %302 = vector.load %arg10[%c0_169, %c2_170, %c0_171, %c0_172] : memref<1x4x1x8xf32, #tpu.memory_space<vmem>>, vector<1x1x1x8xf32>
    %303 = vector.shape_cast %302 : vector<1x1x1x8xf32> to vector<1x8xf32>
    %304 = vector.broadcast %303 : vector<1x8xf32> to vector<16x8xf32>
    %305 = arith.mulf %301, %304 : vector<16x8xf32>
    %cst_173 = arith.constant dense<0.000000e+00> : vector<16xf32>
    %306 = vector.multi_reduction <add>, %305, %cst_173 [1] : vector<16x8xf32> to vector<16xf32>
    %307 = vector.shape_cast %306 : vector<16xf32> to vector<16x1xf32>
    %308 = arith.addf %299, %307 : vector<16x1xf32>
    %c3_174 = arith.constant 3 : index
    %c0_175 = arith.constant 0 : index
    %c0_176 = arith.constant 0 : index
    %309 = vector.load %arg16[%c3_174, %c0_175, %c0_176] : memref<4x16x8xf32, #tpu.memory_space<vmem>>, vector<1x16x8xf32>
    %310 = vector.shape_cast %309 : vector<1x16x8xf32> to vector<16x8xf32>
    %c0_177 = arith.constant 0 : index
    %c3_178 = arith.constant 3 : index
    %c0_179 = arith.constant 0 : index
    %c0_180 = arith.constant 0 : index
    %311 = vector.load %arg10[%c0_177, %c3_178, %c0_179, %c0_180] : memref<1x4x1x8xf32, #tpu.memory_space<vmem>>, vector<1x1x1x8xf32>
    %312 = vector.shape_cast %311 : vector<1x1x1x8xf32> to vector<1x8xf32>
    %313 = vector.broadcast %312 : vector<1x8xf32> to vector<16x8xf32>
    %314 = arith.mulf %310, %313 : vector<16x8xf32>
    %cst_181 = arith.constant dense<0.000000e+00> : vector<16xf32>
    %315 = vector.multi_reduction <add>, %314, %cst_181 [1] : vector<16x8xf32> to vector<16xf32>
    %316 = vector.shape_cast %315 : vector<16xf32> to vector<16x1xf32>
    %317 = arith.addf %308, %316 : vector<16x1xf32>
    %cst_182 = arith.constant 0.000000e+00 : f32
    %318 = vector.broadcast %cst_182 : f32 to vector<16x1xf32>
    %319 = arith.subf %318, %317 : vector<16x1xf32>
    %320 = math.exp %319 : vector<16x1xf32>
    %cst_183 = arith.constant 1.000000e+00 : f32
    %321 = vector.broadcast %cst_183 : f32 to vector<16x1xf32>
    %322 = arith.addf %321, %320 : vector<16x1xf32>
    %cst_184 = arith.constant 1.000000e+00 : f32
    %323 = vector.broadcast %cst_184 : f32 to vector<16x1xf32>
    %324 = arith.divf %323, %322 : vector<16x1xf32>
    %c0_185 = arith.constant 0 : index
    %c0_186 = arith.constant 0 : index
    %c0_187 = arith.constant 0 : index
    %325 = vector.load %arg17[%c0_185, %c0_186, %c0_187] : memref<4x16x8xf32, #tpu.memory_space<vmem>>, vector<1x16x8xf32>
    %326 = vector.shape_cast %325 : vector<1x16x8xf32> to vector<16x8xf32>
    %c0_188 = arith.constant 0 : index
    %c0_189 = arith.constant 0 : index
    %c0_190 = arith.constant 0 : index
    %327 = vector.load %arg16[%c0_188, %c0_189, %c0_190] : memref<4x16x8xf32, #tpu.memory_space<vmem>>, vector<1x16x8xf32>
    %328 = vector.shape_cast %327 : vector<1x16x8xf32> to vector<16x8xf32>
    %329 = vector.broadcast %324 : vector<16x1xf32> to vector<16x8xf32>
    %330 = arith.mulf %329, %328 : vector<16x8xf32>
    %331 = arith.addf %326, %330 : vector<16x8xf32>
    %c0_191 = arith.constant 0 : index
    %c0_192 = arith.constant 0 : index
    %c0_193 = arith.constant 0 : index
    %332 = vector.load %arg17[%c0_191, %c0_192, %c0_193] : memref<4x16x8xf32, #tpu.memory_space<vmem>>, vector<1x16x8xf32>
    %333 = vector.shape_cast %332 : vector<1x16x8xf32> to vector<16x8xf32>
    %334 = vector.shape_cast %331 : vector<16x8xf32> to vector<1x16x8xf32>
    tpu.vector_store %arg17[%c0_191, %c0_192, %c0_193], %334 {strides = array<i32>} : memref<4x16x8xf32, #tpu.memory_space<vmem>>, vector<1x16x8xf32>,
    %c1_194 = arith.constant 1 : index
    %c0_195 = arith.constant 0 : index
    %c0_196 = arith.constant 0 : index
    %335 = vector.load %arg17[%c1_194, %c0_195, %c0_196] : memref<4x16x8xf32, #tpu.memory_space<vmem>>, vector<1x16x8xf32>
    %336 = vector.shape_cast %335 : vector<1x16x8xf32> to vector<16x8xf32>
    %c1_197 = arith.constant 1 : index
    %c0_198 = arith.constant 0 : index
    %c0_199 = arith.constant 0 : index
    %337 = vector.load %arg16[%c1_197, %c0_198, %c0_199] : memref<4x16x8xf32, #tpu.memory_space<vmem>>, vector<1x16x8xf32>
    %338 = vector.shape_cast %337 : vector<1x16x8xf32> to vector<16x8xf32>
    %339 = vector.broadcast %324 : vector<16x1xf32> to vector<16x8xf32>
    %340 = arith.mulf %339, %338 : vector<16x8xf32>
    %341 = arith.addf %336, %340 : vector<16x8xf32>
    %c1_200 = arith.constant 1 : index
    %c0_201 = arith.constant 0 : index
    %c0_202 = arith.constant 0 : index
    %342 = vector.load %arg17[%c1_200, %c0_201, %c0_202] : memref<4x16x8xf32, #tpu.memory_space<vmem>>, vector<1x16x8xf32>
    %343 = vector.shape_cast %342 : vector<1x16x8xf32> to vector<16x8xf32>
    %344 = vector.shape_cast %341 : vector<16x8xf32> to vector<1x16x8xf32>
    tpu.vector_store %arg17[%c1_200, %c0_201, %c0_202], %344 {strides = array<i32>} : memref<4x16x8xf32, #tpu.memory_space<vmem>>, vector<1x16x8xf32>,
    %c2_203 = arith.constant 2 : index
    %c0_204 = arith.constant 0 : index
    %c0_205 = arith.constant 0 : index
    %345 = vector.load %arg17[%c2_203, %c0_204, %c0_205] : memref<4x16x8xf32, #tpu.memory_space<vmem>>, vector<1x16x8xf32>
    %346 = vector.shape_cast %345 : vector<1x16x8xf32> to vector<16x8xf32>
    %c2_206 = arith.constant 2 : index
    %c0_207 = arith.constant 0 : index
    %c0_208 = arith.constant 0 : index
    %347 = vector.load %arg16[%c2_206, %c0_207, %c0_208] : memref<4x16x8xf32, #tpu.memory_space<vmem>>, vector<1x16x8xf32>
    %348 = vector.shape_cast %347 : vector<1x16x8xf32> to vector<16x8xf32>
    %349 = vector.broadcast %324 : vector<16x1xf32> to vector<16x8xf32>
    %350 = arith.mulf %349, %348 : vector<16x8xf32>
    %351 = arith.addf %346, %350 : vector<16x8xf32>
    %c2_209 = arith.constant 2 : index
    %c0_210 = arith.constant 0 : index
    %c0_211 = arith.constant 0 : index
    %352 = vector.load %arg17[%c2_209, %c0_210, %c0_211] : memref<4x16x8xf32, #tpu.memory_space<vmem>>, vector<1x16x8xf32>
    %353 = vector.shape_cast %352 : vector<1x16x8xf32> to vector<16x8xf32>
    %354 = vector.shape_cast %351 : vector<16x8xf32> to vector<1x16x8xf32>
    tpu.vector_store %arg17[%c2_209, %c0_210, %c0_211], %354 {strides = array<i32>} : memref<4x16x8xf32, #tpu.memory_space<vmem>>, vector<1x16x8xf32>,
    %c3_212 = arith.constant 3 : index
    %c0_213 = arith.constant 0 : index
    %c0_214 = arith.constant 0 : index
    %355 = vector.load %arg17[%c3_212, %c0_213, %c0_214] : memref<4x16x8xf32, #tpu.memory_space<vmem>>, vector<1x16x8xf32>
    %356 = vector.shape_cast %355 : vector<1x16x8xf32> to vector<16x8xf32>
    %c3_215 = arith.constant 3 : index
    %c0_216 = arith.constant 0 : index
    %c0_217 = arith.constant 0 : index
    %357 = vector.load %arg16[%c3_215, %c0_216, %c0_217] : memref<4x16x8xf32, #tpu.memory_space<vmem>>, vector<1x16x8xf32>
    %358 = vector.shape_cast %357 : vector<1x16x8xf32> to vector<16x8xf32>
    %359 = vector.broadcast %324 : vector<16x1xf32> to vector<16x8xf32>
    %360 = arith.mulf %359, %358 : vector<16x8xf32>
    %361 = arith.addf %356, %360 : vector<16x8xf32>
    %c3_218 = arith.constant 3 : index
    %c0_219 = arith.constant 0 : index
    %c0_220 = arith.constant 0 : index
    %362 = vector.load %arg17[%c3_218, %c0_219, %c0_220] : memref<4x16x8xf32, #tpu.memory_space<vmem>>, vector<1x16x8xf32>
    %363 = vector.shape_cast %362 : vector<1x16x8xf32> to vector<16x8xf32>
    %364 = vector.shape_cast %361 : vector<16x8xf32> to vector<1x16x8xf32>
    tpu.vector_store %arg17[%c3_218, %c0_219, %c0_220], %364 {strides = array<i32>} : memref<4x16x8xf32, #tpu.memory_space<vmem>>, vector<1x16x8xf32>,
    %c2_i32 = arith.constant 2 : i32
    %365 = arith.cmpi eq, %arg1, %c2_i32 : i32
    %366 = arith.extui %365 : i1 to i32
    %c0_i32_221 = arith.constant 0 : i32
    %367 = arith.cmpi ne, %366, %c0_i32_221 : i32
    scf.if %367 {
      %c0_222 = arith.constant 0 : index
      %c0_223 = arith.constant 0 : index
      %368 = vector.load %arg13[%c0_222, %c0_223] : memref<1x32xf32, #tpu.memory_space<vmem>>, vector<1x32xf32>
      %c0_224 = arith.constant 0 : index
      %c0_225 = arith.constant 0 : index
      %c0_226 = arith.constant 0 : index
      %369 = vector.load %arg17[%c0_224, %c0_225, %c0_226] : memref<4x16x8xf32, #tpu.memory_space<vmem>>, vector<1x16x8xf32>
      %370 = vector.shape_cast %369 : vector<1x16x8xf32> to vector<16x8xf32>
      %371 = arith.truncf %370 : vector<16x8xf32> to vector<16x8xbf16>
      %c0_227 = arith.constant 0 : index
      %c0_228 = arith.constant 0 : index
      %c0_229 = arith.constant 0 : index
      %372 = vector.load %arg12[%c0_227, %c0_228, %c0_229] : memref<4x8x32xbf16, #tpu.memory_space<vmem>>, vector<1x8x32xbf16>
      %373 = vector.shape_cast %372 : vector<1x8x32xbf16> to vector<8x32xbf16>
      %cst_230 = arith.constant dense<0.000000e+00> : vector<16x32xf32>
      %374 = tpu.matmul %371, %373, %cst_230 {dimension_numbers = #tpu.dot_dimension_numbers<[1], [0], [0], [1], [0, 0, 1, 1], [], []>} : vector<16x8xbf16>, vector<8x32xbf16>, vector<16x32xf32> -> vector<16x32xf32>
      %375 = vector.broadcast %368 : vector<1x32xf32> to vector<16x32xf32>
      %376 = arith.addf %375, %374 : vector<16x32xf32>
      %c1_231 = arith.constant 1 : index
      %c0_232 = arith.constant 0 : index
      %c0_233 = arith.constant 0 : index
      %377 = vector.load %arg17[%c1_231, %c0_232, %c0_233] : memref<4x16x8xf32, #tpu.memory_space<vmem>>, vector<1x16x8xf32>
      %378 = vector.shape_cast %377 : vector<1x16x8xf32> to vector<16x8xf32>
      %379 = arith.truncf %378 : vector<16x8xf32> to vector<16x8xbf16>
      %c1_234 = arith.constant 1 : index
      %c0_235 = arith.constant 0 : index
      %c0_236 = arith.constant 0 : index
      %380 = vector.load %arg12[%c1_234, %c0_235, %c0_236] : memref<4x8x32xbf16, #tpu.memory_space<vmem>>, vector<1x8x32xbf16>
      %381 = vector.shape_cast %380 : vector<1x8x32xbf16> to vector<8x32xbf16>
      %cst_237 = arith.constant dense<0.000000e+00> : vector<16x32xf32>
      %382 = tpu.matmul %379, %381, %cst_237 {dimension_numbers = #tpu.dot_dimension_numbers<[1], [0], [0], [1], [0, 0, 1, 1], [], []>} : vector<16x8xbf16>, vector<8x32xbf16>, vector<16x32xf32> -> vector<16x32xf32>
      %383 = arith.addf %376, %382 : vector<16x32xf32>
      %c2_238 = arith.constant 2 : index
      %c0_239 = arith.constant 0 : index
      %c0_240 = arith.constant 0 : index
      %384 = vector.load %arg17[%c2_238, %c0_239, %c0_240] : memref<4x16x8xf32, #tpu.memory_space<vmem>>, vector<1x16x8xf32>
      %385 = vector.shape_cast %384 : vector<1x16x8xf32> to vector<16x8xf32>
      %386 = arith.truncf %385 : vector<16x8xf32> to vector<16x8xbf16>
      %c2_241 = arith.constant 2 : index
      %c0_242 = arith.constant 0 : index
      %c0_243 = arith.constant 0 : index
      %387 = vector.load %arg12[%c2_241, %c0_242, %c0_243] : memref<4x8x32xbf16, #tpu.memory_space<vmem>>, vector<1x8x32xbf16>
      %388 = vector.shape_cast %387 : vector<1x8x32xbf16> to vector<8x32xbf16>
      %cst_244 = arith.constant dense<0.000000e+00> : vector<16x32xf32>
      %389 = tpu.matmul %386, %388, %cst_244 {dimension_numbers = #tpu.dot_dimension_numbers<[1], [0], [0], [1], [0, 0, 1, 1], [], []>} : vector<16x8xbf16>, vector<8x32xbf16>, vector<16x32xf32> -> vector<16x32xf32>
      %390 = arith.addf %383, %389 : vector<16x32xf32>
      %c3_245 = arith.constant 3 : index
      %c0_246 = arith.constant 0 : index
      %c0_247 = arith.constant 0 : index
      %391 = vector.load %arg17[%c3_245, %c0_246, %c0_247] : memref<4x16x8xf32, #tpu.memory_space<vmem>>, vector<1x16x8xf32>
      %392 = vector.shape_cast %391 : vector<1x16x8xf32> to vector<16x8xf32>
      %393 = arith.truncf %392 : vector<16x8xf32> to vector<16x8xbf16>
      %c3_248 = arith.constant 3 : index
      %c0_249 = arith.constant 0 : index
      %c0_250 = arith.constant 0 : index
      %394 = vector.load %arg12[%c3_248, %c0_249, %c0_250] : memref<4x8x32xbf16, #tpu.memory_space<vmem>>, vector<1x8x32xbf16>
      %395 = vector.shape_cast %394 : vector<1x8x32xbf16> to vector<8x32xbf16>
      %cst_251 = arith.constant dense<0.000000e+00> : vector<16x32xf32>
      %396 = tpu.matmul %393, %395, %cst_251 {dimension_numbers = #tpu.dot_dimension_numbers<[1], [0], [0], [1], [0, 0, 1, 1], [], []>} : vector<16x8xbf16>, vector<8x32xbf16>, vector<16x32xf32> -> vector<16x32xf32>
      %397 = arith.addf %390, %396 : vector<16x32xf32>
      %c0_252 = arith.constant 0 : index
      %c0_253 = arith.constant 0 : index
      %398 = vector.load %arg14[%c0_252, %c0_253] : memref<16x32xf32, #tpu.memory_space<vmem>>, vector<16x32xf32>
      tpu.vector_store %arg14[%c0_252, %c0_253], %397 {strides = array<i32>} : memref<16x32xf32, #tpu.memory_space<vmem>>, vector<16x32xf32>,
    } else {
    }
    return
  }
  func.func @transform_0(%arg0: i32, %arg1: i32) -> (i32, i32) {
    %c0_i32 = arith.constant 0 : i32
    %c0_i32_0 = arith.constant 0 : i32
    return %arg0, %c0_i32 : i32, i32
  }
  func.func @transform_1(%arg0: i32, %arg1: i32) -> (i32, i32) {
    %c0_i32 = arith.constant 0 : i32
    %c0_i32_0 = arith.constant 0 : i32
    return %arg0, %c0_i32 : i32, i32
  }
  func.func @transform_2(%arg0: i32, %arg1: i32) -> (i32, i32, i32) {
    %c0_i32 = arith.constant 0 : i32
    %c0_i32_0 = arith.constant 0 : i32
    return %arg1, %arg0, %c0_i32 : i32, i32, i32
  }
  func.func @transform_3(%arg0: i32, %arg1: i32) -> (i32, i32) {
    %c0_i32 = arith.constant 0 : i32
    %c0_i32_0 = arith.constant 0 : i32
    %c0_i32_1 = arith.constant 0 : i32
    return %c0_i32, %c0_i32_0 : i32, i32
  }
  func.func @transform_4(%arg0: i32, %arg1: i32) -> (i32, i32) {
    %c0_i32 = arith.constant 0 : i32
    %c0_i32_0 = arith.constant 0 : i32
    %c0_i32_1 = arith.constant 0 : i32
    return %c0_i32, %c0_i32_0 : i32, i32
  }
  func.func @transform_5(%arg0: i32, %arg1: i32) -> (i32, i32, i32, i32) {
    %c0_i32 = arith.constant 0 : i32
    %c0_i32_0 = arith.constant 0 : i32
    %c0_i32_1 = arith.constant 0 : i32
    %c0_i32_2 = arith.constant 0 : i32
    return %arg1, %c0_i32, %c0_i32_0, %c0_i32_1 : i32, i32, i32, i32
  }
  func.func @transform_6(%arg0: i32, %arg1: i32) -> (i32, i32, i32, i32) {
    %c0_i32 = arith.constant 0 : i32
    %c0_i32_0 = arith.constant 0 : i32
    %c0_i32_1 = arith.constant 0 : i32
    %c0_i32_2 = arith.constant 0 : i32
    return %arg1, %c0_i32, %c0_i32_0, %c0_i32_1 : i32, i32, i32, i32
  }
  func.func @transform_7(%arg0: i32, %arg1: i32) -> (i32, i32, i32) {
    %c0_i32 = arith.constant 0 : i32
    %c0_i32_0 = arith.constant 0 : i32
    %c0_i32_1 = arith.constant 0 : i32
    return %arg1, %c0_i32, %c0_i32_0 : i32, i32, i32
  }
  func.func @transform_8(%arg0: i32, %arg1: i32) -> (i32, i32, i32, i32) {
    %c0_i32 = arith.constant 0 : i32
    %c0_i32_0 = arith.constant 0 : i32
    %c0_i32_1 = arith.constant 0 : i32
    %c0_i32_2 = arith.constant 0 : i32
    return %arg1, %c0_i32, %c0_i32_0, %c0_i32_1 : i32, i32, i32, i32
  }
  func.func @transform_9(%arg0: i32, %arg1: i32) -> (i32, i32, i32) {
    %c0_i32 = arith.constant 0 : i32
    %c0_i32_0 = arith.constant 0 : i32
    %c0_i32_1 = arith.constant 0 : i32
    return %arg1, %c0_i32, %c0_i32_0 : i32, i32, i32
  }
  func.func @transform_10(%arg0: i32, %arg1: i32) -> (i32, i32, i32) {
    %c0_i32 = arith.constant 0 : i32
    %c0_i32_0 = arith.constant 0 : i32
    %c0_i32_1 = arith.constant 0 : i32
    %c0_i32_2 = arith.constant 0 : i32
    return %c0_i32, %c0_i32_0, %c0_i32_1 : i32, i32, i32
  }
  func.func @transform_11(%arg0: i32, %arg1: i32) -> (i32, i32) {
    %c0_i32 = arith.constant 0 : i32
    %c0_i32_0 = arith.constant 0 : i32
    %c0_i32_1 = arith.constant 0 : i32
    return %c0_i32, %c0_i32_0 : i32, i32
  }
  func.func @transform_12(%arg0: i32, %arg1: i32) -> (i32, i32) {
    %c0_i32 = arith.constant 0 : i32
    %c0_i32_0 = arith.constant 0 : i32
    return %arg0, %c0_i32 : i32, i32
  }
}

</mosaic_0001>

<llo_original>
// kernel: tpu_custom_call.1
$region0: #{tpu_custom_call.1}
  #allocation0 [shape = 'u32[]', space=smem, size = 0x4, offset = 0x4, fixed_abs, tag = 'smem constant byte address 0x4 - core index']
  #allocation1 [shape = 'u32[144,128]{1,0:T(1,128)}', space=vmem, size = 0x12000, scoped, tag = 'internal scratch']
  #allocation2 [shape = 'bf16[16,32]{1,0:T(16,128)(2,1)}', space=vmem, size = 0x1000, scoped, tag = 'scratch operand']
  #allocation3 [shape = 'f32[4,16,8]{2,1,0:T(8,128)}', space=vmem, size = 0x8000, scoped, tag = 'scratch operand']
  #allocation4 [shape = 'f32[4,16,8]{2,1,0:T(8,128)}', space=vmem, size = 0x8000, scoped, tag = 'scratch operand']
  %s0 = inlined_call_operand.hbm [shape: f32[16,32], index: 0, kind: input, shape index: {}]
  %s1 = inlined_call_operand.hbm [shape: bf16[16,32], index: 1, kind: input, shape index: {}]
  %s2 = inlined_call_operand.hbm [shape: f32[3,16,32], index: 2, kind: input, shape index: {}]
  %s3 = inlined_call_operand.hbm [shape: bf16[32,32], index: 3, kind: input, shape index: {}]
  %s4 = inlined_call_operand.vmem [shape: f32[1,32], index: 4, kind: input, shape index: {}]
  %s5 = inlined_call_operand.hbm [shape: bf16[3,2,32,32], index: 5, kind: input, shape index: {}]
  %s6 = inlined_call_operand.hbm [shape: f32[3,2,1,32], index: 6, kind: input, shape index: {}]
  %s7 = inlined_call_operand.hbm [shape: f32[3,1,32], index: 7, kind: input, shape index: {}]
  %s8 = inlined_call_operand.vmem [shape: f32[3,4,1,8], index: 8, kind: input, shape index: {}]
  %s9 = inlined_call_operand.vmem [shape: f32[3,1,1], index: 9, kind: input, shape index: {}]
  %s10 = inlined_call_operand.vmem [shape: bf16[4,8,32], index: 10, kind: input, shape index: {}]
  %s11 = inlined_call_operand.vmem [shape: f32[1,32], index: 11, kind: input, shape index: {}]
  %s12 = inlined_call_operand.hbm [shape: f32[16,32], index: 12, kind: output, shape index: {}]
  %s13 = sld [smem:[#allocation0]]
  $region117: #{tpu_custom_call.1} parent=0
    _
  %s15 = ssub.s32 1, %s13
  %s16 = scalar_select 0, %s15, %s13
  $region1: #{tpu_custom_call.1} parent=0
    #allocation5 [shape = 'u8[8192]{0}', space=vmem, size = 0x2000, scoped, tag = 'input window, operand 0, single buffered']
    #allocation6 [shape = 's32[2]{0}', space=sflag, size = 0x8, scoped, tag = 'scoped memory for tpu_custom_call.1']
    #allocation7 [shape = 's32[2]{0}', space=sflag, size = 0x8, scoped, tag = 'scoped memory for tpu_custom_call.1']
    #allocation8 [shape = 'u8[4096]{0}', space=vmem, size = 0x1000, scoped, tag = 'input window, operand 1, single buffered']
    #allocation9 [shape = 's32[1]{0}', space=sflag, size = 0x4, scoped, tag = 'scoped memory for tpu_custom_call.1']
    #allocation10 [shape = 'u8[16384]{0}', space=vmem, size = 0x4000, scoped, tag = 'input window, operand 2']
    #allocation11 [shape = 'u8[8192]{0}', space=vmem, size = 0x2000, scoped, tag = 'input window, operand 3, single buffered']
    #allocation12 [shape = 'u8[32768]{0}', space=vmem, size = 0x8000, scoped, tag = 'input window, operand 5']
    #allocation13 [shape = 's32[2]{0}', space=sflag, size = 0x8, scoped, tag = 'scoped memory for tpu_custom_call.1']
    #allocation14 [shape = 'u8[2048]{0}', space=vmem, size = 0x800, scoped, tag = 'input window, operand 6']
    #allocation15 [shape = 'u8[1024]{0}', space=vmem, size = 0x400, scoped, tag = 'input window, operand 7']
    #allocation16 [shape = 's32[2]{0}', space=sflag, size = 0x8, scoped, tag = 'scoped memory for tpu_custom_call.1']
    #allocation17 [shape = 'u8[8192]{0}', space=vmem, size = 0x2000, scoped, tag = 'output window, operand 0, single buffered']
    %17 = vsyncpa [#allocation6], 0
    %18 = vsyncpa [#allocation9], 0
    %19 = vsyncpa [#allocation13], 0
    %s20 = scalar_lea.sflag [#allocation13], 1
    %21 = vsyncpa %s20, 0
    %22 = vsyncpa [#allocation16], 0
    %s23 = scalar_lea.sflag [#allocation16], 1
    %24 = vsyncpa %s23, 0
    %25 = vsyncpa [#allocation7], 0
    loop: start=0, step=1, limit=5
    $region2: #{tpu_custom_call.1} parent=1 // loop_pre_header
      _
    $region3: #{tpu_custom_call.1} parent=1 // loop_header
      %s27 = sphi 0, %s31
      %p28 = scmp.ge.s32.totalorder %s27, 5
      %s34 = sphi 0, %s46
      %s35 = sphi 0, %s42
      %s36 = sphi 0, %s34
      %s37 = sphi 0, %s35
      %s38 = sphi 0, %s36
      %s39 = sphi 0, %s37
      %s49 = sphi 0, %s51
      %s52 = sphi 0, %s49
      %s53 = sphi 0, %s52
      %s69 = sphi 0, %s53
      %s75 = sphi 0, %s77
      %s78 = sphi 0, %s75
      %s79 = sphi 0, %s78
      %s95 = sphi 0, %s79
      %s103 = sphi 0, %s105
      %s106 = sphi 0, %s103
      %s107 = sphi 0, %s106
      %s123 = sphi 0, %s107
      %s127 = sphi 0, %s127
      %s129 = sphi 0, %s127
      %s130 = sphi 0, %s129
      %s144 = sphi 0, %s130
      %s148 = sphi 0, %s148
      %s150 = sphi 0, %s148
      %s151 = sphi 0, %s150
      %s165 = sphi 0, %s151
      %s171 = sphi 0, %s173
      %s174 = sphi 0, %s171
      %s175 = sphi 0, %s174
      %s191 = sphi 0, %s175
      %s197 = sphi 0, %s199
      %s200 = sphi 0, %s197
      %s201 = sphi 0, %s200
      %s217 = sphi 0, %s201
      %s223 = sphi 0, %s225
      %s226 = sphi 0, %s223
      %s227 = sphi 0, %s226
      %s243 = sphi 0, %s227
      %s249 = sphi 0, %s251
      %s252 = sphi 0, %s249
      %s253 = sphi 0, %s252
      %s269 = sphi 0, %s253
      %s275 = sphi 0, %s277
      %s278 = sphi 0, %s275
      %s279 = sphi 0, %s278
      %s295 = sphi 0, %s279
      %s299 = sphi 0, %s299
      %s301 = sphi 0, %s299
      %s302 = sphi 0, %s301
      %s316 = sphi 0, %s302
      %s320 = sphi 0, %s320
      %s322 = sphi 0, %s320
      %s323 = sphi 0, %s322
      %s337 = sphi 0, %s323
      %s343 = sphi 0, %s345
      %s346 = sphi 0, %s343
      %s347 = sphi 0, %s346
      %s363 = sphi 0, %s347
    $region4: #{tpu_custom_call.1} parent=1 // loop_header_branch
      %30 = sbr.rel (%p28) target = $region8
    $region5: #{tpu_custom_call.1} parent=1 // loop_body
      %s32 = ssub.s32 %s27, 1
      %s33 = ssub.s32 %s27, 2
      %s40 = sadd.s32 1, %s35
      %p41 = scmp.ge.s32.totalorder %s40, 3
      %s42 = scalar_select %p41, 0, %s40
      %s43 = sadd.s32 1, %s34
      %s44 = scalar_select %p41, %s43, %s34
      %p45 = scmp.ge.s32.totalorder %s44, 1
      %s46 = scalar_select %p45, 0, %s44
      %s47 = ssub.s32 %s34, %s46
      %p48 = scmp.eq.s32.totalorder %s47, 0
      %s50 = sadd.s32 %s49, 1
      %s51 = scalar_select %p48, %s49, %s50
      %p54 = pneg %p48
      %p55 = scmp.eq.s32.totalorder %s27, 2
      %p56 = por %p54, %p55
      %p57 = scmp.ne.s32.totalorder %s49, %s52
      %p58 = scmp.eq.s32.totalorder %s27, 0
      %p59 = por %p57, %p58
      %p60 = scmp.ne.s32.totalorder %s49, %s52
      %p61 = scmp.eq.s32.totalorder %s32, 2
      %p62 = por %p60, %p61
      %p63 = scmp.ne.s32.totalorder %s52, %s53
      %p64 = scmp.eq.s32.totalorder %s32, 0
      %p65 = por %p63, %p64
      %p66 = scmp.ne.s32.totalorder %s52, %s53
      %p67 = scmp.eq.s32.totalorder %s33, 2
      %p68 = por %p66, %p67
      %p70 = scmp.ne.s32.totalorder %s53, %s69
      %p71 = scmp.eq.s32.totalorder %s33, 0
      %p72 = por %p70, %p71
      %s73 = ssub.s32 %s34, %s46
      %p74 = scmp.eq.s32.totalorder %s73, 0
      %s76 = sadd.s32 %s75, 1
      %s77 = scalar_select %p74, %s75, %s76
      %p80 = pneg %p74
      %p81 = scmp.eq.s32.totalorder %s27, 2
      %p82 = por %p80, %p81
      %p83 = scmp.ne.s32.totalorder %s75, %s78
      %p84 = scmp.eq.s32.totalorder %s27, 0
      %p85 = por %p83, %p84
      %p86 = scmp.ne.s32.totalorder %s75, %s78
      %p87 = scmp.eq.s32.totalorder %s32, 2
      %p88 = por %p86, %p87
      %p89 = scmp.ne.s32.totalorder %s78, %s79
      %p90 = scmp.eq.s32.totalorder %s32, 0
      %p91 = por %p89, %p90
      %p92 = scmp.ne.s32.totalorder %s78, %s79
      %p93 = scmp.eq.s32.totalorder %s33, 2
      %p94 = por %p92, %p93
      %p96 = scmp.ne.s32.totalorder %s79, %s95
      %p97 = scmp.eq.s32.totalorder %s33, 0
      %p98 = por %p96, %p97
      %s99 = ssub.s32 %s35, %s42
      %s100 = ssub.s32 %s34, %s46
      %s101 = sor.u32 %s99, %s100
      %p102 = scmp.eq.s32.totalorder %s101, 0
      %s104 = sadd.s32 %s103, 1
      %s105 = scalar_select %p102, %s103, %s104
      %p108 = pneg %p102
      %p109 = scmp.eq.s32.totalorder %s27, 2
      %p110 = por %p108, %p109
      %p111 = scmp.ne.s32.totalorder %s103, %s106
      %p112 = scmp.eq.s32.totalorder %s27, 0
      %p113 = por %p111, %p112
      %p114 = scmp.ne.s32.totalorder %s103, %s106
      %p115 = scmp.eq.s32.totalorder %s32, 2
      %p116 = por %p114, %p115
      %p117 = scmp.ne.s32.totalorder %s106, %s107
      %p118 = scmp.eq.s32.totalorder %s32, 0
      %p119 = por %p117, %p118
      %p120 = scmp.ne.s32.totalorder %s106, %s107
      %p121 = scmp.eq.s32.totalorder %s33, 2
      %p122 = por %p120, %p121
      %p124 = scmp.ne.s32.totalorder %s107, %s123
      %p125 = scmp.eq.s32.totalorder %s33, 0
      %p126 = por %p124, %p125
      %s128 = sadd.s32 %s127, 1
      %p131 = scmp.eq.s32.totalorder %s27, 2
      %p132 = scmp.ne.s32.totalorder %s127, %s129
      %p133 = scmp.eq.s32.totalorder %s27, 0
      %p134 = por %p132, %p133
      %p135 = scmp.ne.s32.totalorder %s127, %s129
      %p136 = scmp.eq.s32.totalorder %s32, 2
      %p137 = por %p135, %p136
      %p138 = scmp.ne.s32.totalorder %s129, %s130
      %p139 = scmp.eq.s32.totalorder %s32, 0
      %p140 = por %p138, %p139
      %p141 = scmp.ne.s32.totalorder %s129, %s130
      %p142 = scmp.eq.s32.totalorder %s33, 2
      %p143 = por %p141, %p142
      %p145 = scmp.ne.s32.totalorder %s130, %s144
      %p146 = scmp.eq.s32.totalorder %s33, 0
      %p147 = por %p145, %p146
      %s149 = sadd.s32 %s148, 1
      %p152 = scmp.eq.s32.totalorder %s27, 2
      %p153 = scmp.ne.s32.totalorder %s148, %s150
      %p154 = scmp.eq.s32.totalorder %s27, 0
      %p155 = por %p153, %p154
      %p156 = scmp.ne.s32.totalorder %s148, %s150
      %p157 = scmp.eq.s32.totalorder %s32, 2
      %p158 = por %p156, %p157
      %p159 = scmp.ne.s32.totalorder %s150, %s151
      %p160 = scmp.eq.s32.totalorder %s32, 0
      %p161 = por %p159, %p160
      %p162 = scmp.ne.s32.totalorder %s150, %s151
      %p163 = scmp.eq.s32.totalorder %s33, 2
      %p164 = por %p162, %p163
      %p166 = scmp.ne.s32.totalorder %s151, %s165
      %p167 = scmp.eq.s32.totalorder %s33, 0
      %p168 = por %p166, %p167
      %s169 = ssub.s32 %s35, %s42
      %p170 = scmp.eq.s32.totalorder %s169, 0
      %s172 = sadd.s32 %s171, 1
      %s173 = scalar_select %p170, %s171, %s172
      %p176 = pneg %p170
      %p177 = scmp.eq.s32.totalorder %s27, 2
      %p178 = por %p176, %p177
      %p179 = scmp.ne.s32.totalorder %s171, %s174
      %p180 = scmp.eq.s32.totalorder %s27, 0
      %p181 = por %p179, %p180
      %p182 = scmp.ne.s32.totalorder %s171, %s174
      %p183 = scmp.eq.s32.totalorder %s32, 2
      %p184 = por %p182, %p183
      %p185 = scmp.ne.s32.totalorder %s174, %s175
      %p186 = scmp.eq.s32.totalorder %s32, 0
      %p187 = por %p185, %p186
      %p188 = scmp.ne.s32.totalorder %s174, %s175
      %p189 = scmp.eq.s32.totalorder %s33, 2
      %p190 = por %p188, %p189
      %p192 = scmp.ne.s32.totalorder %s175, %s191
      %p193 = scmp.eq.s32.totalorder %s33, 0
      %p194 = por %p192, %p193
      %s195 = ssub.s32 %s35, %s42
      %p196 = scmp.eq.s32.totalorder %s195, 0
      %s198 = sadd.s32 %s197, 1
      %s199 = scalar_select %p196, %s197, %s198
      %p202 = pneg %p196
      %p203 = scmp.eq.s32.totalorder %s27, 2
      %p204 = por %p202, %p203
      %p205 = scmp.ne.s32.totalorder %s197, %s200
      %p206 = scmp.eq.s32.totalorder %s27, 0
      %p207 = por %p205, %p206
      %p208 = scmp.ne.s32.totalorder %s197, %s200
      %p209 = scmp.eq.s32.totalorder %s32, 2
      %p210 = por %p208, %p209
      %p211 = scmp.ne.s32.totalorder %s200, %s201
      %p212 = scmp.eq.s32.totalorder %s32, 0
      %p213 = por %p211, %p212
      %p214 = scmp.ne.s32.totalorder %s200, %s201
      %p215 = scmp.eq.s32.totalorder %s33, 2
      %p216 = por %p214, %p215
      %p218 = scmp.ne.s32.totalorder %s201, %s217
      %p219 = scmp.eq.s32.totalorder %s33, 0
      %p220 = por %p218, %p219
      %s221 = ssub.s32 %s35, %s42
      %p222 = scmp.eq.s32.totalorder %s221, 0
      %s224 = sadd.s32 %s223, 1
      %s225 = scalar_select %p222, %s223, %s224
      %p228 = pneg %p222
      %p229 = scmp.eq.s32.totalorder %s27, 2
      %p230 = por %p228, %p229
      %p231 = scmp.ne.s32.totalorder %s223, %s226
      %p232 = scmp.eq.s32.totalorder %s27, 0
      %p233 = por %p231, %p232
      %p234 = scmp.ne.s32.totalorder %s223, %s226
      %p235 = scmp.eq.s32.totalorder %s32, 2
      %p236 = por %p234, %p235
      %p237 = scmp.ne.s32.totalorder %s226, %s227
      %p238 = scmp.eq.s32.totalorder %s32, 0
      %p239 = por %p237, %p238
      %p240 = scmp.ne.s32.totalorder %s226, %s227
      %p241 = scmp.eq.s32.totalorder %s33, 2
      %p242 = por %p240, %p241
      %p244 = scmp.ne.s32.totalorder %s227, %s243
      %p245 = scmp.eq.s32.totalorder %s33, 0
      %p246 = por %p244, %p245
      %s247 = ssub.s32 %s35, %s42
      %p248 = scmp.eq.s32.totalorder %s247, 0
      %s250 = sadd.s32 %s249, 1
      %s251 = scalar_select %p248, %s249, %s250
      %p254 = pneg %p248
      %p255 = scmp.eq.s32.totalorder %s27, 2
      %p256 = por %p254, %p255
      %p257 = scmp.ne.s32.totalorder %s249, %s252
      %p258 = scmp.eq.s32.totalorder %s27, 0
      %p259 = por %p257, %p258
      %p260 = scmp.ne.s32.totalorder %s249, %s252
      %p261 = scmp.eq.s32.totalorder %s32, 2
      %p262 = por %p260, %p261
      %p263 = scmp.ne.s32.totalorder %s252, %s253
      %p264 = scmp.eq.s32.totalorder %s32, 0
      %p265 = por %p263, %p264
      %p266 = scmp.ne.s32.totalorder %s252, %s253
      %p267 = scmp.eq.s32.totalorder %s33, 2
      %p268 = por %p266, %p267
      %p270 = scmp.ne.s32.totalorder %s253, %s269
      %p271 = scmp.eq.s32.totalorder %s33, 0
      %p272 = por %p270, %p271
      %s273 = ssub.s32 %s35, %s42
      %p274 = scmp.eq.s32.totalorder %s273, 0
      %s276 = sadd.s32 %s275, 1
      %s277 = scalar_select %p274, %s275, %s276
      %p280 = pneg %p274
      %p281 = scmp.eq.s32.totalorder %s27, 2
      %p282 = por %p280, %p281
      %p283 = scmp.ne.s32.totalorder %s275, %s278
      %p284 = scmp.eq.s32.totalorder %s27, 0
      %p285 = por %p283, %p284
      %p286 = scmp.ne.s32.totalorder %s275, %s278
      %p287 = scmp.eq.s32.totalorder %s32, 2
      %p288 = por %p286, %p287
      %p289 = scmp.ne.s32.totalorder %s278, %s279
      %p290 = scmp.eq.s32.totalorder %s32, 0
      %p291 = por %p289, %p290
      %p292 = scmp.ne.s32.totalorder %s278, %s279
      %p293 = scmp.eq.s32.totalorder %s33, 2
      %p294 = por %p292, %p293
      %p296 = scmp.ne.s32.totalorder %s279, %s295
      %p297 = scmp.eq.s32.totalorder %s33, 0
      %p298 = por %p296, %p297
      %s300 = sadd.s32 %s299, 1
      %p303 = scmp.eq.s32.totalorder %s27, 2
      %p304 = scmp.ne.s32.totalorder %s299, %s301
      %p305 = scmp.eq.s32.totalorder %s27, 0
      %p306 = por %p304, %p305
      %p307 = scmp.ne.s32.totalorder %s299, %s301
      %p308 = scmp.eq.s32.totalorder %s32, 2
      %p309 = por %p307, %p308
      %p310 = scmp.ne.s32.totalorder %s301, %s302
      %p311 = scmp.eq.s32.totalorder %s32, 0
      %p312 = por %p310, %p311
      %p313 = scmp.ne.s32.totalorder %s301, %s302
      %p314 = scmp.eq.s32.totalorder %s33, 2
      %p315 = por %p313, %p314
      %p317 = scmp.ne.s32.totalorder %s302, %s316
      %p318 = scmp.eq.s32.totalorder %s33, 0
      %p319 = por %p317, %p318
      %s321 = sadd.s32 %s320, 1
      %p324 = scmp.eq.s32.totalorder %s27, 2
      %p325 = scmp.ne.s32.totalorder %s320, %s322
      %p326 = scmp.eq.s32.totalorder %s27, 0
      %p327 = por %p325, %p326
      %p328 = scmp.ne.s32.totalorder %s320, %s322
      %p329 = scmp.eq.s32.totalorder %s32, 2
      %p330 = por %p328, %p329
      %p331 = scmp.ne.s32.totalorder %s322, %s323
      %p332 = scmp.eq.s32.totalorder %s32, 0
      %p333 = por %p331, %p332
      %p334 = scmp.ne.s32.totalorder %s322, %s323
      %p335 = scmp.eq.s32.totalorder %s33, 2
      %p336 = por %p334, %p335
      %p338 = scmp.ne.s32.totalorder %s323, %s337
      %p339 = scmp.eq.s32.totalorder %s33, 0
      %p340 = por %p338, %p339
      %s341 = ssub.s32 %s34, %s46
      %p342 = scmp.eq.s32.totalorder %s341, 0
      %s344 = sadd.s32 %s343, 1
      %s345 = scalar_select %p342, %s343, %s344
      %p348 = pneg %p342
      %p349 = scmp.eq.s32.totalorder %s27, 2
      %p350 = por %p348, %p349
      %p351 = scmp.ne.s32.totalorder %s343, %s346
      %p352 = scmp.eq.s32.totalorder %s27, 0
      %p353 = por %p351, %p352
      %p354 = scmp.ne.s32.totalorder %s343, %s346
      %p355 = scmp.eq.s32.totalorder %s32, 2
      %p356 = por %p354, %p355
      %p357 = scmp.ne.s32.totalorder %s346, %s347
      %p358 = scmp.eq.s32.totalorder %s32, 0
      %p359 = por %p357, %p358
      %p360 = scmp.ne.s32.totalorder %s346, %s347
      %p361 = scmp.eq.s32.totalorder %s33, 2
      %p362 = por %p360, %p361
      %p364 = scmp.ne.s32.totalorder %s347, %s363
      %p365 = scmp.eq.s32.totalorder %s33, 0
      %p366 = por %p364, %p365
      %p367 = scmp.le.s32.totalorder 1, %s27
      %p368 = scmp.lt.s32.totalorder %s27, 4
      %p369 = pnand %p367, %p368
      %p370 = pneg %p369
      // Predicated region
      $region9: #{tpu_custom_call.1} parent=5 // pred_check
        _
      $region10: #{tpu_custom_call.1} parent=5 // pred_check_branch
        %372 = sbr.rel (%p369) target = $region12
      $region11: #{tpu_custom_call.1} parent=5 // pred_region
        %s373 = ssub.s32 %s27, 1
        // Predicated region
        $region13: #{tpu_custom_call.1} parent=11 // pred_check
          %p374 = pneg %p65
        $region14: #{tpu_custom_call.1} parent=11 // pred_check_branch
          %376 = sbr.rel (%p374) target = $region16
        $region15: #{tpu_custom_call.1} parent=11 // pred_region
          %s377 = smul.u32 2, %s36
          %s379 = ssub.s32 256, 256
          %380 = vsyncadd [#allocation6], %s379
          %s381 = smul.addr %s377, 128
          %s382 = scalar_lea.hbm %s0, %s381
          %s383 = sshll.u32 [#allocation5], 4
          %s384 = int_to_ptr.vmem [resolvable:$true] %s383
          %389 = dma.hbm_to_vmem [thread:$0]  %s382, 256, %s384, [#allocation6], 128, 128, 8
        $region16: #{tpu_custom_call.1} parent=11 // pred_fallthru
          _
        // Predicated region
        $region17: #{tpu_custom_call.1} parent=11 // pred_check
          %p390 = pneg %p91
        $region18: #{tpu_custom_call.1} parent=11 // pred_check_branch
          %392 = sbr.rel (%p390) target = $region20
        $region19: #{tpu_custom_call.1} parent=11 // pred_region
          %s393 = smul.u32 2, %s36
          %s395 = ssub.s32 128, 128
          %396 = vsyncadd [#allocation9], %s395
          %s397 = smul.addr %s393, 64
          %s398 = scalar_lea.hbm %s1, %s397
          %s399 = sshll.u32 [#allocation8], 4
          %s400 = int_to_ptr.vmem [resolvable:$true] %s399
          %405 = dma.hbm_to_vmem [thread:$0]  %s398, 128, %s400, [#allocation9], 64, 64, 4
        $region20: #{tpu_custom_call.1} parent=11 // pred_fallthru
          _
        // Predicated region
        $region21: #{tpu_custom_call.1} parent=11 // pred_check
          %p406 = pneg %p140
        $region22: #{tpu_custom_call.1} parent=11 // pred_check_branch
          %408 = sbr.rel (%p406) target = $region24
        $region23: #{tpu_custom_call.1} parent=11 // pred_region
          %s410 = ssub.s32 256, 256
          %411 = vsyncadd [#allocation9], %s410
          %s412 = sshll.u32 [#allocation11], 4
          %s413 = int_to_ptr.vmem [resolvable:$true] %s412
          %418 = dma.hbm_to_vmem [thread:$0]  %s3, 256, %s413, [#allocation9], 64, 64, 4
        $region24: #{tpu_custom_call.1} parent=11 // pred_fallthru
          _
        // Predicated region
        $region25: #{tpu_custom_call.1} parent=11 // pred_check
          %p419 = pneg %p161
        $region26: #{tpu_custom_call.1} parent=11 // pred_check_branch
          %421 = sbr.rel (%p419) target = $region28
        $region27: #{tpu_custom_call.1} parent=11 // pred_region
          _
        $region28: #{tpu_custom_call.1} parent=11 // pred_fallthru
          _
        // Predicated region
        $region29: #{tpu_custom_call.1} parent=11 // pred_check
          %p422 = pneg %p312
        $region30: #{tpu_custom_call.1} parent=11 // pred_check_branch
          %424 = sbr.rel (%p422) target = $region32
        $region31: #{tpu_custom_call.1} parent=11 // pred_region
          _
        $region32: #{tpu_custom_call.1} parent=11 // pred_fallthru
          _
        // Predicated region
        $region33: #{tpu_custom_call.1} parent=11 // pred_check
          %p425 = pneg %p333
        $region34: #{tpu_custom_call.1} parent=11 // pred_check_branch
          %427 = sbr.rel (%p425) target = $region36
        $region35: #{tpu_custom_call.1} parent=11 // pred_region
          _
        $region36: #{tpu_custom_call.1} parent=11 // pred_fallthru
          _
      $region12: #{tpu_custom_call.1} parent=5 // pred_fallthru
        _
      %p428 = scmp.lt.s32.totalorder %s27, 3
      // Predicated region
      $region37: #{tpu_custom_call.1} parent=5 // pred_check
        %p429 = pneg %p428
      $region38: #{tpu_custom_call.1} parent=5 // pred_check_branch
        %431 = sbr.rel (%p429) target = $region40
      $region39: #{tpu_custom_call.1} parent=5 // pred_region
        // Predicated region
        $region41: #{tpu_custom_call.1} parent=39 // pred_check
          %p432 = pneg %p113
        $region42: #{tpu_custom_call.1} parent=39 // pred_check_branch
          %434 = sbr.rel (%p432) target = $region44
        $region43: #{tpu_custom_call.1} parent=39 // pred_region
          %s435 = sand.u32 %s27, 1
          %s436 = scalar_lea.sflag [#allocation6], %s435
          %s437 = sand.u32 %s103, 1
          %s438 = smul.addr %s437, 16
          %s439 = scalar_lea.vmem [#allocation10], %s438
          %s440 = smul.u32 2, %s34
          %s442 = ssub.s32 256, 256
          %443 = vsyncadd %s436, %s442
          %s444 = smul.addr %s35, 2
          %s445 = sadd.s32 %s440, %s444
          %s446 = smul.addr %s445, 128
          %s447 = scalar_lea.hbm %s2, %s446
          %s448 = sshll.u32 %s439, 4
          %s449 = int_to_ptr.vmem [resolvable:$true] %s448
          %454 = dma.hbm_to_vmem [thread:$0]  %s447, 256, %s449, %s436, 128, 128, 8
        $region44: #{tpu_custom_call.1} parent=39 // pred_fallthru
          _
        // Predicated region
        $region45: #{tpu_custom_call.1} parent=39 // pred_check
          %p455 = pneg %p181
        $region46: #{tpu_custom_call.1} parent=39 // pred_check_branch
          %457 = sbr.rel (%p455) target = $region48
        $region47: #{tpu_custom_call.1} parent=39 // pred_region
          %s458 = sand.u32 %s27, 1
          %s459 = scalar_lea.sflag [#allocation13], %s458
          %s460 = sand.u32 %s171, 1
          %s461 = smul.addr %s460, 32
          %s462 = scalar_lea.vmem [#allocation12], %s461
          %s464 = ssub.s32 512, 512
          %465 = vsyncadd %s459, %s464
          %s466 = smul.addr %s35, 8
          %s467 = smul.addr %s466, 64
          %s468 = scalar_lea.hbm %s5, %s467
          %s469 = sshll.u32 %s462, 4
          %s470 = int_to_ptr.vmem [resolvable:$true] %s469
          %475 = dma.hbm_to_vmem [thread:$0]  %s468, 512, %s470, %s459, 64, 64, 4
        $region48: #{tpu_custom_call.1} parent=39 // pred_fallthru
          _
        // Predicated region
        $region49: #{tpu_custom_call.1} parent=39 // pred_check
          %p476 = pneg %p207
        $region50: #{tpu_custom_call.1} parent=39 // pred_check_branch
          %478 = sbr.rel (%p476) target = $region52
        $region51: #{tpu_custom_call.1} parent=39 // pred_region
          %s479 = sand.u32 %s27, 1
          %s480 = scalar_lea.sflag [#allocation13], %s479
          %s481 = sand.u32 %s197, 1
          %s482 = smul.addr %s481, 2
          %s483 = scalar_lea.vmem [#allocation14], %s482
          %s485 = ssub.s32 32, 32
          %486 = vsyncadd %s480, %s485
          %s487 = smul.addr %s35, 2
          %s488 = smul.addr %s487, 16
          %s489 = scalar_lea.hbm %s6, %s488
          %s490 = sshll.u32 %s483, 4
          %s491 = int_to_ptr.vmem [resolvable:$true] %s490
          %496 = dma.hbm_to_vmem [thread:$0]  %s489, 32, %s491, %s480, 16, 16, 1
        $region52: #{tpu_custom_call.1} parent=39 // pred_fallthru
          _
        // Predicated region
        $region53: #{tpu_custom_call.1} parent=39 // pred_check
          %p497 = pneg %p233
        $region54: #{tpu_custom_call.1} parent=39 // pred_check_branch
          %499 = sbr.rel (%p497) target = $region56
        $region55: #{tpu_custom_call.1} parent=39 // pred_region
          %s500 = sand.u32 %s223, 1
          %s501 = scalar_lea.sflag [#allocation16], %s500
          %s502 = sand.u32 %s223, 1
          %s503 = scalar_lea.vmem [#allocation15], %s502
          %s505 = ssub.s32 16, 16
          %506 = vsyncadd %s501, %s505
          %s507 = smul.addr %s35, 16
          %s508 = scalar_lea.hbm %s7, %s507
          %s510 = sshll.u32 %s503, 4
          %s511 = int_to_ptr.vmem [resolvable:$true] %s510
          %513 = dma.hbm_to_vmem [thread:$0]  %s508, 16, %s511, %s501
        $region56: #{tpu_custom_call.1} parent=39 // pred_fallthru
          _
        // Predicated region
        $region57: #{tpu_custom_call.1} parent=39 // pred_check
          %p514 = pneg %p259
        $region58: #{tpu_custom_call.1} parent=39 // pred_check_branch
          %516 = sbr.rel (%p514) target = $region60
        $region59: #{tpu_custom_call.1} parent=39 // pred_region
          %p517 = scmp.lt.s32.totalorder %s35, 2
          %s518 = scalar_select %p517, %s35, 2
          %s519 = smul.addr %s518, 4
          %s520 = scalar_lea.vmem %s8, %s519
        $region60: #{tpu_custom_call.1} parent=39 // pred_fallthru
          _
        // Predicated region
        $region61: #{tpu_custom_call.1} parent=39 // pred_check
          %p521 = pneg %p285
        $region62: #{tpu_custom_call.1} parent=39 // pred_check_branch
          %523 = sbr.rel (%p521) target = $region64
        $region63: #{tpu_custom_call.1} parent=39 // pred_region
          %p524 = scmp.lt.s32.totalorder %s35, 2
          %s525 = scalar_select %p524, %s35, 2
          %s526 = scalar_lea.vmem %s9, %s525
        $region64: #{tpu_custom_call.1} parent=39 // pred_fallthru
          _
      $region40: #{tpu_custom_call.1} parent=5 // pred_fallthru
        _
      %p527 = scmp.le.s32.totalorder 1, %s27
      %p528 = scmp.lt.s32.totalorder %s27, 4
      %p529 = pnand %p527, %p528
      %p530 = pneg %p529
      // Predicated region
      $region65: #{tpu_custom_call.1} parent=5 // pred_check
        _
      $region66: #{tpu_custom_call.1} parent=5 // pred_check_branch
        %532 = sbr.rel (%p529) target = $region68
      $region67: #{tpu_custom_call.1} parent=5 // pred_region
        %s533 = ssub.s32 %s27, 1
        // Predicated region
        $region69: #{tpu_custom_call.1} parent=67 // pred_check
          %p534 = pneg %p65
        $region70: #{tpu_custom_call.1} parent=67 // pred_check_branch
          %536 = sbr.rel (%p534) target = $region72
        $region71: #{tpu_custom_call.1} parent=67 // pred_region
          %537 = dma.done [#allocation6], 256
        $region72: #{tpu_custom_call.1} parent=67 // pred_fallthru
          _
        // Predicated region
        $region73: #{tpu_custom_call.1} parent=67 // pred_check
          %p538 = pneg %p91
        $region74: #{tpu_custom_call.1} parent=67 // pred_check_branch
          %540 = sbr.rel (%p538) target = $region76
        $region75: #{tpu_custom_call.1} parent=67 // pred_region
          %541 = dma.done [#allocation9], 128
        $region76: #{tpu_custom_call.1} parent=67 // pred_fallthru
          _
        %s542 = sand.u32 %s32, 1
        %s543 = scalar_lea.sflag [#allocation6], %s542
        %s544 = sand.u32 %s106, 1
        %s545 = smul.addr %s544, 16
        %s546 = scalar_lea.vmem [#allocation10], %s545
        // Predicated region
        $region77: #{tpu_custom_call.1} parent=67 // pred_check
          %p547 = pneg %p119
        $region78: #{tpu_custom_call.1} parent=67 // pred_check_branch
          %549 = sbr.rel (%p547) target = $region80
        $region79: #{tpu_custom_call.1} parent=67 // pred_region
          %550 = dma.done %s543, 256
        $region80: #{tpu_custom_call.1} parent=67 // pred_fallthru
          _
        // Predicated region
        $region81: #{tpu_custom_call.1} parent=67 // pred_check
          %p551 = pneg %p140
        $region82: #{tpu_custom_call.1} parent=67 // pred_check_branch
          %553 = sbr.rel (%p551) target = $region84
        $region83: #{tpu_custom_call.1} parent=67 // pred_region
          %554 = dma.done [#allocation9], 256
        $region84: #{tpu_custom_call.1} parent=67 // pred_fallthru
          _
        %s555 = sand.u32 %s32, 1
        %s556 = scalar_lea.sflag [#allocation13], %s555
        %s557 = sand.u32 %s174, 1
        %s558 = smul.addr %s557, 32
        %s559 = scalar_lea.vmem [#allocation12], %s558
        // Predicated region
        $region85: #{tpu_custom_call.1} parent=67 // pred_check
          %p560 = pneg %p187
        $region86: #{tpu_custom_call.1} parent=67 // pred_check_branch
          %562 = sbr.rel (%p560) target = $region88
        $region87: #{tpu_custom_call.1} parent=67 // pred_region
          %563 = dma.done %s556, 512
        $region88: #{tpu_custom_call.1} parent=67 // pred_fallthru
          _
        %s564 = sand.u32 %s32, 1
        %s565 = scalar_lea.sflag [#allocation13], %s564
        %s566 = sand.u32 %s200, 1
        %s567 = smul.addr %s566, 2
        %s568 = scalar_lea.vmem [#allocation14], %s567
        // Predicated region
        $region89: #{tpu_custom_call.1} parent=67 // pred_check
          %p569 = pneg %p213
        $region90: #{tpu_custom_call.1} parent=67 // pred_check_branch
          %571 = sbr.rel (%p569) target = $region92
        $region91: #{tpu_custom_call.1} parent=67 // pred_region
          %572 = dma.done %s565, 32
        $region92: #{tpu_custom_call.1} parent=67 // pred_fallthru
          _
        %s573 = sand.u32 %s226, 1
        %s574 = scalar_lea.sflag [#allocation16], %s573
        %s575 = sand.u32 %s226, 1
        %s576 = scalar_lea.vmem [#allocation15], %s575
        // Predicated region
        $region93: #{tpu_custom_call.1} parent=67 // pred_check
          %p577 = pneg %p239
        $region94: #{tpu_custom_call.1} parent=67 // pred_check_branch
          %579 = sbr.rel (%p577) target = $region96
        $region95: #{tpu_custom_call.1} parent=67 // pred_region
          %580 = dma.done %s574, 16
        $region96: #{tpu_custom_call.1} parent=67 // pred_fallthru
          _
        %p581 = pneg %p65
        %p582 = pneg %p62
        %p583 = pneg %p91
        %p584 = pneg %p88
        %s585 = sand.u32 %s32, 1
        %s586 = scalar_lea.sflag [#allocation6], %s585
        %s587 = sand.u32 %s106, 1
        %s588 = smul.addr %s587, 16
        %s589 = scalar_lea.vmem [#allocation10], %s588
        %p590 = pneg %p119
        %p591 = pneg %p116
        %p592 = pneg %p140
        %p593 = pneg %p137
        %p594 = pneg %p161
        %p595 = pneg %p158
        %s596 = sand.u32 %s32, 1
        %s597 = scalar_lea.sflag [#allocation13], %s596
        %s598 = sand.u32 %s174, 1
        %s599 = smul.addr %s598, 32
        %s600 = scalar_lea.vmem [#allocation12], %s599
        %p601 = pneg %p187
        %p602 = pneg %p184
        %s603 = sand.u32 %s32, 1
        %s604 = scalar_lea.sflag [#allocation13], %s603
        %s605 = sand.u32 %s200, 1
        %s606 = smul.addr %s605, 2
        %s607 = scalar_lea.vmem [#allocation14], %s606
        %p608 = pneg %p213
        %p609 = pneg %p210
        %s610 = sand.u32 %s226, 1
        %s611 = scalar_lea.sflag [#allocation16], %s610
        %s612 = sand.u32 %s226, 1
        %s613 = scalar_lea.vmem [#allocation15], %s612
        %p614 = pneg %p239
        %p615 = pneg %p236
        %p616 = scmp.lt.s32.totalorder %s37, 2
        %s617 = scalar_select %p616, %s37, 2
        %s618 = smul.addr %s617, 4
        %s619 = scalar_lea.vmem %s8, %s618
        %p620 = pneg %p265
        %p621 = pneg %p262
        %p622 = scmp.lt.s32.totalorder %s37, 2
        %s623 = scalar_select %p622, %s37, 2
        %s624 = scalar_lea.vmem %s9, %s623
        %p625 = pneg %p291
        %p626 = pneg %p288
        %p627 = pneg %p312
        %p628 = pneg %p309
        %p629 = pneg %p333
        %p630 = pneg %p330
        %p631 = pneg %p359
        %p632 = pneg %p356
        %s633 = smul.u32 2, %s36
        %s634 = smul.u32 2, %s36
        %s635 = smul.u32 2, %s36
        %p636 = scmp.lt.s32.totalorder %s37, 2
        %s637 = scalar_select %p636, %s37, 2
        %s638 = smul.addr %s637, 4
        %s639 = scalar_lea.vmem %s8, %s638
        %p640 = scmp.lt.s32.totalorder %s37, 2
        %s641 = scalar_select %p640, %s37, 2
        %s642 = scalar_lea.vmem %s9, %s641
        %s643 = smul.u32 2, %s36
        %p645 = scmp.eq.s32.totalorder %s37, 0
        // Predicated region
        $region97: #{tpu_custom_call.1} parent=67 // pred_check
          %p646 = pneg %p645
        $region98: #{tpu_custom_call.1} parent=67 // pred_check_branch
          %648 = sbr.rel (%p646) target = $region100
        $region99: #{tpu_custom_call.1} parent=67 // pred_region
          %v649 = vld [vmem:[#allocation8] sm:$0xf]
          %v650 = vld [vmem:[#allocation8 + $0x4] sm:$0xf]
          %v651 = vld [vmem:[#allocation11] sm:$0xf]
          %v652 = vld [vmem:[#allocation11 + $0x4] sm:$0xf]
          %v653 = vld [vmem:[#allocation11 + $0x8] sm:$0xf]
          %v654 = vld [vmem:[#allocation11 + $0xc] sm:$0xf]
          %v655 = vld [vmem:[%s4] sm:$0x1]
          %v657 = vlaneseq
          %v658 = vshrl.u32 %v657, 7
          %v659 = vsub.s32 0, %v658
          %v660 = vrot.slane %v655, %v659
          %v664 = vunpack.c.l.b16 %v649
          %v665 = vunpack.c.l.b16 %v650
          %v666 = vpack.c.b16 %v665, %v664
          %v671 = vunpack.c.l.b16 %v651
          %v672 = vunpack.c.l.b16 %v652
          %v673 = vunpack.c.l.b16 %v653
          %v674 = vunpack.c.l.b16 %v654
          %v675 = vpack.c.b16 %v672, %v671
          %v676 = vpack.c.b16 %v674, %v673
          %vm679 = vcmask 261120
          %v681 = vsel %vm679, %v666, 0
          %683 = vmatprep.subr.bf16.mxu0 0
          %684 = vmatpush1.bf16.msra.mxu0 %v675
          %685 = vmatprep.subr.bf16.mxu0 0
          %686 = vmatpush1.bf16.msra.mxu0 %v676
          %687 = vmatprep.subr.bf16.mxu0 0
          %688 = vmatpush1.bf16.msra.mxu0 0
          %689 = vmatprep.subr.bf16.mxu0 0
          %690 = vmatpush1.bf16.msra.mxu0 0
          %691 = vmatprep.subr.bf16.mxu0 0
          %692 = vmatpush1.bf16.msra.mxu0 0
          %693 = vmatprep.subr.bf16.mxu0 0
          %694 = vmatpush1.bf16.msra.mxu0 0
          %695 = vmatprep.subr.bf16.mxu0 0
          %696 = vmatpush1.bf16.msra.mxu0 0
          %697 = vmatprep.subr.bf16.mxu0 0
          %698 = vmatpush1.bf16.msra.mxu0 0
          %699 = vmatprep.subr.bf16.mxu0 0
          %700 = vmatpush1.bf16.msra.mxu0 0
          %701 = vmatprep.subr.bf16.mxu0 0
          %702 = vmatpush1.bf16.msra.mxu0 0
          %703 = vmatprep.subr.bf16.mxu0 0
          %704 = vmatpush1.bf16.msra.mxu0 0
          %705 = vmatprep.subr.bf16.mxu0 0
          %706 = vmatpush1.bf16.msra.mxu0 0
          %707 = vmatprep.subr.bf16.mxu0 0
          %708 = vmatpush1.bf16.msra.mxu0 0
          %709 = vmatprep.subr.bf16.mxu0 0
          %710 = vmatpush1.bf16.msra.mxu0 0
          %711 = vmatprep.subr.bf16.mxu0 0
          %712 = vmatpush1.bf16.msra.mxu0 0
          %713 = vmatprep.subr.bf16.mxu0 0
          %714 = vmatpush1.bf16.msra.mxu0 0
          %715 = vmatprep.mubr.bf16.mxu0 0
          %716 = vmatmul.mubr.bf16.gmra.mrb[0].mxu0 %v681
          %v717 = vpop.f32.mrb[0].mxu0
          %v718 = vadd.f32 %v660, %v717
          %v719 = vpop.f32.mrb[0].mxu0
          %v720 = vpop.f32.mrb[0].mxu0
          %v721 = vadd.f32 %v660, %v720
          %v722 = vpop.f32.mrb[0].mxu0
          %723 = vdwg.mxu0
          %v724 = vpack.c.bf16 %v721, %v718
          %725 = vst.msk [vmem:[#allocation2] sm:$0xff] %vm679, %v724
          %vm726 = vcmask 64512
          %727 = vst.msk [vmem:[#allocation4] sm:$0xff] %vm726, 0.0
          %728 = vst.msk [vmem:[#allocation4 + $0x8] sm:$0xff] %vm726, 0.0
          %729 = vst.msk [vmem:[#allocation4 + $0x10] sm:$0xff] %vm726, 0.0
          %730 = vst.msk [vmem:[#allocation4 + $0x18] sm:$0xff] %vm726, 0.0
          %731 = vst.msk [vmem:[#allocation4 + $0x20] sm:$0xff] %vm726, 0.0
          %732 = vst.msk [vmem:[#allocation4 + $0x28] sm:$0xff] %vm726, 0.0
          %733 = vst.msk [vmem:[#allocation4 + $0x30] sm:$0xff] %vm726, 0.0
          %734 = vst.msk [vmem:[#allocation4 + $0x38] sm:$0xff] %vm726, 0.0
        $region100: #{tpu_custom_call.1} parent=67 // pred_fallthru
          _
        %v735 = vld [vmem:[%s546] sm:$0xff]
        %v736 = vld [vmem:[%s546 + $0x8] sm:$0xff]
        %v737 = vpack.c.bf16 %v736, %v735
        %v738 = vld [vmem:[%s559] sm:$0xf]
        %v739 = vld [vmem:[%s559 + $0x4] sm:$0xf]
        %v740 = vld [vmem:[%s559 + $0x8] sm:$0xf]
        %v741 = vld [vmem:[%s559 + $0xc] sm:$0xf]
        %v742 = vld [vmem:[%s568] sm:$0x1]
        %v744 = vlaneseq
        %v745 = vshrl.u32 %v744, 7
        %v746 = vsub.s32 0, %v745
        %v747 = vrot.slane %v742, %v746
        %v753 = vunpack.c.l.b16 %v738
        %v754 = vunpack.c.l.b16 %v739
        %v755 = vunpack.c.l.b16 %v740
        %v756 = vunpack.c.l.b16 %v741
        %v757 = vpack.c.b16 %v754, %v753
        %v758 = vpack.c.b16 %v756, %v755
        %vm761 = vcmask 261120
        %v763 = vsel %vm761, %v737, 0
        %765 = vmatprep.subr.bf16.mxu0 0
        %766 = vmatpush1.bf16.msra.mxu0 %v757
        %767 = vmatprep.subr.bf16.mxu0 0
        %768 = vmatpush1.bf16.msra.mxu0 %v758
        %769 = vmatprep.subr.bf16.mxu0 0
        %770 = vmatpush1.bf16.msra.mxu0 0
        %771 = vmatprep.subr.bf16.mxu0 0
        %772 = vmatpush1.bf16.msra.mxu0 0
        %773 = vmatprep.subr.bf16.mxu0 0
        %774 = vmatpush1.bf16.msra.mxu0 0
        %775 = vmatprep.subr.bf16.mxu0 0
        %776 = vmatpush1.bf16.msra.mxu0 0
        %777 = vmatprep.subr.bf16.mxu0 0
        %778 = vmatpush1.bf16.msra.mxu0 0
        %779 = vmatprep.subr.bf16.mxu0 0
        %780 = vmatpush1.bf16.msra.mxu0 0
        %781 = vmatprep.subr.bf16.mxu0 0
        %782 = vmatpush1.bf16.msra.mxu0 0
        %783 = vmatprep.subr.bf16.mxu0 0
        %784 = vmatpush1.bf16.msra.mxu0 0
        %785 = vmatprep.subr.bf16.mxu0 0
        %786 = vmatpush1.bf16.msra.mxu0 0
        %787 = vmatprep.subr.bf16.mxu0 0
        %788 = vmatpush1.bf16.msra.mxu0 0
        %789 = vmatprep.subr.bf16.mxu0 0
        %790 = vmatpush1.bf16.msra.mxu0 0
        %791 = vmatprep.subr.bf16.mxu0 0
        %792 = vmatpush1.bf16.msra.mxu0 0
        %793 = vmatprep.subr.bf16.mxu0 0
        %794 = vmatpush1.bf16.msra.mxu0 0
        %795 = vmatprep.subr.bf16.mxu0 0
        %796 = vmatpush1.bf16.msra.mxu0 0
        %797 = vmatprep.mubr.bf16.mxu0 0
        %798 = vmatmul.mubr.bf16.gmra.mrb[0].mxu0 %v763
        %v799 = vpop.f32.mrb[0].mxu0
        %v800 = vadd.f32 %v747, %v799
        %v801 = vpop.f32.mrb[0].mxu0
        %v802 = vpop.f32.mrb[0].mxu0
        %v803 = vadd.f32 %v747, %v802
        %v804 = vpop.f32.mrb[0].mxu0
        %805 = vdwg.mxu0
        %s806 = scalar_lea.vmem %s559, 16 [#allocation12]
        %v807 = vld [vmem:[%s806] sm:$0xf]
        %v808 = vld [vmem:[%s806 + $0x4] sm:$0xf]
        %v809 = vld [vmem:[%s806 + $0x8] sm:$0xf]
        %v810 = vld [vmem:[%s806 + $0xc] sm:$0xf]
        %s811 = scalar_lea.vmem %s568, 1 [#allocation14]
        %v812 = vld [vmem:[%s811] sm:$0x1]
        %v814 = vlaneseq
        %v815 = vshrl.u32 %v814, 7
        %v816 = vsub.s32 0, %v815
        %v817 = vrot.slane %v812, %v816
        %v823 = vunpack.c.l.b16 %v807
        %v824 = vunpack.c.l.b16 %v808
        %v825 = vunpack.c.l.b16 %v809
        %v826 = vunpack.c.l.b16 %v810
        %v827 = vpack.c.b16 %v824, %v823
        %v828 = vpack.c.b16 %v826, %v825
        %831 = vmatprep.subr.bf16.mxu0 0
        %832 = vmatpush1.bf16.msra.mxu0 %v827
        %833 = vmatprep.subr.bf16.mxu0 0
        %834 = vmatpush1.bf16.msra.mxu0 %v828
        %835 = vmatprep.subr.bf16.mxu0 0
        %836 = vmatpush1.bf16.msra.mxu0 0
        %837 = vmatprep.subr.bf16.mxu0 0
        %838 = vmatpush1.bf16.msra.mxu0 0
        %839 = vmatprep.subr.bf16.mxu0 0
        %840 = vmatpush1.bf16.msra.mxu0 0
        %841 = vmatprep.subr.bf16.mxu0 0
        %842 = vmatpush1.bf16.msra.mxu0 0
        %843 = vmatprep.subr.bf16.mxu0 0
        %844 = vmatpush1.bf16.msra.mxu0 0
        %845 = vmatprep.subr.bf16.mxu0 0
        %846 = vmatpush1.bf16.msra.mxu0 0
        %847 = vmatprep.subr.bf16.mxu0 0
        %848 = vmatpush1.bf16.msra.mxu0 0
        %849 = vmatprep.subr.bf16.mxu0 0
        %850 = vmatpush1.bf16.msra.mxu0 0
        %851 = vmatprep.subr.bf16.mxu0 0
        %852 = vmatpush1.bf16.msra.mxu0 0
        %853 = vmatprep.subr.bf16.mxu0 0
        %854 = vmatpush1.bf16.msra.mxu0 0
        %855 = vmatprep.subr.bf16.mxu0 0
        %856 = vmatpush1.bf16.msra.mxu0 0
        %857 = vmatprep.subr.bf16.mxu0 0
        %858 = vmatpush1.bf16.msra.mxu0 0
        %859 = vmatprep.subr.bf16.mxu0 0
        %860 = vmatpush1.bf16.msra.mxu0 0
        %861 = vmatprep.subr.bf16.mxu0 0
        %862 = vmatpush1.bf16.msra.mxu0 0
        %863 = vmatprep.mubr.bf16.mxu0 0
        %864 = vmatmul.mubr.bf16.gmra.mrb[0].mxu0 %v763
        %v865 = vpop.f32.mrb[0].mxu0
        %v866 = vadd.f32 %v817, %v865
        %v867 = vpop.f32.mrb[0].mxu0
        %v868 = vpop.f32.mrb[0].mxu0
        %v869 = vadd.f32 %v817, %v868
        %v870 = vpop.f32.mrb[0].mxu0
        %871 = vdwg.mxu0
        %v872 = vld [vmem:[#allocation2] sm:$0xff]
        %v873 = vpack.c.bf16 %v803, %v800
        %v874 = vpack.c.bf16 %v869, %v866
        %vm875 = vcmask 64512
        %v877 = vsel %vm875, %v872, 0
        %v880 = vsel %vm875, %v873, 0
        %882 = vmatprep.subr.bf16.mxu0 0
        %883 = vmatpush1.bf16.xpose.msra.mxu0 %v880
        %884 = vmatprep.subr.bf16.mxu0 0
        %885 = vmatpush1.bf16.xpose.msra.mxu0 0
        %886 = vmatprep.subr.bf16.mxu0 0
        %887 = vmatpush1.bf16.xpose.msra.mxu0 0
        %888 = vmatprep.subr.bf16.mxu0 0
        %889 = vmatpush1.bf16.xpose.msra.mxu0 0
        %890 = vmatprep.subr.bf16.mxu0 0
        %891 = vmatpush1.bf16.xpose.msra.mxu0 0
        %892 = vmatprep.subr.bf16.mxu0 0
        %893 = vmatpush1.bf16.xpose.msra.mxu0 0
        %894 = vmatprep.subr.bf16.mxu0 0
        %895 = vmatpush1.bf16.xpose.msra.mxu0 0
        %896 = vmatprep.subr.bf16.mxu0 0
        %897 = vmatpush1.bf16.xpose.msra.mxu0 0
        %898 = vmatprep.subr.bf16.mxu0 0
        %899 = vmatpush1.bf16.xpose.msra.mxu0 0
        %900 = vmatprep.subr.bf16.mxu0 0
        %901 = vmatpush1.bf16.xpose.msra.mxu0 0
        %902 = vmatprep.subr.bf16.mxu0 0
        %903 = vmatpush1.bf16.xpose.msra.mxu0 0
        %904 = vmatprep.subr.bf16.mxu0 0
        %905 = vmatpush1.bf16.xpose.msra.mxu0 0
        %906 = vmatprep.subr.bf16.mxu0 0
        %907 = vmatpush1.bf16.xpose.msra.mxu0 0
        %908 = vmatprep.subr.bf16.mxu0 0
        %909 = vmatpush1.bf16.xpose.msra.mxu0 0
        %910 = vmatprep.subr.bf16.mxu0 0
        %911 = vmatpush1.bf16.xpose.msra.mxu0 0
        %912 = vmatprep.subr.bf16.mxu0 0
        %913 = vmatpush1.bf16.xpose.msra.mxu0 0
        %914 = vmatprep.mubr.bf16.mxu0 0
        %915 = vmatmul.mubr.bf16.gmra.mrb[0].mxu0 %v877
        %v916 = vpop.f32.mrb[0].mxu0
        %v917 = vadd.f32 0.0, %v916
        %v918 = vpop.f32.mrb[0].mxu0
        %v919 = vpop.f32.mrb[0].mxu0
        %v920 = vpop.f32.mrb[0].mxu0
        %921 = vdwg.mxu0
        %v922 = vsel %vm875, %v917, -inf
        %923 = vmax.xlane.f32.xlu0 %v922
        %v924 = vpop.xlane.xlu0 %923
        %v925 = vsub.f32 %v917, %v924
        %v926 = vmul.f32 %v925, 1.442695
        %v927 = vpow.pop %v926
        %v928 = vsel %vm875, %v927, 0.0
        %929 = vadd.xlane.f32.xlu0 %v928
        %v930 = vpop.xlane.xlu0 %929
        %v931 = vrcp.pop %v930
        %v932 = vmul.f32 %v927, %v931
        %v933 = vpack.c.bf16 %v932, %v932
        %v935 = vsel %vm875, %v933, 0
        %vm937 = vcmask 1043456
        %v939 = vsel %vm937, %v874, 0
        %941 = vmatprep.subr.bf16.mxu0 0
        %942 = vmatpush1.bf16.msra.mxu0 %v939
        %943 = vmatprep.subr.bf16.mxu0 0
        %944 = vmatpush1.bf16.msra.mxu0 0
        %945 = vmatprep.subr.bf16.mxu0 0
        %946 = vmatpush1.bf16.msra.mxu0 0
        %947 = vmatprep.subr.bf16.mxu0 0
        %948 = vmatpush1.bf16.msra.mxu0 0
        %949 = vmatprep.subr.bf16.mxu0 0
        %950 = vmatpush1.bf16.msra.mxu0 0
        %951 = vmatprep.subr.bf16.mxu0 0
        %952 = vmatpush1.bf16.msra.mxu0 0
        %953 = vmatprep.subr.bf16.mxu0 0
        %954 = vmatpush1.bf16.msra.mxu0 0
        %955 = vmatprep.subr.bf16.mxu0 0
        %956 = vmatpush1.bf16.msra.mxu0 0
        %957 = vmatprep.subr.bf16.mxu0 0
        %958 = vmatpush1.bf16.msra.mxu0 0
        %959 = vmatprep.subr.bf16.mxu0 0
        %960 = vmatpush1.bf16.msra.mxu0 0
        %961 = vmatprep.subr.bf16.mxu0 0
        %962 = vmatpush1.bf16.msra.mxu0 0
        %963 = vmatprep.subr.bf16.mxu0 0
        %964 = vmatpush1.bf16.msra.mxu0 0
        %965 = vmatprep.subr.bf16.mxu0 0
        %966 = vmatpush1.bf16.msra.mxu0 0
        %967 = vmatprep.subr.bf16.mxu0 0
        %968 = vmatpush1.bf16.msra.mxu0 0
        %969 = vmatprep.subr.bf16.mxu0 0
        %970 = vmatpush1.bf16.msra.mxu0 0
        %971 = vmatprep.subr.bf16.mxu0 0
        %972 = vmatpush1.bf16.msra.mxu0 0
        %973 = vmatprep.mubr.bf16.mxu0 0
        %974 = vmatmul.mubr.bf16.gmra.mrb[0].mxu0 %v935
        %v975 = vpop.f32.mrb[0].mxu0
        %v976 = vadd.f32 0.0, %v975
        %v977 = vpop.f32.mrb[0].mxu0
        %v978 = vpop.f32.mrb[0].mxu0
        %v979 = vpop.f32.mrb[0].mxu0
        %980 = vdwg.mxu0
        %vm981 = vcmask 58368
        %982 = vst.msk [vmem:[#allocation3] sm:$0x3] %vm981, %v976
        %s983 = scalar_lea.vmem [#allocation3], 16
        %vm984 = vcmask 60418
        %985 = vst.msk [vmem:[%s983 - $0x2] sm:$0xc] %vm984, %v976
        %s986 = scalar_lea.vmem [#allocation3], 32
        %vm987 = vcmask 62468
        %988 = vst.msk [vmem:[%s986 - $0x4] sm:$0x30] %vm987, %v976
        %s989 = scalar_lea.vmem [#allocation3], 48
        %vm990 = vcmask 64518
        %991 = vst.msk [vmem:[%s989 - $0x6] sm:$0xc0] %vm990, %v976
        %993 = vrot.lane.b32.xlu0 %v872, 120
        %v994 = vpop.permute.xlu0 %993
        %996 = vrot.lane.b32.xlu0 %v873, 120
        %v997 = vpop.permute.xlu0 %996
        %v999 = vsel %vm875, %v994, 0
        %v1002 = vsel %vm875, %v997, 0
        %1004 = vmatprep.subr.bf16.mxu0 0
        %1005 = vmatpush1.bf16.xpose.msra.mxu0 %v1002
        %1006 = vmatprep.subr.bf16.mxu0 0
        %1007 = vmatpush1.bf16.xpose.msra.mxu0 0
        %1008 = vmatprep.subr.bf16.mxu0 0
        %1009 = vmatpush1.bf16.xpose.msra.mxu0 0
        %1010 = vmatprep.subr.bf16.mxu0 0
        %1011 = vmatpush1.bf16.xpose.msra.mxu0 0
        %1012 = vmatprep.subr.bf16.mxu0 0
        %1013 = vmatpush1.bf16.xpose.msra.mxu0 0
        %1014 = vmatprep.subr.bf16.mxu0 0
        %1015 = vmatpush1.bf16.xpose.msra.mxu0 0
        %1016 = vmatprep.subr.bf16.mxu0 0
        %1017 = vmatpush1.bf16.xpose.msra.mxu0 0
        %1018 = vmatprep.subr.bf16.mxu0 0
        %1019 = vmatpush1.bf16.xpose.msra.mxu0 0
        %1020 = vmatprep.subr.bf16.mxu0 0
        %1021 = vmatpush1.bf16.xpose.msra.mxu0 0
        %1022 = vmatprep.subr.bf16.mxu0 0
        %1023 = vmatpush1.bf16.xpose.msra.mxu0 0
        %1024 = vmatprep.subr.bf16.mxu0 0
        %1025 = vmatpush1.bf16.xpose.msra.mxu0 0
        %1026 = vmatprep.subr.bf16.mxu0 0
        %1027 = vmatpush1.bf16.xpose.msra.mxu0 0
        %1028 = vmatprep.subr.bf16.mxu0 0
        %1029 = vmatpush1.bf16.xpose.msra.mxu0 0
        %1030 = vmatprep.subr.bf16.mxu0 0
        %1031 = vmatpush1.bf16.xpose.msra.mxu0 0
        %1032 = vmatprep.subr.bf16.mxu0 0
        %1033 = vmatpush1.bf16.xpose.msra.mxu0 0
        %1034 = vmatprep.subr.bf16.mxu0 0
        %1035 = vmatpush1.bf16.xpose.msra.mxu0 0
        %1036 = vmatprep.mubr.bf16.mxu0 0
        %1037 = vmatmul.mubr.bf16.gmra.mrb[0].mxu0 %v999
        %v1038 = vpop.f32.mrb[0].mxu0
        %v1039 = vadd.f32 0.0, %v1038
        %v1040 = vpop.f32.mrb[0].mxu0
        %v1041 = vpop.f32.mrb[0].mxu0
        %v1042 = vpop.f32.mrb[0].mxu0
        %1043 = vdwg.mxu0
        %v1044 = vsel %vm875, %v1039, -inf
        %1045 = vmax.xlane.f32.xlu0 %v1044
        %v1046 = vpop.xlane.xlu0 %1045
        %v1047 = vsub.f32 %v1039, %v1046
        %v1048 = vmul.f32 %v1047, 1.442695
        %v1049 = vpow.pop %v1048
        %v1050 = vsel %vm875, %v1049, 0.0
        %1051 = vadd.xlane.f32.xlu0 %v1050
        %v1052 = vpop.xlane.xlu0 %1051
        %v1053 = vrcp.pop %v1052
        %v1054 = vmul.f32 %v1049, %v1053
        %v1055 = vpack.c.bf16 %v1054, %v1054
        %1057 = vrot.lane.b32.xlu0 %v874, 120
        %v1058 = vpop.permute.xlu0 %1057
        %v1060 = vsel %vm875, %v1055, 0
        %v1063 = vsel %vm937, %v1058, 0
        %1065 = vmatprep.subr.bf16.mxu0 0
        %1066 = vmatpush1.bf16.msra.mxu0 %v1063
        %1067 = vmatprep.subr.bf16.mxu0 0
        %1068 = vmatpush1.bf16.msra.mxu0 0
        %1069 = vmatprep.subr.bf16.mxu0 0
        %1070 = vmatpush1.bf16.msra.mxu0 0
        %1071 = vmatprep.subr.bf16.mxu0 0
        %1072 = vmatpush1.bf16.msra.mxu0 0
        %1073 = vmatprep.subr.bf16.mxu0 0
        %1074 = vmatpush1.bf16.msra.mxu0 0
        %1075 = vmatprep.subr.bf16.mxu0 0
        %1076 = vmatpush1.bf16.msra.mxu0 0
        %1077 = vmatprep.subr.bf16.mxu0 0
        %1078 = vmatpush1.bf16.msra.mxu0 0
        %1079 = vmatprep.subr.bf16.mxu0 0
        %1080 = vmatpush1.bf16.msra.mxu0 0
        %1081 = vmatprep.subr.bf16.mxu0 0
        %1082 = vmatpush1.bf16.msra.mxu0 0
        %1083 = vmatprep.subr.bf16.mxu0 0
        %1084 = vmatpush1.bf16.msra.mxu0 0
        %1085 = vmatprep.subr.bf16.mxu0 0
        %1086 = vmatpush1.bf16.msra.mxu0 0
        %1087 = vmatprep.subr.bf16.mxu0 0
        %1088 = vmatpush1.bf16.msra.mxu0 0
        %1089 = vmatprep.subr.bf16.mxu0 0
        %1090 = vmatpush1.bf16.msra.mxu0 0
        %1091 = vmatprep.subr.bf16.mxu0 0
        %1092 = vmatpush1.bf16.msra.mxu0 0
        %1093 = vmatprep.subr.bf16.mxu0 0
        %1094 = vmatpush1.bf16.msra.mxu0 0
        %1095 = vmatprep.subr.bf16.mxu0 0
        %1096 = vmatpush1.bf16.msra.mxu0 0
        %1097 = vmatprep.mubr.bf16.mxu0 0
        %1098 = vmatmul.mubr.bf16.gmra.mrb[0].mxu0 %v1060
        %v1099 = vpop.f32.mrb[0].mxu0
        %v1100 = vadd.f32 0.0, %v1099
        %v1101 = vpop.f32.mrb[0].mxu0
        %v1102 = vpop.f32.mrb[0].mxu0
        %v1103 = vpop.f32.mrb[0].mxu0
        %1104 = vdwg.mxu0
        %1105 = vst.msk [vmem:[#allocation3 + $0x2] sm:$0x3] %vm981, %v1100
        %1106 = vst.msk [vmem:[%s983] sm:$0xc] %vm984, %v1100
        %1107 = vst.msk [vmem:[%s986 - $0x2] sm:$0x30] %vm987, %v1100
        %1108 = vst.msk [vmem:[%s989 - $0x4] sm:$0xc0] %vm990, %v1100
        %1109 = vrot.lane.b32.xlu0 %v872, 112
        %v1110 = vpop.permute.xlu0 %1109
        %1111 = vrot.lane.b32.xlu0 %v873, 112
        %v1112 = vpop.permute.xlu0 %1111
        %v1114 = vsel %vm875, %v1110, 0
        %v1117 = vsel %vm875, %v1112, 0
        %1119 = vmatprep.subr.bf16.mxu0 0
        %1120 = vmatpush1.bf16.xpose.msra.mxu0 %v1117
        %1121 = vmatprep.subr.bf16.mxu0 0
        %1122 = vmatpush1.bf16.xpose.msra.mxu0 0
        %1123 = vmatprep.subr.bf16.mxu0 0
        %1124 = vmatpush1.bf16.xpose.msra.mxu0 0
        %1125 = vmatprep.subr.bf16.mxu0 0
        %1126 = vmatpush1.bf16.xpose.msra.mxu0 0
        %1127 = vmatprep.subr.bf16.mxu0 0
        %1128 = vmatpush1.bf16.xpose.msra.mxu0 0
        %1129 = vmatprep.subr.bf16.mxu0 0
        %1130 = vmatpush1.bf16.xpose.msra.mxu0 0
        %1131 = vmatprep.subr.bf16.mxu0 0
        %1132 = vmatpush1.bf16.xpose.msra.mxu0 0
        %1133 = vmatprep.subr.bf16.mxu0 0
        %1134 = vmatpush1.bf16.xpose.msra.mxu0 0
        %1135 = vmatprep.subr.bf16.mxu0 0
        %1136 = vmatpush1.bf16.xpose.msra.mxu0 0
        %1137 = vmatprep.subr.bf16.mxu0 0
        %1138 = vmatpush1.bf16.xpose.msra.mxu0 0
        %1139 = vmatprep.subr.bf16.mxu0 0
        %1140 = vmatpush1.bf16.xpose.msra.mxu0 0
        %1141 = vmatprep.subr.bf16.mxu0 0
        %1142 = vmatpush1.bf16.xpose.msra.mxu0 0
        %1143 = vmatprep.subr.bf16.mxu0 0
        %1144 = vmatpush1.bf16.xpose.msra.mxu0 0
        %1145 = vmatprep.subr.bf16.mxu0 0
        %1146 = vmatpush1.bf16.xpose.msra.mxu0 0
        %1147 = vmatprep.subr.bf16.mxu0 0
        %1148 = vmatpush1.bf16.xpose.msra.mxu0 0
        %1149 = vmatprep.subr.bf16.mxu0 0
        %1150 = vmatpush1.bf16.xpose.msra.mxu0 0
        %1151 = vmatprep.mubr.bf16.mxu0 0
        %1152 = vmatmul.mubr.bf16.gmra.mrb[0].mxu0 %v1114
        %v1153 = vpop.f32.mrb[0].mxu0
        %v1154 = vadd.f32 0.0, %v1153
        %v1155 = vpop.f32.mrb[0].mxu0
        %v1156 = vpop.f32.mrb[0].mxu0
        %v1157 = vpop.f32.mrb[0].mxu0
        %1158 = vdwg.mxu0
        %v1159 = vsel %vm875, %v1154, -inf
        %1160 = vmax.xlane.f32.xlu0 %v1159
        %v1161 = vpop.xlane.xlu0 %1160
        %v1162 = vsub.f32 %v1154, %v1161
        %v1163 = vmul.f32 %v1162, 1.442695
        %v1164 = vpow.pop %v1163
        %v1165 = vsel %vm875, %v1164, 0.0
        %1166 = vadd.xlane.f32.xlu0 %v1165
        %v1167 = vpop.xlane.xlu0 %1166
        %v1168 = vrcp.pop %v1167
        %v1169 = vmul.f32 %v1164, %v1168
        %v1170 = vpack.c.bf16 %v1169, %v1169
        %1171 = vrot.lane.b32.xlu0 %v874, 112
        %v1172 = vpop.permute.xlu0 %1171
        %v1174 = vsel %vm875, %v1170, 0
        %v1177 = vsel %vm937, %v1172, 0
        %1179 = vmatprep.subr.bf16.mxu0 0
        %1180 = vmatpush1.bf16.msra.mxu0 %v1177
        %1181 = vmatprep.subr.bf16.mxu0 0
        %1182 = vmatpush1.bf16.msra.mxu0 0
        %1183 = vmatprep.subr.bf16.mxu0 0
        %1184 = vmatpush1.bf16.msra.mxu0 0
        %1185 = vmatprep.subr.bf16.mxu0 0
        %1186 = vmatpush1.bf16.msra.mxu0 0
        %1187 = vmatprep.subr.bf16.mxu0 0
        %1188 = vmatpush1.bf16.msra.mxu0 0
        %1189 = vmatprep.subr.bf16.mxu0 0
        %1190 = vmatpush1.bf16.msra.mxu0 0
        %1191 = vmatprep.subr.bf16.mxu0 0
        %1192 = vmatpush1.bf16.msra.mxu0 0
        %1193 = vmatprep.subr.bf16.mxu0 0
        %1194 = vmatpush1.bf16.msra.mxu0 0
        %1195 = vmatprep.subr.bf16.mxu0 0
        %1196 = vmatpush1.bf16.msra.mxu0 0
        %1197 = vmatprep.subr.bf16.mxu0 0
        %1198 = vmatpush1.bf16.msra.mxu0 0
        %1199 = vmatprep.subr.bf16.mxu0 0
        %1200 = vmatpush1.bf16.msra.mxu0 0
        %1201 = vmatprep.subr.bf16.mxu0 0
        %1202 = vmatpush1.bf16.msra.mxu0 0
        %1203 = vmatprep.subr.bf16.mxu0 0
        %1204 = vmatpush1.bf16.msra.mxu0 0
        %1205 = vmatprep.subr.bf16.mxu0 0
        %1206 = vmatpush1.bf16.msra.mxu0 0
        %1207 = vmatprep.subr.bf16.mxu0 0
        %1208 = vmatpush1.bf16.msra.mxu0 0
        %1209 = vmatprep.subr.bf16.mxu0 0
        %1210 = vmatpush1.bf16.msra.mxu0 0
        %1211 = vmatprep.mubr.bf16.mxu0 0
        %1212 = vmatmul.mubr.bf16.gmra.mrb[0].mxu0 %v1174
        %v1213 = vpop.f32.mrb[0].mxu0
        %v1214 = vadd.f32 0.0, %v1213
        %v1215 = vpop.f32.mrb[0].mxu0
        %v1216 = vpop.f32.mrb[0].mxu0
        %v1217 = vpop.f32.mrb[0].mxu0
        %1218 = vdwg.mxu0
        %1219 = vst.msk [vmem:[#allocation3 + $0x4] sm:$0x3] %vm981, %v1214
        %1220 = vst.msk [vmem:[%s983 + $0x2] sm:$0xc] %vm984, %v1214
        %1221 = vst.msk [vmem:[%s986] sm:$0x30] %vm987, %v1214
        %1222 = vst.msk [vmem:[%s989 - $0x2] sm:$0xc0] %vm990, %v1214
        %1223 = vrot.lane.b32.xlu0 %v872, 104
        %v1224 = vpop.permute.xlu0 %1223
        %1225 = vrot.lane.b32.xlu0 %v873, 104
        %v1226 = vpop.permute.xlu0 %1225
        %v1228 = vsel %vm875, %v1224, 0
        %v1231 = vsel %vm875, %v1226, 0
        %1233 = vmatprep.subr.bf16.mxu0 0
        %1234 = vmatpush1.bf16.xpose.msra.mxu0 %v1231
        %1235 = vmatprep.subr.bf16.mxu0 0
        %1236 = vmatpush1.bf16.xpose.msra.mxu0 0
        %1237 = vmatprep.subr.bf16.mxu0 0
        %1238 = vmatpush1.bf16.xpose.msra.mxu0 0
        %1239 = vmatprep.subr.bf16.mxu0 0
        %1240 = vmatpush1.bf16.xpose.msra.mxu0 0
        %1241 = vmatprep.subr.bf16.mxu0 0
        %1242 = vmatpush1.bf16.xpose.msra.mxu0 0
        %1243 = vmatprep.subr.bf16.mxu0 0
        %1244 = vmatpush1.bf16.xpose.msra.mxu0 0
        %1245 = vmatprep.subr.bf16.mxu0 0
        %1246 = vmatpush1.bf16.xpose.msra.mxu0 0
        %1247 = vmatprep.subr.bf16.mxu0 0
        %1248 = vmatpush1.bf16.xpose.msra.mxu0 0
        %1249 = vmatprep.subr.bf16.mxu0 0
        %1250 = vmatpush1.bf16.xpose.msra.mxu0 0
        %1251 = vmatprep.subr.bf16.mxu0 0
        %1252 = vmatpush1.bf16.xpose.msra.mxu0 0
        %1253 = vmatprep.subr.bf16.mxu0 0
        %1254 = vmatpush1.bf16.xpose.msra.mxu0 0
        %1255 = vmatprep.subr.bf16.mxu0 0
        %1256 = vmatpush1.bf16.xpose.msra.mxu0 0
        %1257 = vmatprep.subr.bf16.mxu0 0
        %1258 = vmatpush1.bf16.xpose.msra.mxu0 0
        %1259 = vmatprep.subr.bf16.mxu0 0
        %1260 = vmatpush1.bf16.xpose.msra.mxu0 0
        %1261 = vmatprep.subr.bf16.mxu0 0
        %1262 = vmatpush1.bf16.xpose.msra.mxu0 0
        %1263 = vmatprep.subr.bf16.mxu0 0
        %1264 = vmatpush1.bf16.xpose.msra.mxu0 0
        %1265 = vmatprep.mubr.bf16.mxu0 0
        %1266 = vmatmul.mubr.bf16.gmra.mrb[0].mxu0 %v1228
        %v1267 = vpop.f32.mrb[0].mxu0
        %v1268 = vadd.f32 0.0, %v1267
        %v1269 = vpop.f32.mrb[0].mxu0
        %v1270 = vpop.f32.mrb[0].mxu0
        %v1271 = vpop.f32.mrb[0].mxu0
        %1272 = vdwg.mxu0
        %v1273 = vsel %vm875, %v1268, -inf
        %1274 = vmax.xlane.f32.xlu0 %v1273
        %v1275 = vpop.xlane.xlu0 %1274
        %v1276 = vsub.f32 %v1268, %v1275
        %v1277 = vmul.f32 %v1276, 1.442695
        %v1278 = vpow.pop %v1277
        %v1279 = vsel %vm875, %v1278, 0.0
        %1280 = vadd.xlane.f32.xlu0 %v1279
        %v1281 = vpop.xlane.xlu0 %1280
        %v1282 = vrcp.pop %v1281
        %v1283 = vmul.f32 %v1278, %v1282
        %v1284 = vpack.c.bf16 %v1283, %v1283
        %1285 = vrot.lane.b32.xlu0 %v874, 104
        %v1286 = vpop.permute.xlu0 %1285
        %v1288 = vsel %vm875, %v1284, 0
        %v1291 = vsel %vm937, %v1286, 0
        %1293 = vmatprep.subr.bf16.mxu0 0
        %1294 = vmatpush1.bf16.msra.mxu0 %v1291
        %1295 = vmatprep.subr.bf16.mxu0 0
        %1296 = vmatpush1.bf16.msra.mxu0 0
        %1297 = vmatprep.subr.bf16.mxu0 0
        %1298 = vmatpush1.bf16.msra.mxu0 0
        %1299 = vmatprep.subr.bf16.mxu0 0
        %1300 = vmatpush1.bf16.msra.mxu0 0
        %1301 = vmatprep.subr.bf16.mxu0 0
        %1302 = vmatpush1.bf16.msra.mxu0 0
        %1303 = vmatprep.subr.bf16.mxu0 0
        %1304 = vmatpush1.bf16.msra.mxu0 0
        %1305 = vmatprep.subr.bf16.mxu0 0
        %1306 = vmatpush1.bf16.msra.mxu0 0
        %1307 = vmatprep.subr.bf16.mxu0 0
        %1308 = vmatpush1.bf16.msra.mxu0 0
        %1309 = vmatprep.subr.bf16.mxu0 0
        %1310 = vmatpush1.bf16.msra.mxu0 0
        %1311 = vmatprep.subr.bf16.mxu0 0
        %1312 = vmatpush1.bf16.msra.mxu0 0
        %1313 = vmatprep.subr.bf16.mxu0 0
        %1314 = vmatpush1.bf16.msra.mxu0 0
        %1315 = vmatprep.subr.bf16.mxu0 0
        %1316 = vmatpush1.bf16.msra.mxu0 0
        %1317 = vmatprep.subr.bf16.mxu0 0
        %1318 = vmatpush1.bf16.msra.mxu0 0
        %1319 = vmatprep.subr.bf16.mxu0 0
        %1320 = vmatpush1.bf16.msra.mxu0 0
        %1321 = vmatprep.subr.bf16.mxu0 0
        %1322 = vmatpush1.bf16.msra.mxu0 0
        %1323 = vmatprep.subr.bf16.mxu0 0
        %1324 = vmatpush1.bf16.msra.mxu0 0
        %1325 = vmatprep.mubr.bf16.mxu0 0
        %1326 = vmatmul.mubr.bf16.gmra.mrb[0].mxu0 %v1288
        %v1327 = vpop.f32.mrb[0].mxu0
        %v1328 = vadd.f32 0.0, %v1327
        %v1329 = vpop.f32.mrb[0].mxu0
        %v1330 = vpop.f32.mrb[0].mxu0
        %v1331 = vpop.f32.mrb[0].mxu0
        %1332 = vdwg.mxu0
        %1333 = vst.msk [vmem:[#allocation3 + $0x6] sm:$0x3] %vm981, %v1328
        %1334 = vst.msk [vmem:[%s983 + $0x4] sm:$0xc] %vm984, %v1328
        %1335 = vst.msk [vmem:[%s986 + $0x2] sm:$0x30] %vm987, %v1328
        %1336 = vst.msk [vmem:[%s989] sm:$0xc0] %vm990, %v1328
        %v1337 = vrot.slane %v872, 4
        %v1338 = vrot.slane %v873, 4
        %v1340 = vsel %vm875, %v1337, 0
        %v1343 = vsel %vm875, %v1338, 0
        %1345 = vmatprep.subr.bf16.mxu0 0
        %1346 = vmatpush1.bf16.xpose.msra.mxu0 %v1343
        %1347 = vmatprep.subr.bf16.mxu0 0
        %1348 = vmatpush1.bf16.xpose.msra.mxu0 0
        %1349 = vmatprep.subr.bf16.mxu0 0
        %1350 = vmatpush1.bf16.xpose.msra.mxu0 0
        %1351 = vmatprep.subr.bf16.mxu0 0
        %1352 = vmatpush1.bf16.xpose.msra.mxu0 0
        %1353 = vmatprep.subr.bf16.mxu0 0
        %1354 = vmatpush1.bf16.xpose.msra.mxu0 0
        %1355 = vmatprep.subr.bf16.mxu0 0
        %1356 = vmatpush1.bf16.xpose.msra.mxu0 0
        %1357 = vmatprep.subr.bf16.mxu0 0
        %1358 = vmatpush1.bf16.xpose.msra.mxu0 0
        %1359 = vmatprep.subr.bf16.mxu0 0
        %1360 = vmatpush1.bf16.xpose.msra.mxu0 0
        %1361 = vmatprep.subr.bf16.mxu0 0
        %1362 = vmatpush1.bf16.xpose.msra.mxu0 0
        %1363 = vmatprep.subr.bf16.mxu0 0
        %1364 = vmatpush1.bf16.xpose.msra.mxu0 0
        %1365 = vmatprep.subr.bf16.mxu0 0
        %1366 = vmatpush1.bf16.xpose.msra.mxu0 0
        %1367 = vmatprep.subr.bf16.mxu0 0
        %1368 = vmatpush1.bf16.xpose.msra.mxu0 0
        %1369 = vmatprep.subr.bf16.mxu0 0
        %1370 = vmatpush1.bf16.xpose.msra.mxu0 0
        %1371 = vmatprep.subr.bf16.mxu0 0
        %1372 = vmatpush1.bf16.xpose.msra.mxu0 0
        %1373 = vmatprep.subr.bf16.mxu0 0
        %1374 = vmatpush1.bf16.xpose.msra.mxu0 0
        %1375 = vmatprep.subr.bf16.mxu0 0
        %1376 = vmatpush1.bf16.xpose.msra.mxu0 0
        %1377 = vmatprep.mubr.bf16.mxu0 0
        %1378 = vmatmul.mubr.bf16.gmra.mrb[0].mxu0 %v1340
        %v1379 = vpop.f32.mrb[0].mxu0
        %v1380 = vadd.f32 0.0, %v1379
        %v1381 = vpop.f32.mrb[0].mxu0
        %v1382 = vpop.f32.mrb[0].mxu0
        %v1383 = vpop.f32.mrb[0].mxu0
        %1384 = vdwg.mxu0
        %v1385 = vsel %vm875, %v1380, -inf
        %1386 = vmax.xlane.f32.xlu0 %v1385
        %v1387 = vpop.xlane.xlu0 %1386
        %v1388 = vsub.f32 %v1380, %v1387
        %v1389 = vmul.f32 %v1388, 1.442695
        %v1390 = vpow.pop %v1389
        %v1391 = vsel %vm875, %v1390, 0.0
        %1392 = vadd.xlane.f32.xlu0 %v1391
        %v1393 = vpop.xlane.xlu0 %1392
        %v1394 = vrcp.pop %v1393
        %v1395 = vmul.f32 %v1390, %v1394
        %v1396 = vpack.c.bf16 %v1395, %v1395
        %v1397 = vrot.slane %v874, 4
        %v1399 = vsel %vm875, %v1396, 0
        %v1402 = vsel %vm937, %v1397, 0
        %1404 = vmatprep.subr.bf16.mxu0 0
        %1405 = vmatpush1.bf16.msra.mxu0 %v1402
        %1406 = vmatprep.subr.bf16.mxu0 0
        %1407 = vmatpush1.bf16.msra.mxu0 0
        %1408 = vmatprep.subr.bf16.mxu0 0
        %1409 = vmatpush1.bf16.msra.mxu0 0
        %1410 = vmatprep.subr.bf16.mxu0 0
        %1411 = vmatpush1.bf16.msra.mxu0 0
        %1412 = vmatprep.subr.bf16.mxu0 0
        %1413 = vmatpush1.bf16.msra.mxu0 0
        %1414 = vmatprep.subr.bf16.mxu0 0
        %1415 = vmatpush1.bf16.msra.mxu0 0
        %1416 = vmatprep.subr.bf16.mxu0 0
        %1417 = vmatpush1.bf16.msra.mxu0 0
        %1418 = vmatprep.subr.bf16.mxu0 0
        %1419 = vmatpush1.bf16.msra.mxu0 0
        %1420 = vmatprep.subr.bf16.mxu0 0
        %1421 = vmatpush1.bf16.msra.mxu0 0
        %1422 = vmatprep.subr.bf16.mxu0 0
        %1423 = vmatpush1.bf16.msra.mxu0 0
        %1424 = vmatprep.subr.bf16.mxu0 0
        %1425 = vmatpush1.bf16.msra.mxu0 0
        %1426 = vmatprep.subr.bf16.mxu0 0
        %1427 = vmatpush1.bf16.msra.mxu0 0
        %1428 = vmatprep.subr.bf16.mxu0 0
        %1429 = vmatpush1.bf16.msra.mxu0 0
        %1430 = vmatprep.subr.bf16.mxu0 0
        %1431 = vmatpush1.bf16.msra.mxu0 0
        %1432 = vmatprep.subr.bf16.mxu0 0
        %1433 = vmatpush1.bf16.msra.mxu0 0
        %1434 = vmatprep.subr.bf16.mxu0 0
        %1435 = vmatpush1.bf16.msra.mxu0 0
        %1436 = vmatprep.mubr.bf16.mxu0 0
        %1437 = vmatmul.mubr.bf16.gmra.mrb[0].mxu0 %v1399
        %v1438 = vpop.f32.mrb[0].mxu0
        %v1439 = vadd.f32 0.0, %v1438
        %v1440 = vpop.f32.mrb[0].mxu0
        %v1441 = vpop.f32.mrb[0].mxu0
        %v1442 = vpop.f32.mrb[0].mxu0
        %1443 = vdwg.mxu0
        %1444 = vst.msk [vmem:[#allocation3 + $0x8] sm:$0x3] %vm981, %v1439
        %1445 = vst.msk [vmem:[%s983 + $0x6] sm:$0xc] %vm984, %v1439
        %1446 = vst.msk [vmem:[%s986 + $0x4] sm:$0x30] %vm987, %v1439
        %1447 = vst.msk [vmem:[%s989 + $0x2] sm:$0xc0] %vm990, %v1439
        %1448 = vrot.lane.b32.xlu0 %v1337, 120
        %v1449 = vpop.permute.xlu0 %1448
        %1450 = vrot.lane.b32.xlu0 %v1338, 120
        %v1451 = vpop.permute.xlu0 %1450
        %v1453 = vsel %vm875, %v1449, 0
        %v1456 = vsel %vm875, %v1451, 0
        %1458 = vmatprep.subr.bf16.mxu0 0
        %1459 = vmatpush1.bf16.xpose.msra.mxu0 %v1456
        %1460 = vmatprep.subr.bf16.mxu0 0
        %1461 = vmatpush1.bf16.xpose.msra.mxu0 0
        %1462 = vmatprep.subr.bf16.mxu0 0
        %1463 = vmatpush1.bf16.xpose.msra.mxu0 0
        %1464 = vmatprep.subr.bf16.mxu0 0
        %1465 = vmatpush1.bf16.xpose.msra.mxu0 0
        %1466 = vmatprep.subr.bf16.mxu0 0
        %1467 = vmatpush1.bf16.xpose.msra.mxu0 0
        %1468 = vmatprep.subr.bf16.mxu0 0
        %1469 = vmatpush1.bf16.xpose.msra.mxu0 0
        %1470 = vmatprep.subr.bf16.mxu0 0
        %1471 = vmatpush1.bf16.xpose.msra.mxu0 0
        %1472 = vmatprep.subr.bf16.mxu0 0
        %1473 = vmatpush1.bf16.xpose.msra.mxu0 0
        %1474 = vmatprep.subr.bf16.mxu0 0
        %1475 = vmatpush1.bf16.xpose.msra.mxu0 0
        %1476 = vmatprep.subr.bf16.mxu0 0
        %1477 = vmatpush1.bf16.xpose.msra.mxu0 0
        %1478 = vmatprep.subr.bf16.mxu0 0
        %1479 = vmatpush1.bf16.xpose.msra.mxu0 0
        %1480 = vmatprep.subr.bf16.mxu0 0
        %1481 = vmatpush1.bf16.xpose.msra.mxu0 0
        %1482 = vmatprep.subr.bf16.mxu0 0
        %1483 = vmatpush1.bf16.xpose.msra.mxu0 0
        %1484 = vmatprep.subr.bf16.mxu0 0
        %1485 = vmatpush1.bf16.xpose.msra.mxu0 0
        %1486 = vmatprep.subr.bf16.mxu0 0
        %1487 = vmatpush1.bf16.xpose.msra.mxu0 0
        %1488 = vmatprep.subr.bf16.mxu0 0
        %1489 = vmatpush1.bf16.xpose.msra.mxu0 0
        %1490 = vmatprep.mubr.bf16.mxu0 0
        %1491 = vmatmul.mubr.bf16.gmra.mrb[0].mxu0 %v1453
        %v1492 = vpop.f32.mrb[0].mxu0
        %v1493 = vadd.f32 0.0, %v1492
        %v1494 = vpop.f32.mrb[0].mxu0
        %v1495 = vpop.f32.mrb[0].mxu0
        %v1496 = vpop.f32.mrb[0].mxu0
        %1497 = vdwg.mxu0
        %v1498 = vsel %vm875, %v1493, -inf
        %1499 = vmax.xlane.f32.xlu0 %v1498
        %v1500 = vpop.xlane.xlu0 %1499
        %v1501 = vsub.f32 %v1493, %v1500
        %v1502 = vmul.f32 %v1501, 1.442695
        %v1503 = vpow.pop %v1502
        %v1504 = vsel %vm875, %v1503, 0.0
        %1505 = vadd.xlane.f32.xlu0 %v1504
        %v1506 = vpop.xlane.xlu0 %1505
        %v1507 = vrcp.pop %v1506
        %v1508 = vmul.f32 %v1503, %v1507
        %v1509 = vpack.c.bf16 %v1508, %v1508
        %1510 = vrot.lane.b32.xlu0 %v1397, 120
        %v1511 = vpop.permute.xlu0 %1510
        %v1513 = vsel %vm875, %v1509, 0
        %v1516 = vsel %vm937, %v1511, 0
        %1518 = vmatprep.subr.bf16.mxu0 0
        %1519 = vmatpush1.bf16.msra.mxu0 %v1516
        %1520 = vmatprep.subr.bf16.mxu0 0
        %1521 = vmatpush1.bf16.msra.mxu0 0
        %1522 = vmatprep.subr.bf16.mxu0 0
        %1523 = vmatpush1.bf16.msra.mxu0 0
        %1524 = vmatprep.subr.bf16.mxu0 0
        %1525 = vmatpush1.bf16.msra.mxu0 0
        %1526 = vmatprep.subr.bf16.mxu0 0
        %1527 = vmatpush1.bf16.msra.mxu0 0
        %1528 = vmatprep.subr.bf16.mxu0 0
        %1529 = vmatpush1.bf16.msra.mxu0 0
        %1530 = vmatprep.subr.bf16.mxu0 0
        %1531 = vmatpush1.bf16.msra.mxu0 0
        %1532 = vmatprep.subr.bf16.mxu0 0
        %1533 = vmatpush1.bf16.msra.mxu0 0
        %1534 = vmatprep.subr.bf16.mxu0 0
        %1535 = vmatpush1.bf16.msra.mxu0 0
        %1536 = vmatprep.subr.bf16.mxu0 0
        %1537 = vmatpush1.bf16.msra.mxu0 0
        %1538 = vmatprep.subr.bf16.mxu0 0
        %1539 = vmatpush1.bf16.msra.mxu0 0
        %1540 = vmatprep.subr.bf16.mxu0 0
        %1541 = vmatpush1.bf16.msra.mxu0 0
        %1542 = vmatprep.subr.bf16.mxu0 0
        %1543 = vmatpush1.bf16.msra.mxu0 0
        %1544 = vmatprep.subr.bf16.mxu0 0
        %1545 = vmatpush1.bf16.msra.mxu0 0
        %1546 = vmatprep.subr.bf16.mxu0 0
        %1547 = vmatpush1.bf16.msra.mxu0 0
        %1548 = vmatprep.subr.bf16.mxu0 0
        %1549 = vmatpush1.bf16.msra.mxu0 0
        %1550 = vmatprep.mubr.bf16.mxu0 0
        %1551 = vmatmul.mubr.bf16.gmra.mrb[0].mxu0 %v1513
        %v1552 = vpop.f32.mrb[0].mxu0
        %v1553 = vadd.f32 0.0, %v1552
        %v1554 = vpop.f32.mrb[0].mxu0
        %v1555 = vpop.f32.mrb[0].mxu0
        %v1556 = vpop.f32.mrb[0].mxu0
        %1557 = vdwg.mxu0
        %1558 = vst.msk [vmem:[#allocation3 + $0xa] sm:$0x3] %vm981, %v1553
        %1559 = vst.msk [vmem:[%s983 + $0x8] sm:$0xc] %vm984, %v1553
        %1560 = vst.msk [vmem:[%s986 + $0x6] sm:$0x30] %vm987, %v1553
        %1561 = vst.msk [vmem:[%s989 + $0x4] sm:$0xc0] %vm990, %v1553
        %1562 = vrot.lane.b32.xlu0 %v1337, 112
        %v1563 = vpop.permute.xlu0 %1562
        %1564 = vrot.lane.b32.xlu0 %v1338, 112
        %v1565 = vpop.permute.xlu0 %1564
        %v1567 = vsel %vm875, %v1563, 0
        %v1570 = vsel %vm875, %v1565, 0
        %1572 = vmatprep.subr.bf16.mxu0 0
        %1573 = vmatpush1.bf16.xpose.msra.mxu0 %v1570
        %1574 = vmatprep.subr.bf16.mxu0 0
        %1575 = vmatpush1.bf16.xpose.msra.mxu0 0
        %1576 = vmatprep.subr.bf16.mxu0 0
        %1577 = vmatpush1.bf16.xpose.msra.mxu0 0
        %1578 = vmatprep.subr.bf16.mxu0 0
        %1579 = vmatpush1.bf16.xpose.msra.mxu0 0
        %1580 = vmatprep.subr.bf16.mxu0 0
        %1581 = vmatpush1.bf16.xpose.msra.mxu0 0
        %1582 = vmatprep.subr.bf16.mxu0 0
        %1583 = vmatpush1.bf16.xpose.msra.mxu0 0
        %1584 = vmatprep.subr.bf16.mxu0 0
        %1585 = vmatpush1.bf16.xpose.msra.mxu0 0
        %1586 = vmatprep.subr.bf16.mxu0 0
        %1587 = vmatpush1.bf16.xpose.msra.mxu0 0
        %1588 = vmatprep.subr.bf16.mxu0 0
        %1589 = vmatpush1.bf16.xpose.msra.mxu0 0
        %1590 = vmatprep.subr.bf16.mxu0 0
        %1591 = vmatpush1.bf16.xpose.msra.mxu0 0
        %1592 = vmatprep.subr.bf16.mxu0 0
        %1593 = vmatpush1.bf16.xpose.msra.mxu0 0
        %1594 = vmatprep.subr.bf16.mxu0 0
        %1595 = vmatpush1.bf16.xpose.msra.mxu0 0
        %1596 = vmatprep.subr.bf16.mxu0 0
        %1597 = vmatpush1.bf16.xpose.msra.mxu0 0
        %1598 = vmatprep.subr.bf16.mxu0 0
        %1599 = vmatpush1.bf16.xpose.msra.mxu0 0
        %1600 = vmatprep.subr.bf16.mxu0 0
        %1601 = vmatpush1.bf16.xpose.msra.mxu0 0
        %1602 = vmatprep.subr.bf16.mxu0 0
        %1603 = vmatpush1.bf16.xpose.msra.mxu0 0
        %1604 = vmatprep.mubr.bf16.mxu0 0
        %1605 = vmatmul.mubr.bf16.gmra.mrb[0].mxu0 %v1567
        %v1606 = vpop.f32.mrb[0].mxu0
        %v1607 = vadd.f32 0.0, %v1606
        %v1608 = vpop.f32.mrb[0].mxu0
        %v1609 = vpop.f32.mrb[0].mxu0
        %v1610 = vpop.f32.mrb[0].mxu0
        %1611 = vdwg.mxu0
        %v1612 = vsel %vm875, %v1607, -inf
        %1613 = vmax.xlane.f32.xlu0 %v1612
        %v1614 = vpop.xlane.xlu0 %1613
        %v1615 = vsub.f32 %v1607, %v1614
        %v1616 = vmul.f32 %v1615, 1.442695
        %v1617 = vpow.pop %v1616
        %v1618 = vsel %vm875, %v1617, 0.0
        %1619 = vadd.xlane.f32.xlu0 %v1618
        %v1620 = vpop.xlane.xlu0 %1619
        %v1621 = vrcp.pop %v1620
        %v1622 = vmul.f32 %v1617, %v1621
        %v1623 = vpack.c.bf16 %v1622, %v1622
        %1624 = vrot.lane.b32.xlu0 %v1397, 112
        %v1625 = vpop.permute.xlu0 %1624
        %v1627 = vsel %vm875, %v1623, 0
        %v1630 = vsel %vm937, %v1625, 0
        %1632 = vmatprep.subr.bf16.mxu0 0
        %1633 = vmatpush1.bf16.msra.mxu0 %v1630
        %1634 = vmatprep.subr.bf16.mxu0 0
        %1635 = vmatpush1.bf16.msra.mxu0 0
        %1636 = vmatprep.subr.bf16.mxu0 0
        %1637 = vmatpush1.bf16.msra.mxu0 0
        %1638 = vmatprep.subr.bf16.mxu0 0
        %1639 = vmatpush1.bf16.msra.mxu0 0
        %1640 = vmatprep.subr.bf16.mxu0 0
        %1641 = vmatpush1.bf16.msra.mxu0 0
        %1642 = vmatprep.subr.bf16.mxu0 0
        %1643 = vmatpush1.bf16.msra.mxu0 0
        %1644 = vmatprep.subr.bf16.mxu0 0
        %1645 = vmatpush1.bf16.msra.mxu0 0
        %1646 = vmatprep.subr.bf16.mxu0 0
        %1647 = vmatpush1.bf16.msra.mxu0 0
        %1648 = vmatprep.subr.bf16.mxu0 0
        %1649 = vmatpush1.bf16.msra.mxu0 0
        %1650 = vmatprep.subr.bf16.mxu0 0
        %1651 = vmatpush1.bf16.msra.mxu0 0
        %1652 = vmatprep.subr.bf16.mxu0 0
        %1653 = vmatpush1.bf16.msra.mxu0 0
        %1654 = vmatprep.subr.bf16.mxu0 0
        %1655 = vmatpush1.bf16.msra.mxu0 0
        %1656 = vmatprep.subr.bf16.mxu0 0
        %1657 = vmatpush1.bf16.msra.mxu0 0
        %1658 = vmatprep.subr.bf16.mxu0 0
        %1659 = vmatpush1.bf16.msra.mxu0 0
        %1660 = vmatprep.subr.bf16.mxu0 0
        %1661 = vmatpush1.bf16.msra.mxu0 0
        %1662 = vmatprep.subr.bf16.mxu0 0
        %1663 = vmatpush1.bf16.msra.mxu0 0
        %1664 = vmatprep.mubr.bf16.mxu0 0
        %1665 = vmatmul.mubr.bf16.gmra.mrb[0].mxu0 %v1627
        %v1666 = vpop.f32.mrb[0].mxu0
        %v1667 = vadd.f32 0.0, %v1666
        %v1668 = vpop.f32.mrb[0].mxu0
        %v1669 = vpop.f32.mrb[0].mxu0
        %v1670 = vpop.f32.mrb[0].mxu0
        %1671 = vdwg.mxu0
        %1672 = vst.msk [vmem:[#allocation3 + $0xc] sm:$0x3] %vm981, %v1667
        %1673 = vst.msk [vmem:[%s983 + $0xa] sm:$0xc] %vm984, %v1667
        %1674 = vst.msk [vmem:[%s986 + $0x8] sm:$0x30] %vm987, %v1667
        %1675 = vst.msk [vmem:[%s989 + $0x6] sm:$0xc0] %vm990, %v1667
        %1676 = vrot.lane.b32.xlu0 %v1337, 104
        %v1677 = vpop.permute.xlu0 %1676
        %1678 = vrot.lane.b32.xlu0 %v1338, 104
        %v1679 = vpop.permute.xlu0 %1678
        %v1681 = vsel %vm875, %v1677, 0
        %v1684 = vsel %vm875, %v1679, 0
        %1686 = vmatprep.subr.bf16.mxu0 0
        %1687 = vmatpush1.bf16.xpose.msra.mxu0 %v1684
        %1688 = vmatprep.subr.bf16.mxu0 0
        %1689 = vmatpush1.bf16.xpose.msra.mxu0 0
        %1690 = vmatprep.subr.bf16.mxu0 0
        %1691 = vmatpush1.bf16.xpose.msra.mxu0 0
        %1692 = vmatprep.subr.bf16.mxu0 0
        %1693 = vmatpush1.bf16.xpose.msra.mxu0 0
        %1694 = vmatprep.subr.bf16.mxu0 0
        %1695 = vmatpush1.bf16.xpose.msra.mxu0 0
        %1696 = vmatprep.subr.bf16.mxu0 0
        %1697 = vmatpush1.bf16.xpose.msra.mxu0 0
        %1698 = vmatprep.subr.bf16.mxu0 0
        %1699 = vmatpush1.bf16.xpose.msra.mxu0 0
        %1700 = vmatprep.subr.bf16.mxu0 0
        %1701 = vmatpush1.bf16.xpose.msra.mxu0 0
        %1702 = vmatprep.subr.bf16.mxu0 0
        %1703 = vmatpush1.bf16.xpose.msra.mxu0 0
        %1704 = vmatprep.subr.bf16.mxu0 0
        %1705 = vmatpush1.bf16.xpose.msra.mxu0 0
        %1706 = vmatprep.subr.bf16.mxu0 0
        %1707 = vmatpush1.bf16.xpose.msra.mxu0 0
        %1708 = vmatprep.subr.bf16.mxu0 0
        %1709 = vmatpush1.bf16.xpose.msra.mxu0 0
        %1710 = vmatprep.subr.bf16.mxu0 0
        %1711 = vmatpush1.bf16.xpose.msra.mxu0 0
        %1712 = vmatprep.subr.bf16.mxu0 0
        %1713 = vmatpush1.bf16.xpose.msra.mxu0 0
        %1714 = vmatprep.subr.bf16.mxu0 0
        %1715 = vmatpush1.bf16.xpose.msra.mxu0 0
        %1716 = vmatprep.subr.bf16.mxu0 0
        %1717 = vmatpush1.bf16.xpose.msra.mxu0 0
        %1718 = vmatprep.mubr.bf16.mxu0 0
        %1719 = vmatmul.mubr.bf16.gmra.mrb[0].mxu0 %v1681
        %v1720 = vpop.f32.mrb[0].mxu0
        %v1721 = vadd.f32 0.0, %v1720
        %v1722 = vpop.f32.mrb[0].mxu0
        %v1723 = vpop.f32.mrb[0].mxu0
        %v1724 = vpop.f32.mrb[0].mxu0
        %1725 = vdwg.mxu0
        %v1726 = vsel %vm875, %v1721, -inf
        %1727 = vmax.xlane.f32.xlu0 %v1726
        %v1728 = vpop.xlane.xlu0 %1727
        %v1729 = vsub.f32 %v1721, %v1728
        %v1730 = vmul.f32 %v1729, 1.442695
        %v1731 = vpow.pop %v1730
        %v1732 = vsel %vm875, %v1731, 0.0
        %1733 = vadd.xlane.f32.xlu0 %v1732
        %v1734 = vpop.xlane.xlu0 %1733
        %v1735 = vrcp.pop %v1734
        %v1736 = vmul.f32 %v1731, %v1735
        %v1737 = vpack.c.bf16 %v1736, %v1736
        %1738 = vrot.lane.b32.xlu0 %v1397, 104
        %v1739 = vpop.permute.xlu0 %1738
        %v1741 = vsel %vm875, %v1737, 0
        %v1744 = vsel %vm937, %v1739, 0
        %1746 = vmatprep.subr.bf16.mxu0 0
        %1747 = vmatpush1.bf16.msra.mxu0 %v1744
        %1748 = vmatprep.subr.bf16.mxu0 0
        %1749 = vmatpush1.bf16.msra.mxu0 0
        %1750 = vmatprep.subr.bf16.mxu0 0
        %1751 = vmatpush1.bf16.msra.mxu0 0
        %1752 = vmatprep.subr.bf16.mxu0 0
        %1753 = vmatpush1.bf16.msra.mxu0 0
        %1754 = vmatprep.subr.bf16.mxu0 0
        %1755 = vmatpush1.bf16.msra.mxu0 0
        %1756 = vmatprep.subr.bf16.mxu0 0
        %1757 = vmatpush1.bf16.msra.mxu0 0
        %1758 = vmatprep.subr.bf16.mxu0 0
        %1759 = vmatpush1.bf16.msra.mxu0 0
        %1760 = vmatprep.subr.bf16.mxu0 0
        %1761 = vmatpush1.bf16.msra.mxu0 0
        %1762 = vmatprep.subr.bf16.mxu0 0
        %1763 = vmatpush1.bf16.msra.mxu0 0
        %1764 = vmatprep.subr.bf16.mxu0 0
        %1765 = vmatpush1.bf16.msra.mxu0 0
        %1766 = vmatprep.subr.bf16.mxu0 0
        %1767 = vmatpush1.bf16.msra.mxu0 0
        %1768 = vmatprep.subr.bf16.mxu0 0
        %1769 = vmatpush1.bf16.msra.mxu0 0
        %1770 = vmatprep.subr.bf16.mxu0 0
        %1771 = vmatpush1.bf16.msra.mxu0 0
        %1772 = vmatprep.subr.bf16.mxu0 0
        %1773 = vmatpush1.bf16.msra.mxu0 0
        %1774 = vmatprep.subr.bf16.mxu0 0
        %1775 = vmatpush1.bf16.msra.mxu0 0
        %1776 = vmatprep.subr.bf16.mxu0 0
        %1777 = vmatpush1.bf16.msra.mxu0 0
        %1778 = vmatprep.mubr.bf16.mxu0 0
        %1779 = vmatmul.mubr.bf16.gmra.mrb[0].mxu0 %v1741
        %v1780 = vpop.f32.mrb[0].mxu0
        %v1781 = vadd.f32 0.0, %v1780
        %v1782 = vpop.f32.mrb[0].mxu0
        %v1783 = vpop.f32.mrb[0].mxu0
        %v1784 = vpop.f32.mrb[0].mxu0
        %1785 = vdwg.mxu0
        %1786 = vst.msk [vmem:[#allocation3 + $0xe] sm:$0x3] %vm981, %v1781
        %1787 = vst.msk [vmem:[%s983 + $0xc] sm:$0xc] %vm984, %v1781
        %1788 = vst.msk [vmem:[%s986 + $0xa] sm:$0x30] %vm987, %v1781
        %1789 = vst.msk [vmem:[%s989 + $0x8] sm:$0xc0] %vm990, %v1781
        %v1790 = vld [vmem:[#allocation5] sm:$0xff]
        %v1791 = vld [vmem:[#allocation5 + $0x8] sm:$0xff]
        %v1792 = vld [vmem:[%s576] sm:$0x1]
        %v1794 = vlaneseq
        %v1795 = vshrl.u32 %v1794, 7
        %v1796 = vsub.s32 0, %v1795
        %v1797 = vrot.slane %v1792, %v1796
        %v1799 = vmul.f32 %v1790, %v1797
        %v1800 = vmul.f32 %v1791, %v1797
        %v1801 = vsel %vm761, %v1799, 0.0
        %1802 = vadd.xlane.f32.xlu0 %v1801
        %v1803 = vpop.xlane.xlu0 %1802
        %v1804 = vsel %vm761, %v1800, 0.0
        %1805 = vadd.xlane.f32.xlu0 %v1804
        %v1806 = vpop.xlane.xlu0 %1805
        %v1807 = vld [vmem:[%s642] sm:$0x1]
        %v1809 = vlaneseq
        %v1810 = vshrl.u32 %v1809, 7
        %v1811 = vsub.s32 0, %v1810
        %v1812 = vrot.slane %v1807, %v1811
        %v1814 = vadd.f32 %v1803, %v1812
        %v1815 = vadd.f32 %v1806, %v1812
        %v1816 = vld [vmem:[#allocation3] sm:$0xff]
        %v1817 = vld [vmem:[#allocation3 + $0x8] sm:$0xff]
        %v1818 = vld [vmem:[%s639] sm:$0x1]
        %v1820 = vlaneseq
        %v1821 = vshrl.u32 %v1820, 7
        %v1822 = vsub.s32 0, %v1821
        %v1823 = vrot.slane %v1818, %v1822
        %v1825 = vmul.f32 %v1816, %v1823
        %v1826 = vmul.f32 %v1817, %v1823
        %v1827 = vsel %vm875, %v1825, 0.0
        %1828 = vadd.xlane.f32.xlu0 %v1827
        %v1829 = vpop.xlane.xlu0 %1828
        %v1830 = vsel %vm875, %v1826, 0.0
        %1831 = vadd.xlane.f32.xlu0 %v1830
        %v1832 = vpop.xlane.xlu0 %1831
        %v1833 = vadd.f32 %v1814, %v1829
        %v1834 = vadd.f32 %v1815, %v1832
        %v1835 = vld [vmem:[%s983] sm:$0xff]
        %v1836 = vld [vmem:[%s983 + $0x8] sm:$0xff]
        %s1837 = scalar_lea.vmem %s639, 1
        %v1838 = vld [vmem:[%s1837] sm:$0x1]
        %v1840 = vlaneseq
        %v1841 = vshrl.u32 %v1840, 7
        %v1842 = vsub.s32 0, %v1841
        %v1843 = vrot.slane %v1838, %v1842
        %v1845 = vmul.f32 %v1835, %v1843
        %v1846 = vmul.f32 %v1836, %v1843
        %v1847 = vsel %vm875, %v1845, 0.0
        %1848 = vadd.xlane.f32.xlu0 %v1847
        %v1849 = vpop.xlane.xlu0 %1848
        %v1850 = vsel %vm875, %v1846, 0.0
        %1851 = vadd.xlane.f32.xlu0 %v1850
        %v1852 = vpop.xlane.xlu0 %1851
        %v1853 = vadd.f32 %v1833, %v1849
        %v1854 = vadd.f32 %v1834, %v1852
        %v1855 = vld [vmem:[%s986] sm:$0xff]
        %v1856 = vld [vmem:[%s986 + $0x8] sm:$0xff]
        %s1857 = scalar_lea.vmem %s639, 2
        %v1858 = vld [vmem:[%s1857] sm:$0x1]
        %v1860 = vlaneseq
        %v1861 = vshrl.u32 %v1860, 7
        %v1862 = vsub.s32 0, %v1861
        %v1863 = vrot.slane %v1858, %v1862
        %v1865 = vmul.f32 %v1855, %v1863
        %v1866 = vmul.f32 %v1856, %v1863
        %v1867 = vsel %vm875, %v1865, 0.0
        %1868 = vadd.xlane.f32.xlu0 %v1867
        %v1869 = vpop.xlane.xlu0 %1868
        %v1870 = vsel %vm875, %v1866, 0.0
        %1871 = vadd.xlane.f32.xlu0 %v1870
        %v1872 = vpop.xlane.xlu0 %1871
        %v1873 = vadd.f32 %v1853, %v1869
        %v1874 = vadd.f32 %v1854, %v1872
        %v1875 = vld [vmem:[%s989] sm:$0xff]
        %v1876 = vld [vmem:[%s989 + $0x8] sm:$0xff]
        %s1877 = scalar_lea.vmem %s639, 3
        %v1878 = vld [vmem:[%s1877] sm:$0x1]
        %v1880 = vlaneseq
        %v1881 = vshrl.u32 %v1880, 7
        %v1882 = vsub.s32 0, %v1881
        %v1883 = vrot.slane %v1878, %v1882
        %v1885 = vmul.f32 %v1875, %v1883
        %v1886 = vmul.f32 %v1876, %v1883
        %v1887 = vsel %vm875, %v1885, 0.0
        %1888 = vadd.xlane.f32.xlu0 %v1887
        %v1889 = vpop.xlane.xlu0 %1888
        %v1890 = vsel %vm875, %v1886, 0.0
        %1891 = vadd.xlane.f32.xlu0 %v1890
        %v1892 = vpop.xlane.xlu0 %1891
        %v1893 = vadd.f32 %v1873, %v1889
        %v1894 = vadd.f32 %v1874, %v1892
        %v1895 = vsub.f32 0.0, %v1893
        %v1896 = vsub.f32 0.0, %v1894
        %v1897 = vmul.f32 %v1895, 1.442695
        %v1898 = vpow.pop %v1897
        %v1899 = vmul.f32 %v1896, 1.442695
        %v1900 = vpow.pop %v1899
        %v1901 = vadd.f32 %v1898, 1.0
        %v1902 = vadd.f32 %v1900, 1.0
        %v1903 = vrcp.pop %v1901
        %v1904 = vmul.f32 1.0, %v1903
        %v1905 = vrcp.pop %v1902
        %v1906 = vmul.f32 1.0, %v1905
        %v1907 = vld [vmem:[#allocation4] sm:$0xff]
        %v1908 = vld [vmem:[#allocation4 + $0x8] sm:$0xff]
        %1910 = vset.pattern.permute.xlu0 0
        %1911 = vperm.xlu0 %1910, %v1904
        %v1912 = vpop.permute.xlu0 %1911
        %1915 = vset.pattern.permute.xlu0 0
        %1916 = vperm.xlu0 %1915, %v1906
        %v1917 = vpop.permute.xlu0 %1916
        %v1919 = vmul.f32 %v1912, %v1816
        %v1920 = vmul.f32 %v1917, %v1817
        %v1921 = vadd.f32 %v1907, %v1919
        %v1922 = vadd.f32 %v1908, %v1920
        %1923 = vst.msk [vmem:[#allocation4] sm:$0xff] %vm875, %v1921
        %1924 = vst.msk [vmem:[#allocation4 + $0x8] sm:$0xff] %vm875, %v1922
        %s1925 = scalar_lea.vmem [#allocation4], 16
        %v1926 = vld [vmem:[%s1925] sm:$0xff]
        %v1927 = vld [vmem:[%s1925 + $0x8] sm:$0xff]
        %v1928 = vld [vmem:[%s983] sm:$0xff]
        %v1929 = vld [vmem:[%s983 + $0x8] sm:$0xff]
        %v1930 = vmul.f32 %v1912, %v1928
        %v1931 = vmul.f32 %v1917, %v1929
        %v1932 = vadd.f32 %v1926, %v1930
        %v1933 = vadd.f32 %v1927, %v1931
        %1934 = vst.msk [vmem:[%s1925] sm:$0xff] %vm875, %v1932
        %1935 = vst.msk [vmem:[%s1925 + $0x8] sm:$0xff] %vm875, %v1933
        %s1936 = scalar_lea.vmem [#allocation4], 32
        %v1937 = vld [vmem:[%s1936] sm:$0xff]
        %v1938 = vld [vmem:[%s1936 + $0x8] sm:$0xff]
        %v1939 = vld [vmem:[%s986] sm:$0xff]
        %v1940 = vld [vmem:[%s986 + $0x8] sm:$0xff]
        %v1941 = vmul.f32 %v1912, %v1939
        %v1942 = vmul.f32 %v1917, %v1940
        %v1943 = vadd.f32 %v1937, %v1941
        %v1944 = vadd.f32 %v1938, %v1942
        %1945 = vst.msk [vmem:[%s1936] sm:$0xff] %vm875, %v1943
        %1946 = vst.msk [vmem:[%s1936 + $0x8] sm:$0xff] %vm875, %v1944
        %s1947 = scalar_lea.vmem [#allocation4], 48
        %v1948 = vld [vmem:[%s1947] sm:$0xff]
        %v1949 = vld [vmem:[%s1947 + $0x8] sm:$0xff]
        %v1950 = vld [vmem:[%s989] sm:$0xff]
        %v1951 = vld [vmem:[%s989 + $0x8] sm:$0xff]
        %v1952 = vmul.f32 %v1912, %v1950
        %v1953 = vmul.f32 %v1917, %v1951
        %v1954 = vadd.f32 %v1948, %v1952
        %v1955 = vadd.f32 %v1949, %v1953
        %1956 = vst.msk [vmem:[%s1947] sm:$0xff] %vm875, %v1954
        %1957 = vst.msk [vmem:[%s1947 + $0x8] sm:$0xff] %vm875, %v1955
        %p1958 = scmp.eq.s32.totalorder %s37, 2
        // Predicated region
        $region101: #{tpu_custom_call.1} parent=67 // pred_check
          %p1959 = pneg %p1958
        $region102: #{tpu_custom_call.1} parent=67 // pred_check_branch
          %1961 = sbr.rel (%p1959) target = $region104
        $region103: #{tpu_custom_call.1} parent=67 // pred_region
          %v1962 = vld [vmem:[%s11] sm:$0x1]
          %v1963 = vld [vmem:[#allocation4] sm:$0xff]
          %v1964 = vld [vmem:[#allocation4 + $0x8] sm:$0xff]
          %v1965 = vpack.c.bf16 %v1964, %v1963
          %v1966 = vld [vmem:[%s10] sm:$0xf]
          %v1968 = vsel %vm875, %v1965, 0
          %v1971 = vsel %vm937, %v1966, 0
          %1973 = vmatprep.subr.bf16.mxu0 0
          %1974 = vmatpush1.bf16.msra.mxu0 %v1971
          %1975 = vmatprep.subr.bf16.mxu0 0
          %1976 = vmatpush1.bf16.msra.mxu0 0
          %1977 = vmatprep.subr.bf16.mxu0 0
          %1978 = vmatpush1.bf16.msra.mxu0 0
          %1979 = vmatprep.subr.bf16.mxu0 0
          %1980 = vmatpush1.bf16.msra.mxu0 0
          %1981 = vmatprep.subr.bf16.mxu0 0
          %1982 = vmatpush1.bf16.msra.mxu0 0
          %1983 = vmatprep.subr.bf16.mxu0 0
          %1984 = vmatpush1.bf16.msra.mxu0 0
          %1985 = vmatprep.subr.bf16.mxu0 0
          %1986 = vmatpush1.bf16.msra.mxu0 0
          %1987 = vmatprep.subr.bf16.mxu0 0
          %1988 = vmatpush1.bf16.msra.mxu0 0
          %1989 = vmatprep.subr.bf16.mxu0 0
          %1990 = vmatpush1.bf16.msra.mxu0 0
          %1991 = vmatprep.subr.bf16.mxu0 0
          %1992 = vmatpush1.bf16.msra.mxu0 0
          %1993 = vmatprep.subr.bf16.mxu0 0
          %1994 = vmatpush1.bf16.msra.mxu0 0
          %1995 = vmatprep.subr.bf16.mxu0 0
          %1996 = vmatpush1.bf16.msra.mxu0 0
          %1997 = vmatprep.subr.bf16.mxu0 0
          %1998 = vmatpush1.bf16.msra.mxu0 0
          %1999 = vmatprep.subr.bf16.mxu0 0
          %2000 = vmatpush1.bf16.msra.mxu0 0
          %2001 = vmatprep.subr.bf16.mxu0 0
          %2002 = vmatpush1.bf16.msra.mxu0 0
          %2003 = vmatprep.subr.bf16.mxu0 0
          %2004 = vmatpush1.bf16.msra.mxu0 0
          %2005 = vmatprep.mubr.bf16.mxu0 0
          %2006 = vmatmul.mubr.bf16.gmra.mrb[0].mxu0 %v1968
          %v2007 = vpop.f32.mrb[0].mxu0
          %v2008 = vadd.f32 0.0, %v2007
          %v2009 = vpop.f32.mrb[0].mxu0
          %v2010 = vpop.f32.mrb[0].mxu0
          %v2011 = vadd.f32 0.0, %v2010
          %v2012 = vpop.f32.mrb[0].mxu0
          %2013 = vdwg.mxu0
          %v2015 = vlaneseq
          %v2016 = vshrl.u32 %v2015, 7
          %v2017 = vsub.s32 0, %v2016
          %v2018 = vrot.slane %v1962, %v2017
          %v2020 = vadd.f32 %v2018, %v2008
          %v2021 = vadd.f32 %v2018, %v2011
          %v2022 = vld [vmem:[%s1925] sm:$0xff]
          %v2023 = vld [vmem:[%s1925 + $0x8] sm:$0xff]
          %v2024 = vpack.c.bf16 %v2023, %v2022
          %s2025 = scalar_lea.vmem %s10, 4
          %v2026 = vld [vmem:[%s2025] sm:$0xf]
          %v2028 = vsel %vm875, %v2024, 0
          %v2031 = vsel %vm937, %v2026, 0
          %2033 = vmatprep.subr.bf16.mxu0 0
          %2034 = vmatpush1.bf16.msra.mxu0 %v2031
          %2035 = vmatprep.subr.bf16.mxu0 0
          %2036 = vmatpush1.bf16.msra.mxu0 0
          %2037 = vmatprep.subr.bf16.mxu0 0
          %2038 = vmatpush1.bf16.msra.mxu0 0
          %2039 = vmatprep.subr.bf16.mxu0 0
          %2040 = vmatpush1.bf16.msra.mxu0 0
          %2041 = vmatprep.subr.bf16.mxu0 0
          %2042 = vmatpush1.bf16.msra.mxu0 0
          %2043 = vmatprep.subr.bf16.mxu0 0
          %2044 = vmatpush1.bf16.msra.mxu0 0
          %2045 = vmatprep.subr.bf16.mxu0 0
          %2046 = vmatpush1.bf16.msra.mxu0 0
          %2047 = vmatprep.subr.bf16.mxu0 0
          %2048 = vmatpush1.bf16.msra.mxu0 0
          %2049 = vmatprep.subr.bf16.mxu0 0
          %2050 = vmatpush1.bf16.msra.mxu0 0
          %2051 = vmatprep.subr.bf16.mxu0 0
          %2052 = vmatpush1.bf16.msra.mxu0 0
          %2053 = vmatprep.subr.bf16.mxu0 0
          %2054 = vmatpush1.bf16.msra.mxu0 0
          %2055 = vmatprep.subr.bf16.mxu0 0
          %2056 = vmatpush1.bf16.msra.mxu0 0
          %2057 = vmatprep.subr.bf16.mxu0 0
          %2058 = vmatpush1.bf16.msra.mxu0 0
          %2059 = vmatprep.subr.bf16.mxu0 0
          %2060 = vmatpush1.bf16.msra.mxu0 0
          %2061 = vmatprep.subr.bf16.mxu0 0
          %2062 = vmatpush1.bf16.msra.mxu0 0
          %2063 = vmatprep.subr.bf16.mxu0 0
          %2064 = vmatpush1.bf16.msra.mxu0 0
          %2065 = vmatprep.mubr.bf16.mxu0 0
          %2066 = vmatmul.mubr.bf16.gmra.mrb[0].mxu0 %v2028
          %v2067 = vpop.f32.mrb[0].mxu0
          %v2068 = vadd.f32 0.0, %v2067
          %v2069 = vpop.f32.mrb[0].mxu0
          %v2070 = vpop.f32.mrb[0].mxu0
          %v2071 = vadd.f32 0.0, %v2070
          %v2072 = vpop.f32.mrb[0].mxu0
          %2073 = vdwg.mxu0
          %v2074 = vadd.f32 %v2020, %v2068
          %v2075 = vadd.f32 %v2021, %v2071
          %v2076 = vld [vmem:[%s1936] sm:$0xff]
          %v2077 = vld [vmem:[%s1936 + $0x8] sm:$0xff]
          %v2078 = vpack.c.bf16 %v2077, %v2076
          %s2079 = scalar_lea.vmem %s10, 8
          %v2080 = vld [vmem:[%s2079] sm:$0xf]
          %v2082 = vsel %vm875, %v2078, 0
          %v2085 = vsel %vm937, %v2080, 0
          %2087 = vmatprep.subr.bf16.mxu0 0
          %2088 = vmatpush1.bf16.msra.mxu0 %v2085
          %2089 = vmatprep.subr.bf16.mxu0 0
          %2090 = vmatpush1.bf16.msra.mxu0 0
          %2091 = vmatprep.subr.bf16.mxu0 0
          %2092 = vmatpush1.bf16.msra.mxu0 0
          %2093 = vmatprep.subr.bf16.mxu0 0
          %2094 = vmatpush1.bf16.msra.mxu0 0
          %2095 = vmatprep.subr.bf16.mxu0 0
          %2096 = vmatpush1.bf16.msra.mxu0 0
          %2097 = vmatprep.subr.bf16.mxu0 0
          %2098 = vmatpush1.bf16.msra.mxu0 0
          %2099 = vmatprep.subr.bf16.mxu0 0
          %2100 = vmatpush1.bf16.msra.mxu0 0
          %2101 = vmatprep.subr.bf16.mxu0 0
          %2102 = vmatpush1.bf16.msra.mxu0 0
          %2103 = vmatprep.subr.bf16.mxu0 0
          %2104 = vmatpush1.bf16.msra.mxu0 0
          %2105 = vmatprep.subr.bf16.mxu0 0
          %2106 = vmatpush1.bf16.msra.mxu0 0
          %2107 = vmatprep.subr.bf16.mxu0 0
          %2108 = vmatpush1.bf16.msra.mxu0 0
          %2109 = vmatprep.subr.bf16.mxu0 0
          %2110 = vmatpush1.bf16.msra.mxu0 0
          %2111 = vmatprep.subr.bf16.mxu0 0
          %2112 = vmatpush1.bf16.msra.mxu0 0
          %2113 = vmatprep.subr.bf16.mxu0 0
          %2114 = vmatpush1.bf16.msra.mxu0 0
          %2115 = vmatprep.subr.bf16.mxu0 0
          %2116 = vmatpush1.bf16.msra.mxu0 0
          %2117 = vmatprep.subr.bf16.mxu0 0
          %2118 = vmatpush1.bf16.msra.mxu0 0
          %2119 = vmatprep.mubr.bf16.mxu0 0
          %2120 = vmatmul.mubr.bf16.gmra.mrb[0].mxu0 %v2082
          %v2121 = vpop.f32.mrb[0].mxu0
          %v2122 = vadd.f32 0.0, %v2121
          %v2123 = vpop.f32.mrb[0].mxu0
          %v2124 = vpop.f32.mrb[0].mxu0
          %v2125 = vadd.f32 0.0, %v2124
          %v2126 = vpop.f32.mrb[0].mxu0
          %2127 = vdwg.mxu0
          %v2128 = vadd.f32 %v2074, %v2122
          %v2129 = vadd.f32 %v2075, %v2125
          %v2130 = vld [vmem:[%s1947] sm:$0xff]
          %v2131 = vld [vmem:[%s1947 + $0x8] sm:$0xff]
          %v2132 = vpack.c.bf16 %v2131, %v2130
          %s2133 = scalar_lea.vmem %s10, 12
          %v2134 = vld [vmem:[%s2133] sm:$0xf]
          %v2136 = vsel %vm875, %v2132, 0
          %v2139 = vsel %vm937, %v2134, 0
          %2141 = vmatprep.subr.bf16.mxu0 0
          %2142 = vmatpush1.bf16.msra.mxu0 %v2139
          %2143 = vmatprep.subr.bf16.mxu0 0
          %2144 = vmatpush1.bf16.msra.mxu0 0
          %2145 = vmatprep.subr.bf16.mxu0 0
          %2146 = vmatpush1.bf16.msra.mxu0 0
          %2147 = vmatprep.subr.bf16.mxu0 0
          %2148 = vmatpush1.bf16.msra.mxu0 0
          %2149 = vmatprep.subr.bf16.mxu0 0
          %2150 = vmatpush1.bf16.msra.mxu0 0
          %2151 = vmatprep.subr.bf16.mxu0 0
          %2152 = vmatpush1.bf16.msra.mxu0 0
          %2153 = vmatprep.subr.bf16.mxu0 0
          %2154 = vmatpush1.bf16.msra.mxu0 0
          %2155 = vmatprep.subr.bf16.mxu0 0
          %2156 = vmatpush1.bf16.msra.mxu0 0
          %2157 = vmatprep.subr.bf16.mxu0 0
          %2158 = vmatpush1.bf16.msra.mxu0 0
          %2159 = vmatprep.subr.bf16.mxu0 0
          %2160 = vmatpush1.bf16.msra.mxu0 0
          %2161 = vmatprep.subr.bf16.mxu0 0
          %2162 = vmatpush1.bf16.msra.mxu0 0
          %2163 = vmatprep.subr.bf16.mxu0 0
          %2164 = vmatpush1.bf16.msra.mxu0 0
          %2165 = vmatprep.subr.bf16.mxu0 0
          %2166 = vmatpush1.bf16.msra.mxu0 0
          %2167 = vmatprep.subr.bf16.mxu0 0
          %2168 = vmatpush1.bf16.msra.mxu0 0
          %2169 = vmatprep.subr.bf16.mxu0 0
          %2170 = vmatpush1.bf16.msra.mxu0 0
          %2171 = vmatprep.subr.bf16.mxu0 0
          %2172 = vmatpush1.bf16.msra.mxu0 0
          %2173 = vmatprep.mubr.bf16.mxu0 0
          %2174 = vmatmul.mubr.bf16.gmra.mrb[0].mxu0 %v2136
          %v2175 = vpop.f32.mrb[0].mxu0
          %v2176 = vadd.f32 0.0, %v2175
          %v2177 = vpop.f32.mrb[0].mxu0
          %v2178 = vpop.f32.mrb[0].mxu0
          %v2179 = vadd.f32 0.0, %v2178
          %v2180 = vpop.f32.mrb[0].mxu0
          %2181 = vdwg.mxu0
          %v2182 = vadd.f32 %v2128, %v2176
          %v2183 = vadd.f32 %v2129, %v2179
          %2184 = vst.msk [vmem:[#allocation17] sm:$0xff] %vm761, %v2182
          %2185 = vst.msk [vmem:[#allocation17 + $0x8] sm:$0xff] %vm761, %v2183
        $region104: #{tpu_custom_call.1} parent=67 // pred_fallthru
          _
        // Predicated region
        $region105: #{tpu_custom_call.1} parent=67 // pred_check
          %p2186 = pneg %p356
        $region106: #{tpu_custom_call.1} parent=67 // pred_check_branch
          %2188 = sbr.rel (%p2186) target = $region108
        $region107: #{tpu_custom_call.1} parent=67 // pred_region
          %s2189 = smul.u32 2, %s36
          %s2191 = ssub.s32 256, 256
          %2192 = vsyncadd [#allocation7], %s2191
          %s2193 = smul.addr %s2189, 128
          %s2194 = scalar_lea.hbm %s12, %s2193
          %s2195 = sshll.u32 [#allocation17], 4
          %s2196 = int_to_ptr.vmem [resolvable:$true] %s2195
          %2201 = dma.vmem_to_hbm [thread:$0]  %s2196, 256, %s2194, [#allocation7], 128, 128, 8
        $region108: #{tpu_custom_call.1} parent=67 // pred_fallthru
          _
        // Predicated region
        $region109: #{tpu_custom_call.1} parent=67 // pred_check
          %p2202 = pneg %p356
        $region110: #{tpu_custom_call.1} parent=67 // pred_check_branch
          %2204 = sbr.rel (%p2202) target = $region112
        $region111: #{tpu_custom_call.1} parent=67 // pred_region
          %2205 = dma.done [#allocation7], 256
        $region112: #{tpu_custom_call.1} parent=67 // pred_fallthru
          _
      $region68: #{tpu_custom_call.1} parent=5 // pred_fallthru
        _
      %p2206 = scmp.le.s32.totalorder 2, %s27
      // Predicated region
      $region113: #{tpu_custom_call.1} parent=5 // pred_check
        %p2207 = pneg %p2206
      $region114: #{tpu_custom_call.1} parent=5 // pred_check_branch
        %2209 = sbr.rel (%p2207) target = $region116
      $region115: #{tpu_custom_call.1} parent=5 // pred_region
        %s2210 = ssub.s32 %s27, 2
      $region116: #{tpu_custom_call.1} parent=5 // pred_fallthru
        _
    $region6: #{tpu_custom_call.1} parent=1 // loop_footer
      %s31 = sadd.s32 1, %s27
    $region7: #{tpu_custom_call.1} parent=1 // loop_footer_branch
      %26 = sbr.rel target = $region3
    $region8: #{tpu_custom_call.1} parent=1 // loop_exit
      _
    %2211 = vsyncpa [#allocation6], 1
    %s2212 = scalar_lea.sflag [#allocation6], 1
    %2213 = vsyncpa %s2212, 1
    %2214 = vsyncpa [#allocation9], 1
    %2215 = vsyncpa [#allocation13], 1
    %s2216 = scalar_lea.sflag [#allocation13], 1
    %2217 = vsyncpa %s2216, 1
    %2218 = vsyncpa [#allocation16], 1
    %s2219 = scalar_lea.sflag [#allocation16], 1
    %2220 = vsyncpa %s2219, 1
    %2221 = vsyncpa [#allocation7], 1
    %s2222 = scalar_lea.sflag [#allocation7], 1
    %2223 = vsyncpa %s2222, 1

</llo_original>
